<compile_context>
chip_gen: v7x
topology: tpu7x:2x2x1
jax: 0.10.0
libtpu: 0.0.40
codegen_flags: <defaults>
</compile_context>

<pallas_src>
import functools
import math

import jax
import jax.numpy as jnp
from jax.experimental import pallas as pl
from jax.experimental.pallas import tpu as pltpu

LANE = 128   # TPU lane width; all matmul output column dims are padded to this
CPAD = 128   # conv channel padding -> lane-dense conv outputs


def _round_up(x, m):
    return (x + m - 1) // m * m


# ----------------------------------------------------------------------------
# Pallas kernel: one (TM, TN) output tile of  act(x @ w + b).
# ----------------------------------------------------------------------------
def _matmul_bias_act_kernel(x_ref, w_ref, b_ref, o_ref, *, activation):
    # bf16 x bf16 -> f32 accumulation on the MXU; bias + activation in f32.
    acc = jnp.dot(x_ref[...], w_ref[...], preferred_element_type=jnp.float32)
    acc = acc + b_ref[...]                       # (1, TN) broadcast over rows
    if activation == "relu":
        acc = jnp.maximum(acc, 0.0)
    elif activation == "leaky_relu":
        acc = jnp.where(acc > 0.0, acc, 0.2 * acc)
    o_ref[...] = acc.astype(o_ref.dtype)


def pallas_matmul_bias_act(x, w, b, *, activation, out_dtype=jnp.bfloat16,
                           tm_target=512, tn=LANE):
    """act(x @ w + b).

    x: [M, K]; w: [K, N] with N % 128 == 0 (pre-padded at init); b: [N] f32.
    Grid over (M, N); K whole. TM <= 512 (multiple of 8 unless TM == M),
    TN = 128. Pallas double-buffers the tiles (DMA/compute overlap).
    """
    M, K = x.shape
    K2, N = w.shape
    assert K == K2, (K, K2)
    assert N % tn == 0, N
    assert tm_target % 8 == 0

    x = x.astype(jnp.bfloat16)
    w = w.astype(jnp.bfloat16)
    b2 = b.reshape(1, N).astype(jnp.float32)

    if M <= tm_target:
        tm = M            # block == full array dim: always layout-legal
    else:
        tm = tm_target    # multiple of 8; a partial last block (M % tm != 0)
                          # only produces rows that are dropped on write.
    grid = (pl.cdiv(M, tm), N // tn)

    kernel = functools.partial(_matmul_bias_act_kernel, activation=activation)
    return pl.pallas_call(
        kernel,
        out_shape=jax.ShapeDtypeStruct((M, N), out_dtype),
        grid=grid,
        in_specs=[
            pl.BlockSpec((tm, K), lambda i, j: (i, 0)),   # x row tile (reused across j)
            pl.BlockSpec((K, tn), lambda i, j: (0, j)),   # w column tile
            pl.BlockSpec((1, tn), lambda i, j: (0, j)),   # bias tile
        ],
        out_specs=pl.BlockSpec((tm, tn), lambda i, j: (i, j)),
        compiler_params=pltpu.CompilerParams(
            dimension_semantics=("parallel", "parallel"),
            vmem_limit_bytes=32 * 1024 * 1024,
        ),
    )(x, w, b2)


# ----------------------------------------------------------------------------
# Glue: NHWC im2col patch extraction (gather/reshape only, no FLOPs).
# Patch row element order is (kh, kw, c), matching the weight layout below.
# ----------------------------------------------------------------------------
def _im2col_nhwc(x, kh, kw, stride):
    n, h, w, c = x.shape
    oh = (h - kh) // stride + 1
    ow = (w - kw) // stride + 1
    idx_h = (jnp.arange(oh) * stride)[:, None] + jnp.arange(kh)[None, :]   # [OH, KH]
    idx_w = (jnp.arange(ow) * stride)[:, None] + jnp.arange(kw)[None, :]   # [OW, KW]
    p = x[:, idx_h]                               # [N, OH, KH, W, C]
    p = p[:, :, :, idx_w]                         # [N, OH, KH, OW, KW, C]
    p = jnp.transpose(p, (0, 1, 3, 2, 4, 5))      # [N, OH, OW, KH, KW, C]
    return p.reshape(n * oh * ow, kh * kw * c), oh, ow


def conv2d_leaky_relu(x_nhwc, w_mat, b_pad, kh, kw, stride):
    """x_nhwc: [N, H, W, C]; w_mat: [KH*KW*C, Cout_pad]; b_pad: [Cout_pad]."""
    n = x_nhwc.shape[0]
    patches, oh, ow = _im2col_nhwc(x_nhwc, kh, kw, stride)
    out = pallas_matmul_bias_act(patches, w_mat, b_pad,
                                 activation="leaky_relu",
                                 out_dtype=jnp.bfloat16)
    return out.reshape(n, oh, ow, w_mat.shape[1]), oh, ow


# ----------------------------------------------------------------------------
# Parameter init + one-time matmul-friendly weight layout.
# ----------------------------------------------------------------------------
def _uniform(key, shape, fan_in):
    bound = 1.0 / math.sqrt(float(fan_in))
    return jax.random.uniform(key, shape, jnp.float32, -bound, bound)


def _conv_w_to_mat(w, cin_pad, cout_pad):
    """[Cout, Cin, KH, KW] (PyTorch) -> [KH*KW*cin_pad, cout_pad], bf16."""
    cout, cin, kh, kw = w.shape
    w = jnp.transpose(w, (2, 3, 1, 0))                                    # [KH, KW, Cin, Cout]
    w = jnp.pad(w, ((0, 0), (0, 0), (0, cin_pad - cin), (0, cout_pad - cout)))
    return w.reshape(kh * kw * cin_pad, cout_pad).astype(jnp.bfloat16)


def init_rnd_predictor_head(key, input_dims, hidden_units=512):
    c_in, h_in, w_in = input_dims
    conv_out = lambda s, k, st: (s - k) // st + 1
    h1, w1 = conv_out(h_in, 8, 4), conv_out(w_in, 8, 4)
    h2, w2 = conv_out(h1, 4, 2), conv_out(w1, 4, 2)
    h3, w3 = conv_out(h2, 3, 1), conv_out(w2, 3, 1)
    d = 64 * h3 * w3
    hid_pad = _round_up(hidden_units, LANE)

    ws = math.sqrt(2.0) * 1.3   # scale_weights(weight_scale=sqrt(2)*1.3, bias_scale=0.0)

    keys = jax.random.split(key, 6)
    w1_t = _uniform(keys[0], (32, c_in, 8, 8), c_in * 8 * 8) * ws
    w2_t = _uniform(keys[1], (64, 32, 4, 4), 32 * 4 * 4) * ws
    w3_t = _uniform(keys[2], (64, 64, 3, 3), 64 * 3 * 3) * ws
    wf1_t = _uniform(keys[3], (512, d), d) * ws
    wf2_t = _uniform(keys[4], (512, 512), 512) * ws
    wo_t = _uniform(keys[5], (hidden_units, 512), 512) * ws
    # All biases are scaled by 0.0 in the reference module -> zeros.

    # fc1: absorb the PyTorch (c, h, w) flatten order into a column permutation
    # and zero-pad the channel axis to CPAD so it consumes the NHWC(c->128)
    # flattened conv3 output directly.
    wf1 = wf1_t.reshape(512, 64, h3, w3)              # [out, c, h, w]
    wf1 = jnp.transpose(wf1, (2, 3, 1, 0))            # [h, w, c, out]
    wf1 = jnp.pad(wf1, ((0, 0), (0, 0), (0, CPAD - 64), (0, 0)))
    wf1 = wf1.reshape(h3 * w3 * CPAD, 512).astype(jnp.bfloat16)

    wo = jnp.pad(wo_t.T, ((0, 0), (0, hid_pad - hidden_units))).astype(jnp.bfloat16)

    params = {
        "w1": _conv_w_to_mat(w1_t, c_in, CPAD), "b1": jnp.zeros((CPAD,), jnp.float32),
        "w2": _conv_w_to_mat(w2_t, CPAD, CPAD), "b2": jnp.zeros((CPAD,), jnp.float32),
        "w3": _conv_w_to_mat(w3_t, CPAD, CPAD), "b3": jnp.zeros((CPAD,), jnp.float32),
        "wf1": wf1,                              "bf1": jnp.zeros((512,), jnp.float32),
        "wf2": wf2_t.T.astype(jnp.bfloat16),     "bf2": jnp.zeros((512,), jnp.float32),
        "wo": wo,                                "bo": jnp.zeros((hid_pad,), jnp.float32),
    }
    return params, d


# ----------------------------------------------------------------------------
# Forward: x [N, C, H, W] -> features [N, hidden_units] f32 (no final relu).
# ----------------------------------------------------------------------------
def rnd_predictor_head_forward(x, params, hidden_units=512):
    n = x.shape[0]
    x = jnp.transpose(x, (0, 2, 3, 1)).astype(jnp.bfloat16)   # NCHW -> NHWC once

    x, _, _ = conv2d_leaky_relu(x, params["w1"], params["b1"], 8, 8, 4)
    x, _, _ = conv2d_leaky_relu(x, params["w2"], params["b2"], 4, 4, 2)
    x, h3, w3 = conv2d_leaky_relu(x, params["w3"], params["b3"], 3, 3, 1)

    x = x.reshape(n, h3 * w3 * CPAD)       # NHWC flatten; fc1 weight is permuted to match

    # Pad tiny batches to a multiple of 8 sublanes for the fc stack.
    n_pad = _round_up(n, 8)
    if n_pad != n:
        x = jnp.pad(x, ((0, n_pad - n), (0, 0)))

    x = pallas_matmul_bias_act(x, params["wf1"], params["bf1"], activation="relu")
    x = pallas_matmul_bias_act(x, params["wf2"], params["bf2"], activation="relu")
    x = pallas_matmul_bias_act(x, params["wo"], params["bo"], activation="none",
                               out_dtype=jnp.float32)
    return x[:n, :hidden_units]


if __name__ == "__main__":
    # 36x36 is the smallest spatial size the 8/4 -> 4/2 -> 3/1 conv stack accepts.
    batch = 2
    input_dims = (4, 36, 36)      # (C, H, W)
    hidden_units = 512

    key = jax.random.PRNGKey(0)
    k_params, k_x = jax.random.split(key)
    params, d = init_rnd_predictor_head(k_params, input_dims, hidden_units)

    x = jax.random.normal(k_x, (batch, *input_dims), dtype=jnp.float32)

    fwd = jax.jit(functools.partial(rnd_predictor_head_forward,
                                    hidden_units=hidden_units))
    out = fwd(x, params)
    out = jax.block_until_ready(out)

    assert out.shape == (batch, hidden_units), out.shape
    assert out.dtype == jnp.float32
    assert bool(jnp.all(jnp.isfinite(out)))
    print("KERNEL_OK")
</pallas_src>

<mosaic_0001>
module attributes {stable_mosaic.version = 11 : i64} {
  func.func @_matmul_bias_act_kernel(%arg0: i32, %arg1: i32, %arg2: memref<128x256xbf16, #tpu.memory_space<vmem>>, %arg3: memref<256x128xbf16, #tpu.memory_space<vmem>>, %arg4: memref<1x128xf32, #tpu.memory_space<vmem>>, %arg5: memref<128x128xbf16, #tpu.memory_space<vmem>>) attributes {dimension_semantics = [#tpu.dimension_semantics<parallel>, #tpu.dimension_semantics<parallel>], iteration_bounds = array<i64: 1, 1>, scalar_prefetch = 0 : i64, scratch_operands = 0 : i64, tpu.core_type = #tpu.core_type<tc>, window_params = [{transform_indices = @transform_0, window_bounds = array<i64: 128, 256>}, {transform_indices = @transform_1, window_bounds = array<i64: 256, 128>}, {transform_indices = @transform_2, window_bounds = array<i64: 1, 128>}, {transform_indices = @transform_3, window_bounds = array<i64: 128, 128>}]} {
    %c0 = arith.constant 0 : index
    %c0_0 = arith.constant 0 : index
    %0 = vector.load %arg2[%c0, %c0_0] : memref<128x256xbf16, #tpu.memory_space<vmem>>, vector<128x256xbf16>
    %c0_1 = arith.constant 0 : index
    %c0_2 = arith.constant 0 : index
    %1 = vector.load %arg3[%c0_1, %c0_2] : memref<256x128xbf16, #tpu.memory_space<vmem>>, vector<256x128xbf16>
    %cst = arith.constant dense<0.000000e+00> : vector<128x128xf32>
    %2 = tpu.matmul %0, %1, %cst {dimension_numbers = #tpu.dot_dimension_numbers<[1], [0], [0], [1], [0, 0, 1, 1], [], []>} : vector<128x256xbf16>, vector<256x128xbf16>, vector<128x128xf32> -> vector<128x128xf32>
    %c0_3 = arith.constant 0 : index
    %c0_4 = arith.constant 0 : index
    %3 = vector.load %arg4[%c0_3, %c0_4] : memref<1x128xf32, #tpu.memory_space<vmem>>, vector<1x128xf32>
    %4 = vector.broadcast %3 : vector<1x128xf32> to vector<128x128xf32>
    %5 = arith.addf %2, %4 : vector<128x128xf32>
    %cst_5 = arith.constant 0.000000e+00 : f32
    %6 = vector.broadcast %cst_5 : f32 to vector<128x128xf32>
    %7 = arith.cmpf ogt, %5, %6 : vector<128x128xf32>
    %cst_6 = arith.constant 2.000000e-01 : f32
    %8 = vector.broadcast %cst_6 : f32 to vector<128x128xf32>
    %9 = arith.mulf %8, %5 : vector<128x128xf32>
    %10 = arith.select %7, %5, %9 : vector<128x128xi1>, vector<128x128xf32>
    %11 = arith.truncf %10 : vector<128x128xf32> to vector<128x128xbf16>
    %c0_7 = arith.constant 0 : index
    %c0_8 = arith.constant 0 : index
    %12 = vector.load %arg5[%c0_7, %c0_8] : memref<128x128xbf16, #tpu.memory_space<vmem>>, vector<128x128xbf16>
    tpu.vector_store %arg5[%c0_7, %c0_8], %11 {strides = array<i32>} : memref<128x128xbf16, #tpu.memory_space<vmem>>, vector<128x128xbf16>,
    return
  }
  func.func @transform_0(%arg0: i32, %arg1: i32) -> (i32, i32) {
    %c0_i32 = arith.constant 0 : i32
    %c0_i32_0 = arith.constant 0 : i32
    return %arg0, %c0_i32 : i32, i32
  }
  func.func @transform_1(%arg0: i32, %arg1: i32) -> (i32, i32) {
    %c0_i32 = arith.constant 0 : i32
    %c0_i32_0 = arith.constant 0 : i32
    return %c0_i32, %arg1 : i32, i32
  }
  func.func @transform_2(%arg0: i32, %arg1: i32) -> (i32, i32) {
    %c0_i32 = arith.constant 0 : i32
    %c0_i32_0 = arith.constant 0 : i32
    return %c0_i32, %arg1 : i32, i32
  }
  func.func @transform_3(%arg0: i32, %arg1: i32) -> (i32, i32) {
    %c0_i32 = arith.constant 0 : i32
    return %arg0, %arg1 : i32, i32
  }
}

module attributes {stable_mosaic.version = 11 : i64} {
  func.func @_matmul_bias_act_kernel(%arg0: i32, %arg1: i32, %arg2: memref<18x2048xbf16, #tpu.memory_space<vmem>>, %arg3: memref<2048x128xbf16, #tpu.memory_space<vmem>>, %arg4: memref<1x128xf32, #tpu.memory_space<vmem>>, %arg5: memref<18x128xbf16, #tpu.memory_space<vmem>>) attributes {dimension_semantics = [#tpu.dimension_semantics<parallel>, #tpu.dimension_semantics<parallel>], iteration_bounds = array<i64: 1, 1>, scalar_prefetch = 0 : i64, scratch_operands = 0 : i64, tpu.core_type = #tpu.core_type<tc>, window_params = [{transform_indices = @transform_0, window_bounds = array<i64: 18, 2048>}, {transform_indices = @transform_1, window_bounds = array<i64: 2048, 128>}, {transform_indices = @transform_2, window_bounds = array<i64: 1, 128>}, {transform_indices = @transform_3, window_bounds = array<i64: 18, 128>}]} {
    %c0 = arith.constant 0 : index
    %c0_0 = arith.constant 0 : index
    %0 = vector.load %arg2[%c0, %c0_0] : memref<18x2048xbf16, #tpu.memory_space<vmem>>, vector<18x2048xbf16>
    %c0_1 = arith.constant 0 : index
    %c0_2 = arith.constant 0 : index
    %1 = vector.load %arg3[%c0_1, %c0_2] : memref<2048x128xbf16, #tpu.memory_space<vmem>>, vector<2048x128xbf16>
    %cst = arith.constant dense<0.000000e+00> : vector<18x128xf32>
    %2 = tpu.matmul %0, %1, %cst {dimension_numbers = #tpu.dot_dimension_numbers<[1], [0], [0], [1], [0, 0, 1, 1], [], []>} : vector<18x2048xbf16>, vector<2048x128xbf16>, vector<18x128xf32> -> vector<18x128xf32>
    %c0_3 = arith.constant 0 : index
    %c0_4 = arith.constant 0 : index
    %3 = vector.load %arg4[%c0_3, %c0_4] : memref<1x128xf32, #tpu.memory_space<vmem>>, vector<1x128xf32>
    %4 = vector.broadcast %3 : vector<1x128xf32> to vector<18x128xf32>
    %5 = arith.addf %2, %4 : vector<18x128xf32>
    %cst_5 = arith.constant 0.000000e+00 : f32
    %6 = vector.broadcast %cst_5 : f32 to vector<18x128xf32>
    %7 = arith.cmpf ogt, %5, %6 : vector<18x128xf32>
    %cst_6 = arith.constant 2.000000e-01 : f32
    %8 = vector.broadcast %cst_6 : f32 to vector<18x128xf32>
    %9 = arith.mulf %8, %5 : vector<18x128xf32>
    %10 = arith.select %7, %5, %9 : vector<18x128xi1>, vector<18x128xf32>
    %11 = arith.truncf %10 : vector<18x128xf32> to vector<18x128xbf16>
    %c0_7 = arith.constant 0 : index
    %c0_8 = arith.constant 0 : index
    %12 = vector.load %arg5[%c0_7, %c0_8] : memref<18x128xbf16, #tpu.memory_space<vmem>>, vector<18x128xbf16>
    tpu.vector_store %arg5[%c0_7, %c0_8], %11 {strides = array<i32>} : memref<18x128xbf16, #tpu.memory_space<vmem>>, vector<18x128xbf16>,
    return
  }
  func.func @transform_0(%arg0: i32, %arg1: i32) -> (i32, i32) {
    %c0_i32 = arith.constant 0 : i32
    %c0_i32_0 = arith.constant 0 : i32
    return %arg0, %c0_i32 : i32, i32
  }
  func.func @transform_1(%arg0: i32, %arg1: i32) -> (i32, i32) {
    %c0_i32 = arith.constant 0 : i32
    %c0_i32_0 = arith.constant 0 : i32
    return %c0_i32, %arg1 : i32, i32
  }
  func.func @transform_2(%arg0: i32, %arg1: i32) -> (i32, i32) {
    %c0_i32 = arith.constant 0 : i32
    %c0_i32_0 = arith.constant 0 : i32
    return %c0_i32, %arg1 : i32, i32
  }
  func.func @transform_3(%arg0: i32, %arg1: i32) -> (i32, i32) {
    %c0_i32 = arith.constant 0 : i32
    return %arg0, %arg1 : i32, i32
  }
}

module attributes {stable_mosaic.version = 11 : i64} {
  func.func @_matmul_bias_act_kernel(%arg0: i32, %arg1: i32, %arg2: memref<2x1152xbf16, #tpu.memory_space<vmem>>, %arg3: memref<1152x128xbf16, #tpu.memory_space<vmem>>, %arg4: memref<1x128xf32, #tpu.memory_space<vmem>>, %arg5: memref<2x128xbf16, #tpu.memory_space<vmem>>) attributes {dimension_semantics = [#tpu.dimension_semantics<parallel>, #tpu.dimension_semantics<parallel>], iteration_bounds = array<i64: 1, 1>, scalar_prefetch = 0 : i64, scratch_operands = 0 : i64, tpu.core_type = #tpu.core_type<tc>, window_params = [{transform_indices = @transform_0, window_bounds = array<i64: 2, 1152>}, {transform_indices = @transform_1, window_bounds = array<i64: 1152, 128>}, {transform_indices = @transform_2, window_bounds = array<i64: 1, 128>}, {transform_indices = @transform_3, window_bounds = array<i64: 2, 128>}]} {
    %c0 = arith.constant 0 : index
    %c0_0 = arith.constant 0 : index
    %0 = vector.load %arg2[%c0, %c0_0] : memref<2x1152xbf16, #tpu.memory_space<vmem>>, vector<2x1152xbf16>
    %c0_1 = arith.constant 0 : index
    %c0_2 = arith.constant 0 : index
    %1 = vector.load %arg3[%c0_1, %c0_2] : memref<1152x128xbf16, #tpu.memory_space<vmem>>, vector<1152x128xbf16>
    %cst = arith.constant dense<0.000000e+00> : vector<2x128xf32>
    %2 = tpu.matmul %0, %1, %cst {dimension_numbers = #tpu.dot_dimension_numbers<[1], [0], [0], [1], [0, 0, 1, 1], [], []>} : vector<2x1152xbf16>, vector<1152x128xbf16>, vector<2x128xf32> -> vector<2x128xf32>
    %c0_3 = arith.constant 0 : index
    %c0_4 = arith.constant 0 : index
    %3 = vector.load %arg4[%c0_3, %c0_4] : memref<1x128xf32, #tpu.memory_space<vmem>>, vector<1x128xf32>
    %4 = vector.broadcast %3 : vector<1x128xf32> to vector<2x128xf32>
    %5 = arith.addf %2, %4 : vector<2x128xf32>
    %cst_5 = arith.constant 0.000000e+00 : f32
    %6 = vector.broadcast %cst_5 : f32 to vector<2x128xf32>
    %7 = arith.cmpf ogt, %5, %6 : vector<2x128xf32>
    %cst_6 = arith.constant 2.000000e-01 : f32
    %8 = vector.broadcast %cst_6 : f32 to vector<2x128xf32>
    %9 = arith.mulf %8, %5 : vector<2x128xf32>
    %10 = arith.select %7, %5, %9 : vector<2x128xi1>, vector<2x128xf32>
    %11 = arith.truncf %10 : vector<2x128xf32> to vector<2x128xbf16>
    %c0_7 = arith.constant 0 : index
    %c0_8 = arith.constant 0 : index
    %12 = vector.load %arg5[%c0_7, %c0_8] : memref<2x128xbf16, #tpu.memory_space<vmem>>, vector<2x128xbf16>
    tpu.vector_store %arg5[%c0_7, %c0_8], %11 {strides = array<i32>} : memref<2x128xbf16, #tpu.memory_space<vmem>>, vector<2x128xbf16>,
    return
  }
  func.func @transform_0(%arg0: i32, %arg1: i32) -> (i32, i32) {
    %c0_i32 = arith.constant 0 : i32
    %c0_i32_0 = arith.constant 0 : i32
    return %arg0, %c0_i32 : i32, i32
  }
  func.func @transform_1(%arg0: i32, %arg1: i32) -> (i32, i32) {
    %c0_i32 = arith.constant 0 : i32
    %c0_i32_0 = arith.constant 0 : i32
    return %c0_i32, %arg1 : i32, i32
  }
  func.func @transform_2(%arg0: i32, %arg1: i32) -> (i32, i32) {
    %c0_i32 = arith.constant 0 : i32
    %c0_i32_0 = arith.constant 0 : i32
    return %c0_i32, %arg1 : i32, i32
  }
  func.func @transform_3(%arg0: i32, %arg1: i32) -> (i32, i32) {
    %c0_i32 = arith.constant 0 : i32
    return %arg0, %arg1 : i32, i32
  }
}

module attributes {stable_mosaic.version = 11 : i64} {
  func.func @_matmul_bias_act_kernel(%arg0: i32, %arg1: i32, %arg2: memref<8x128xbf16, #tpu.memory_space<vmem>>, %arg3: memref<128x128xbf16, #tpu.memory_space<vmem>>, %arg4: memref<1x128xf32, #tpu.memory_space<vmem>>, %arg5: memref<8x128xbf16, #tpu.memory_space<vmem>>) attributes {dimension_semantics = [#tpu.dimension_semantics<parallel>, #tpu.dimension_semantics<parallel>], iteration_bounds = array<i64: 1, 4>, scalar_prefetch = 0 : i64, scratch_operands = 0 : i64, tpu.core_type = #tpu.core_type<tc>, window_params = [{transform_indices = @transform_0, window_bounds = array<i64: 8, 128>}, {transform_indices = @transform_1, window_bounds = array<i64: 128, 128>}, {transform_indices = @transform_2, window_bounds = array<i64: 1, 128>}, {transform_indices = @transform_3, window_bounds = array<i64: 8, 128>}]} {
    %c0 = arith.constant 0 : index
    %c0_0 = arith.constant 0 : index
    %0 = vector.load %arg2[%c0, %c0_0] : memref<8x128xbf16, #tpu.memory_space<vmem>>, vector<8x128xbf16>
    %c0_1 = arith.constant 0 : index
    %c0_2 = arith.constant 0 : index
    %1 = vector.load %arg3[%c0_1, %c0_2] : memref<128x128xbf16, #tpu.memory_space<vmem>>, vector<128x128xbf16>
    %cst = arith.constant dense<0.000000e+00> : vector<8x128xf32>
    %2 = tpu.matmul %0, %1, %cst {dimension_numbers = #tpu.dot_dimension_numbers<[1], [0], [0], [1], [0, 0, 1, 1], [], []>} : vector<8x128xbf16>, vector<128x128xbf16>, vector<8x128xf32> -> vector<8x128xf32>
    %c0_3 = arith.constant 0 : index
    %c0_4 = arith.constant 0 : index
    %3 = vector.load %arg4[%c0_3, %c0_4] : memref<1x128xf32, #tpu.memory_space<vmem>>, vector<1x128xf32>
    %4 = vector.broadcast %3 : vector<1x128xf32> to vector<8x128xf32>
    %5 = arith.addf %2, %4 : vector<8x128xf32>
    %cst_5 = arith.constant 0.000000e+00 : f32
    %6 = vector.broadcast %cst_5 : f32 to vector<8x128xf32>
    %7 = arith.maximumf %5, %6 : vector<8x128xf32>
    %8 = arith.truncf %7 : vector<8x128xf32> to vector<8x128xbf16>
    %c0_6 = arith.constant 0 : index
    %c0_7 = arith.constant 0 : index
    %9 = vector.load %arg5[%c0_6, %c0_7] : memref<8x128xbf16, #tpu.memory_space<vmem>>, vector<8x128xbf16>
    tpu.vector_store %arg5[%c0_6, %c0_7], %8 {strides = array<i32>} : memref<8x128xbf16, #tpu.memory_space<vmem>>, vector<8x128xbf16>,
    return
  }
  func.func @transform_0(%arg0: i32, %arg1: i32) -> (i32, i32) {
    %c0_i32 = arith.constant 0 : i32
    %c0_i32_0 = arith.constant 0 : i32
    return %arg0, %c0_i32 : i32, i32
  }
  func.func @transform_1(%arg0: i32, %arg1: i32) -> (i32, i32) {
    %c0_i32 = arith.constant 0 : i32
    %c0_i32_0 = arith.constant 0 : i32
    return %c0_i32, %arg1 : i32, i32
  }
  func.func @transform_2(%arg0: i32, %arg1: i32) -> (i32, i32) {
    %c0_i32 = arith.constant 0 : i32
    %c0_i32_0 = arith.constant 0 : i32
    return %c0_i32, %arg1 : i32, i32
  }
  func.func @transform_3(%arg0: i32, %arg1: i32) -> (i32, i32) {
    %c0_i32 = arith.constant 0 : i32
    return %arg0, %arg1 : i32, i32
  }
}

module attributes {stable_mosaic.version = 11 : i64} {
  func.func @_matmul_bias_act_kernel(%arg0: i32, %arg1: i32, %arg2: memref<8x512xbf16, #tpu.memory_space<vmem>>, %arg3: memref<512x128xbf16, #tpu.memory_space<vmem>>, %arg4: memref<1x128xf32, #tpu.memory_space<vmem>>, %arg5: memref<8x128xbf16, #tpu.memory_space<vmem>>) attributes {dimension_semantics = [#tpu.dimension_semantics<parallel>, #tpu.dimension_semantics<parallel>], iteration_bounds = array<i64: 1, 4>, scalar_prefetch = 0 : i64, scratch_operands = 0 : i64, tpu.core_type = #tpu.core_type<tc>, window_params = [{transform_indices = @transform_0, window_bounds = array<i64: 8, 512>}, {transform_indices = @transform_1, window_bounds = array<i64: 512, 128>}, {transform_indices = @transform_2, window_bounds = array<i64: 1, 128>}, {transform_indices = @transform_3, window_bounds = array<i64: 8, 128>}]} {
    %c0 = arith.constant 0 : index
    %c0_0 = arith.constant 0 : index
    %0 = vector.load %arg2[%c0, %c0_0] : memref<8x512xbf16, #tpu.memory_space<vmem>>, vector<8x512xbf16>
    %c0_1 = arith.constant 0 : index
    %c0_2 = arith.constant 0 : index
    %1 = vector.load %arg3[%c0_1, %c0_2] : memref<512x128xbf16, #tpu.memory_space<vmem>>, vector<512x128xbf16>
    %cst = arith.constant dense<0.000000e+00> : vector<8x128xf32>
    %2 = tpu.matmul %0, %1, %cst {dimension_numbers = #tpu.dot_dimension_numbers<[1], [0], [0], [1], [0, 0, 1, 1], [], []>} : vector<8x512xbf16>, vector<512x128xbf16>, vector<8x128xf32> -> vector<8x128xf32>
    %c0_3 = arith.constant 0 : index
    %c0_4 = arith.constant 0 : index
    %3 = vector.load %arg4[%c0_3, %c0_4] : memref<1x128xf32, #tpu.memory_space<vmem>>, vector<1x128xf32>
    %4 = vector.broadcast %3 : vector<1x128xf32> to vector<8x128xf32>
    %5 = arith.addf %2, %4 : vector<8x128xf32>
    %cst_5 = arith.constant 0.000000e+00 : f32
    %6 = vector.broadcast %cst_5 : f32 to vector<8x128xf32>
    %7 = arith.maximumf %5, %6 : vector<8x128xf32>
    %8 = arith.truncf %7 : vector<8x128xf32> to vector<8x128xbf16>
    %c0_6 = arith.constant 0 : index
    %c0_7 = arith.constant 0 : index
    %9 = vector.load %arg5[%c0_6, %c0_7] : memref<8x128xbf16, #tpu.memory_space<vmem>>, vector<8x128xbf16>
    tpu.vector_store %arg5[%c0_6, %c0_7], %8 {strides = array<i32>} : memref<8x128xbf16, #tpu.memory_space<vmem>>, vector<8x128xbf16>,
    return
  }
  func.func @transform_0(%arg0: i32, %arg1: i32) -> (i32, i32) {
    %c0_i32 = arith.constant 0 : i32
    %c0_i32_0 = arith.constant 0 : i32
    return %arg0, %c0_i32 : i32, i32
  }
  func.func @transform_1(%arg0: i32, %arg1: i32) -> (i32, i32) {
    %c0_i32 = arith.constant 0 : i32
    %c0_i32_0 = arith.constant 0 : i32
    return %c0_i32, %arg1 : i32, i32
  }
  func.func @transform_2(%arg0: i32, %arg1: i32) -> (i32, i32) {
    %c0_i32 = arith.constant 0 : i32
    %c0_i32_0 = arith.constant 0 : i32
    return %c0_i32, %arg1 : i32, i32
  }
  func.func @transform_3(%arg0: i32, %arg1: i32) -> (i32, i32) {
    %c0_i32 = arith.constant 0 : i32
    return %arg0, %arg1 : i32, i32
  }
}

module attributes {stable_mosaic.version = 11 : i64} {
  func.func @_matmul_bias_act_kernel(%arg0: i32, %arg1: i32, %arg2: memref<8x512xbf16, #tpu.memory_space<vmem>>, %arg3: memref<512x128xbf16, #tpu.memory_space<vmem>>, %arg4: memref<1x128xf32, #tpu.memory_space<vmem>>, %arg5: memref<8x128xf32, #tpu.memory_space<vmem>>) attributes {dimension_semantics = [#tpu.dimension_semantics<parallel>, #tpu.dimension_semantics<parallel>], iteration_bounds = array<i64: 1, 4>, scalar_prefetch = 0 : i64, scratch_operands = 0 : i64, tpu.core_type = #tpu.core_type<tc>, window_params = [{transform_indices = @transform_0, window_bounds = array<i64: 8, 512>}, {transform_indices = @transform_1, window_bounds = array<i64: 512, 128>}, {transform_indices = @transform_2, window_bounds = array<i64: 1, 128>}, {transform_indices = @transform_3, window_bounds = array<i64: 8, 128>}]} {
    %c0 = arith.constant 0 : index
    %c0_0 = arith.constant 0 : index
    %0 = vector.load %arg2[%c0, %c0_0] : memref<8x512xbf16, #tpu.memory_space<vmem>>, vector<8x512xbf16>
    %c0_1 = arith.constant 0 : index
    %c0_2 = arith.constant 0 : index
    %1 = vector.load %arg3[%c0_1, %c0_2] : memref<512x128xbf16, #tpu.memory_space<vmem>>, vector<512x128xbf16>
    %cst = arith.constant dense<0.000000e+00> : vector<8x128xf32>
    %2 = tpu.matmul %0, %1, %cst {dimension_numbers = #tpu.dot_dimension_numbers<[1], [0], [0], [1], [0, 0, 1, 1], [], []>} : vector<8x512xbf16>, vector<512x128xbf16>, vector<8x128xf32> -> vector<8x128xf32>
    %c0_3 = arith.constant 0 : index
    %c0_4 = arith.constant 0 : index
    %3 = vector.load %arg4[%c0_3, %c0_4] : memref<1x128xf32, #tpu.memory_space<vmem>>, vector<1x128xf32>
    %4 = vector.broadcast %3 : vector<1x128xf32> to vector<8x128xf32>
    %5 = arith.addf %2, %4 : vector<8x128xf32>
    %c0_5 = arith.constant 0 : index
    %c0_6 = arith.constant 0 : index
    %6 = vector.load %arg5[%c0_5, %c0_6] : memref<8x128xf32, #tpu.memory_space<vmem>>, vector<8x128xf32>
    tpu.vector_store %arg5[%c0_5, %c0_6], %5 {strides = array<i32>} : memref<8x128xf32, #tpu.memory_space<vmem>>, vector<8x128xf32>,
    return
  }
  func.func @transform_0(%arg0: i32, %arg1: i32) -> (i32, i32) {
    %c0_i32 = arith.constant 0 : i32
    %c0_i32_0 = arith.constant 0 : i32
    return %arg0, %c0_i32 : i32, i32
  }
  func.func @transform_1(%arg0: i32, %arg1: i32) -> (i32, i32) {
    %c0_i32 = arith.constant 0 : i32
    %c0_i32_0 = arith.constant 0 : i32
    return %c0_i32, %arg1 : i32, i32
  }
  func.func @transform_2(%arg0: i32, %arg1: i32) -> (i32, i32) {
    %c0_i32 = arith.constant 0 : i32
    %c0_i32_0 = arith.constant 0 : i32
    return %c0_i32, %arg1 : i32, i32
  }
  func.func @transform_3(%arg0: i32, %arg1: i32) -> (i32, i32) {
    %c0_i32 = arith.constant 0 : i32
    return %arg0, %arg1 : i32, i32
  }
}

</mosaic_0001>

<llo_original>
// kernel: rnd_predictor_head_forward.6
$region0: #{rnd_predictor_head_forward.6}
  #allocation0 [shape = 'u32[]', space=smem, size = 0x4, offset = 0x4, fixed_abs, tag = 'smem constant byte address 0x4 - core index']
  #allocation1 [shape = 'u32[144,128]{1,0:T(1,128)}', space=vmem, size = 0x12000, scoped, tag = 'internal scratch']
  %s0 = inlined_call_operand.vmem [shape: bf16[128,256], index: 0, kind: input, shape index: {}]
  %s1 = inlined_call_operand.vmem [shape: bf16[256,128], index: 1, kind: input, shape index: {}]
  %s2 = inlined_call_operand.vmem [shape: f32[1,128], index: 2, kind: input, shape index: {}]
  %s3 = inlined_call_operand.vmem [shape: bf16[128,128], index: 3, kind: output, shape index: {}]
  %s4 = sld [smem:[#allocation0]]
  $region22: #{rnd_predictor_head_forward.6} parent=0
    _
  %s6 = ssub.s32 1, %s4
  %s7 = scalar_select 0, %s6, %s4
  // Predicated region
  $region2: #{rnd_predictor_head_forward.6} parent=0 // pred_check
    _
  $region3: #{rnd_predictor_head_forward.6} parent=0 // pred_check_branch
    %9 = sbr.rel (0) target = $region5
  $region4: #{rnd_predictor_head_forward.6} parent=0 // pred_region
    _
  $region5: #{rnd_predictor_head_forward.6} parent=0 // pred_fallthru
    _
  // Predicated region
  $region6: #{rnd_predictor_head_forward.6} parent=0 // pred_check
    _
  $region7: #{rnd_predictor_head_forward.6} parent=0 // pred_check_branch
    %11 = sbr.rel (0) target = $region9
  $region8: #{rnd_predictor_head_forward.6} parent=0 // pred_region
    _
  $region9: #{rnd_predictor_head_forward.6} parent=0 // pred_fallthru
    _
  // Predicated region
  $region10: #{rnd_predictor_head_forward.6} parent=0 // pred_check
    _
  $region11: #{rnd_predictor_head_forward.6} parent=0 // pred_check_branch
    %13 = sbr.rel (0) target = $region13
  $region12: #{rnd_predictor_head_forward.6} parent=0 // pred_region
    _
  $region13: #{rnd_predictor_head_forward.6} parent=0 // pred_fallthru
    _
  %v15 = vld [vmem:[%s0] sm:$0xff]
  %v16 = vld [vmem:[%s0 + $0x8] sm:$0xff]
  %v17 = vld [vmem:[%s0 + $0x10] sm:$0xff]
  %v18 = vld [vmem:[%s0 + $0x18] sm:$0xff]
  %v19 = vld [vmem:[%s0 + $0x20] sm:$0xff]
  %v20 = vld [vmem:[%s0 + $0x28] sm:$0xff]
  %v21 = vld [vmem:[%s0 + $0x30] sm:$0xff]
  %v22 = vld [vmem:[%s0 + $0x38] sm:$0xff]
  %v23 = vld [vmem:[%s0 + $0x40] sm:$0xff]
  %v24 = vld [vmem:[%s0 + $0x48] sm:$0xff]
  %v25 = vld [vmem:[%s0 + $0x50] sm:$0xff]
  %v26 = vld [vmem:[%s0 + $0x58] sm:$0xff]
  %v27 = vld [vmem:[%s0 + $0x60] sm:$0xff]
  %v28 = vld [vmem:[%s0 + $0x68] sm:$0xff]
  %v29 = vld [vmem:[%s0 + $0x70] sm:$0xff]
  %v30 = vld [vmem:[%s0 + $0x78] sm:$0xff]
  %v31 = vld [vmem:[%s1] sm:$0xf]
  %v32 = vld [vmem:[%s1 + $0x4] sm:$0xf]
  %v33 = vld [vmem:[%s1 + $0x8] sm:$0xf]
  %v34 = vld [vmem:[%s1 + $0xc] sm:$0xf]
  %v35 = vld [vmem:[%s1 + $0x10] sm:$0xf]
  %v36 = vld [vmem:[%s1 + $0x14] sm:$0xf]
  %v37 = vld [vmem:[%s1 + $0x18] sm:$0xf]
  %v38 = vld [vmem:[%s1 + $0x1c] sm:$0xf]
  %v39 = vld [vmem:[%s1 + $0x20] sm:$0xf]
  %v40 = vld [vmem:[%s1 + $0x24] sm:$0xf]
  %v41 = vld [vmem:[%s1 + $0x28] sm:$0xf]
  %v42 = vld [vmem:[%s1 + $0x2c] sm:$0xf]
  %v43 = vld [vmem:[%s1 + $0x30] sm:$0xf]
  %v44 = vld [vmem:[%s1 + $0x34] sm:$0xf]
  %v45 = vld [vmem:[%s1 + $0x38] sm:$0xf]
  %v46 = vld [vmem:[%s1 + $0x3c] sm:$0xf]
  %v47 = vld [vmem:[%s1 + $0x40] sm:$0xf]
  %v48 = vld [vmem:[%s1 + $0x44] sm:$0xf]
  %v49 = vld [vmem:[%s1 + $0x48] sm:$0xf]
  %v50 = vld [vmem:[%s1 + $0x4c] sm:$0xf]
  %v51 = vld [vmem:[%s1 + $0x50] sm:$0xf]
  %v52 = vld [vmem:[%s1 + $0x54] sm:$0xf]
  %v53 = vld [vmem:[%s1 + $0x58] sm:$0xf]
  %v54 = vld [vmem:[%s1 + $0x5c] sm:$0xf]
  %v55 = vld [vmem:[%s1 + $0x60] sm:$0xf]
  %v56 = vld [vmem:[%s1 + $0x64] sm:$0xf]
  %v57 = vld [vmem:[%s1 + $0x68] sm:$0xf]
  %v58 = vld [vmem:[%s1 + $0x6c] sm:$0xf]
  %v59 = vld [vmem:[%s1 + $0x70] sm:$0xf]
  %v60 = vld [vmem:[%s1 + $0x74] sm:$0xf]
  %v61 = vld [vmem:[%s1 + $0x78] sm:$0xf]
  %v62 = vld [vmem:[%s1 + $0x7c] sm:$0xf]
  %v63 = vld [vmem:[%s2] sm:$0x1]
  %v65 = vlaneseq
  %v66 = vshrl.u32 %v65, 7
  %v67 = vsub.s32 0, %v66
  %v68 = vrot.slane %v63, %v67
  %v86 = vunpack.c.l.b16 %v15
  %v87 = vunpack.c.h.b16 %v15
  %v88 = vunpack.c.l.b16 %v16
  %v89 = vunpack.c.h.b16 %v16
  %v90 = vunpack.c.l.b16 %v17
  %v91 = vunpack.c.h.b16 %v17
  %v92 = vunpack.c.l.b16 %v18
  %v93 = vunpack.c.h.b16 %v18
  %v94 = vunpack.c.l.b16 %v19
  %v95 = vunpack.c.h.b16 %v19
  %v96 = vunpack.c.l.b16 %v20
  %v97 = vunpack.c.h.b16 %v20
  %v98 = vunpack.c.l.b16 %v21
  %v99 = vunpack.c.h.b16 %v21
  %v100 = vunpack.c.l.b16 %v22
  %v101 = vunpack.c.h.b16 %v22
  %v102 = vunpack.c.l.b16 %v23
  %v103 = vunpack.c.h.b16 %v23
  %v104 = vunpack.c.l.b16 %v24
  %v105 = vunpack.c.h.b16 %v24
  %v106 = vunpack.c.l.b16 %v25
  %v107 = vunpack.c.h.b16 %v25
  %v108 = vunpack.c.l.b16 %v26
  %v109 = vunpack.c.h.b16 %v26
  %v110 = vunpack.c.l.b16 %v27
  %v111 = vunpack.c.h.b16 %v27
  %v112 = vunpack.c.l.b16 %v28
  %v113 = vunpack.c.h.b16 %v28
  %v114 = vunpack.c.l.b16 %v29
  %v115 = vunpack.c.h.b16 %v29
  %v116 = vunpack.c.l.b16 %v30
  %v117 = vunpack.c.h.b16 %v30
  %v118 = vpack.c.b16 %v88, %v86
  %v119 = vpack.c.b16 %v89, %v87
  %v120 = vpack.c.b16 %v92, %v90
  %v121 = vpack.c.b16 %v93, %v91
  %v122 = vpack.c.b16 %v96, %v94
  %v123 = vpack.c.b16 %v97, %v95
  %v124 = vpack.c.b16 %v100, %v98
  %v125 = vpack.c.b16 %v101, %v99
  %v126 = vpack.c.b16 %v104, %v102
  %v127 = vpack.c.b16 %v105, %v103
  %v128 = vpack.c.b16 %v108, %v106
  %v129 = vpack.c.b16 %v109, %v107
  %v130 = vpack.c.b16 %v112, %v110
  %v131 = vpack.c.b16 %v113, %v111
  %v132 = vpack.c.b16 %v116, %v114
  %v133 = vpack.c.b16 %v117, %v115
  %v182 = vunpack.c.l.b16 %v31
  %v183 = vunpack.c.l.b16 %v32
  %v184 = vunpack.c.l.b16 %v33
  %v185 = vunpack.c.l.b16 %v34
  %v186 = vunpack.c.l.b16 %v35
  %v187 = vunpack.c.l.b16 %v36
  %v188 = vunpack.c.l.b16 %v37
  %v189 = vunpack.c.l.b16 %v38
  %v190 = vunpack.c.l.b16 %v39
  %v191 = vunpack.c.l.b16 %v40
  %v192 = vunpack.c.l.b16 %v41
  %v193 = vunpack.c.l.b16 %v42
  %v194 = vunpack.c.l.b16 %v43
  %v195 = vunpack.c.l.b16 %v44
  %v196 = vunpack.c.l.b16 %v45
  %v197 = vunpack.c.l.b16 %v46
  %v198 = vunpack.c.l.b16 %v47
  %v199 = vunpack.c.l.b16 %v48
  %v200 = vunpack.c.l.b16 %v49
  %v201 = vunpack.c.l.b16 %v50
  %v202 = vunpack.c.l.b16 %v51
  %v203 = vunpack.c.l.b16 %v52
  %v204 = vunpack.c.l.b16 %v53
  %v205 = vunpack.c.l.b16 %v54
  %v206 = vunpack.c.l.b16 %v55
  %v207 = vunpack.c.l.b16 %v56
  %v208 = vunpack.c.l.b16 %v57
  %v209 = vunpack.c.l.b16 %v58
  %v210 = vunpack.c.l.b16 %v59
  %v211 = vunpack.c.l.b16 %v60
  %v212 = vunpack.c.l.b16 %v61
  %v213 = vunpack.c.l.b16 %v62
  %v214 = vpack.c.b16 %v183, %v182
  %v215 = vpack.c.b16 %v185, %v184
  %v216 = vpack.c.b16 %v187, %v186
  %v217 = vpack.c.b16 %v189, %v188
  %v218 = vpack.c.b16 %v191, %v190
  %v219 = vpack.c.b16 %v193, %v192
  %v220 = vpack.c.b16 %v195, %v194
  %v221 = vpack.c.b16 %v197, %v196
  %v222 = vpack.c.b16 %v199, %v198
  %v223 = vpack.c.b16 %v201, %v200
  %v224 = vpack.c.b16 %v203, %v202
  %v225 = vpack.c.b16 %v205, %v204
  %v226 = vpack.c.b16 %v207, %v206
  %v227 = vpack.c.b16 %v209, %v208
  %v228 = vpack.c.b16 %v211, %v210
  %v229 = vpack.c.b16 %v213, %v212
  %246 = vmatprep.subr.bf16.mxu0 0
  %247 = vmatpush1.bf16.msra.mxu0 %v214
  %248 = vmatprep.subr.bf16.mxu0 0
  %249 = vmatpush1.bf16.msra.mxu0 %v215
  %250 = vmatprep.subr.bf16.mxu0 0
  %251 = vmatpush1.bf16.msra.mxu0 %v216
  %252 = vmatprep.subr.bf16.mxu0 0
  %253 = vmatpush1.bf16.msra.mxu0 %v217
  %254 = vmatprep.subr.bf16.mxu0 0
  %255 = vmatpush1.bf16.msra.mxu0 %v218
  %256 = vmatprep.subr.bf16.mxu0 0
  %257 = vmatpush1.bf16.msra.mxu0 %v219
  %258 = vmatprep.subr.bf16.mxu0 0
  %259 = vmatpush1.bf16.msra.mxu0 %v220
  %260 = vmatprep.subr.bf16.mxu0 0
  %261 = vmatpush1.bf16.msra.mxu0 %v221
  %262 = vmatprep.subr.bf16.mxu0 0
  %263 = vmatpush1.bf16.msra.mxu0 %v222
  %264 = vmatprep.subr.bf16.mxu0 0
  %265 = vmatpush1.bf16.msra.mxu0 %v223
  %266 = vmatprep.subr.bf16.mxu0 0
  %267 = vmatpush1.bf16.msra.mxu0 %v224
  %268 = vmatprep.subr.bf16.mxu0 0
  %269 = vmatpush1.bf16.msra.mxu0 %v225
  %270 = vmatprep.subr.bf16.mxu0 0
  %271 = vmatpush1.bf16.msra.mxu0 %v226
  %272 = vmatprep.subr.bf16.mxu0 0
  %273 = vmatpush1.bf16.msra.mxu0 %v227
  %274 = vmatprep.subr.bf16.mxu0 0
  %275 = vmatpush1.bf16.msra.mxu0 %v228
  %276 = vmatprep.subr.bf16.mxu0 0
  %277 = vmatpush1.bf16.msra.mxu0 %v229
  %278 = vmatprep.mubr.bf16.mxu0 %v119
  %279 = vmatmul.mubr.bf16.gmra.mrb[0].mxu0 %v118
  %v280 = vpop.f32.mrb[0].mxu0
  %v281 = vadd.f32 %v68, %v280
  %v282 = vpop.f32.mrb[0].mxu0
  %v283 = vpop.f32.mrb[0].mxu0
  %v284 = vadd.f32 %v68, %v283
  %v285 = vpop.f32.mrb[0].mxu0
  %286 = vmatprep.mubr.bf16.mxu0 %v121
  %287 = vmatmul.mubr.bf16.gmra.mrb[0].mxu0 %v120
  %v288 = vpop.f32.mrb[0].mxu0
  %v289 = vadd.f32 %v68, %v288
  %v290 = vpop.f32.mrb[0].mxu0
  %v291 = vpop.f32.mrb[0].mxu0
  %v292 = vadd.f32 %v68, %v291
  %v293 = vpop.f32.mrb[0].mxu0
  %294 = vmatprep.mubr.bf16.mxu0 %v123
  %295 = vmatmul.mubr.bf16.gmra.mrb[0].mxu0 %v122
  %v296 = vpop.f32.mrb[0].mxu0
  %v297 = vadd.f32 %v68, %v296
  %v298 = vpop.f32.mrb[0].mxu0
  %v299 = vpop.f32.mrb[0].mxu0
  %v300 = vadd.f32 %v68, %v299
  %v301 = vpop.f32.mrb[0].mxu0
  %302 = vmatprep.mubr.bf16.mxu0 %v125
  %303 = vmatmul.mubr.bf16.gmra.mrb[0].mxu0 %v124
  %v304 = vpop.f32.mrb[0].mxu0
  %v305 = vadd.f32 %v68, %v304
  %v306 = vpop.f32.mrb[0].mxu0
  %v307 = vpop.f32.mrb[0].mxu0
  %v308 = vadd.f32 %v68, %v307
  %v309 = vpop.f32.mrb[0].mxu0
  %310 = vmatprep.mubr.bf16.mxu0 %v127
  %311 = vmatmul.mubr.bf16.gmra.mrb[0].mxu0 %v126
  %v312 = vpop.f32.mrb[0].mxu0
  %v313 = vadd.f32 %v68, %v312
  %v314 = vpop.f32.mrb[0].mxu0
  %v315 = vpop.f32.mrb[0].mxu0
  %v316 = vadd.f32 %v68, %v315
  %v317 = vpop.f32.mrb[0].mxu0
  %318 = vmatprep.mubr.bf16.mxu0 %v129
  %319 = vmatmul.mubr.bf16.gmra.mrb[0].mxu0 %v128
  %v320 = vpop.f32.mrb[0].mxu0
  %v321 = vadd.f32 %v68, %v320
  %v322 = vpop.f32.mrb[0].mxu0
  %v323 = vpop.f32.mrb[0].mxu0
  %v324 = vadd.f32 %v68, %v323
  %v325 = vpop.f32.mrb[0].mxu0
  %326 = vmatprep.mubr.bf16.mxu0 %v131
  %327 = vmatmul.mubr.bf16.gmra.mrb[0].mxu0 %v130
  %v328 = vpop.f32.mrb[0].mxu0
  %v329 = vadd.f32 %v68, %v328
  %v330 = vpop.f32.mrb[0].mxu0
  %v331 = vpop.f32.mrb[0].mxu0
  %v332 = vadd.f32 %v68, %v331
  %v333 = vpop.f32.mrb[0].mxu0
  %334 = vmatprep.mubr.bf16.mxu0 %v133
  %335 = vmatmul.mubr.bf16.gmra.mrb[0].mxu0 %v132
  %v336 = vpop.f32.mrb[0].mxu0
  %v337 = vadd.f32 %v68, %v336
  %v338 = vpop.f32.mrb[0].mxu0
  %v339 = vpop.f32.mrb[0].mxu0
  %v340 = vadd.f32 %v68, %v339
  %v341 = vpop.f32.mrb[0].mxu0
  %342 = vdwg.mxu0
  %vm343 = vcmp.gt.f32.partialorder %v281, 0.0
  %vm344 = vcmp.gt.f32.partialorder %v284, 0.0
  %vm345 = vcmp.gt.f32.partialorder %v289, 0.0
  %vm346 = vcmp.gt.f32.partialorder %v292, 0.0
  %vm347 = vcmp.gt.f32.partialorder %v297, 0.0
  %vm348 = vcmp.gt.f32.partialorder %v300, 0.0
  %vm349 = vcmp.gt.f32.partialorder %v305, 0.0
  %vm350 = vcmp.gt.f32.partialorder %v308, 0.0
  %vm351 = vcmp.gt.f32.partialorder %v313, 0.0
  %vm352 = vcmp.gt.f32.partialorder %v316, 0.0
  %vm353 = vcmp.gt.f32.partialorder %v321, 0.0
  %vm354 = vcmp.gt.f32.partialorder %v324, 0.0
  %vm355 = vcmp.gt.f32.partialorder %v329, 0.0
  %vm356 = vcmp.gt.f32.partialorder %v332, 0.0
  %vm357 = vcmp.gt.f32.partialorder %v337, 0.0
  %vm358 = vcmp.gt.f32.partialorder %v340, 0.0
  %v359 = vmul.f32 %v281, 0.2
  %v360 = vmul.f32 %v284, 0.2
  %v361 = vmul.f32 %v289, 0.2
  %v362 = vmul.f32 %v292, 0.2
  %v363 = vmul.f32 %v297, 0.2
  %v364 = vmul.f32 %v300, 0.2
  %v365 = vmul.f32 %v305, 0.2
  %v366 = vmul.f32 %v308, 0.2
  %v367 = vmul.f32 %v313, 0.2
  %v368 = vmul.f32 %v316, 0.2
  %v369 = vmul.f32 %v321, 0.2
  %v370 = vmul.f32 %v324, 0.2
  %v371 = vmul.f32 %v329, 0.2
  %v372 = vmul.f32 %v332, 0.2
  %v373 = vmul.f32 %v337, 0.2
  %v374 = vmul.f32 %v340, 0.2
  %v375 = vsel %vm343, %v281, %v359
  %v376 = vsel %vm344, %v284, %v360
  %v377 = vsel %vm345, %v289, %v361
  %v378 = vsel %vm346, %v292, %v362
  %v379 = vsel %vm347, %v297, %v363
  %v380 = vsel %vm348, %v300, %v364
  %v381 = vsel %vm349, %v305, %v365
  %v382 = vsel %vm350, %v308, %v366
  %v383 = vsel %vm351, %v313, %v367
  %v384 = vsel %vm352, %v316, %v368
  %v385 = vsel %vm353, %v321, %v369
  %v386 = vsel %vm354, %v324, %v370
  %v387 = vsel %vm355, %v329, %v371
  %v388 = vsel %vm356, %v332, %v372
  %v389 = vsel %vm357, %v337, %v373
  %v390 = vsel %vm358, %v340, %v374
  %v391 = vpack.c.bf16 %v376, %v375
  %v392 = vpack.c.bf16 %v378, %v377
  %v393 = vpack.c.bf16 %v380, %v379
  %v394 = vpack.c.bf16 %v382, %v381
  %v395 = vpack.c.bf16 %v384, %v383
  %v396 = vpack.c.bf16 %v386, %v385
  %v397 = vpack.c.bf16 %v388, %v387
  %v398 = vpack.c.bf16 %v390, %v389
  %v407 = vunpack.c.l.b16 %v391
  %v408 = vunpack.c.h.b16 %v391
  %v409 = vunpack.c.l.b16 %v392
  %v410 = vunpack.c.h.b16 %v392
  %v411 = vunpack.c.l.b16 %v393
  %v412 = vunpack.c.h.b16 %v393
  %v413 = vunpack.c.l.b16 %v394
  %v414 = vunpack.c.h.b16 %v394
  %v415 = vunpack.c.l.b16 %v395
  %v416 = vunpack.c.h.b16 %v395
  %v417 = vunpack.c.l.b16 %v396
  %v418 = vunpack.c.h.b16 %v396
  %v419 = vunpack.c.l.b16 %v397
  %v420 = vunpack.c.h.b16 %v397
  %v421 = vunpack.c.l.b16 %v398
  %v422 = vunpack.c.h.b16 %v398
  %v423 = vpack.c.b16 %v407, %v407
  %v424 = vpack.c.b16 %v408, %v408
  %v425 = vpack.c.b16 %v409, %v409
  %v426 = vpack.c.b16 %v410, %v410
  %v427 = vpack.c.b16 %v411, %v411
  %v428 = vpack.c.b16 %v412, %v412
  %v429 = vpack.c.b16 %v413, %v413
  %v430 = vpack.c.b16 %v414, %v414
  %v431 = vpack.c.b16 %v415, %v415
  %v432 = vpack.c.b16 %v416, %v416
  %v433 = vpack.c.b16 %v417, %v417
  %v434 = vpack.c.b16 %v418, %v418
  %v435 = vpack.c.b16 %v419, %v419
  %v436 = vpack.c.b16 %v420, %v420
  %v437 = vpack.c.b16 %v421, %v421
  %v438 = vpack.c.b16 %v422, %v422
  %455 = vst [vmem:[%s3] sm:$0xf] %v423
  %456 = vst [vmem:[%s3 + $0x4] sm:$0xf] %v424
  %457 = vst [vmem:[%s3 + $0x8] sm:$0xf] %v425
  %458 = vst [vmem:[%s3 + $0xc] sm:$0xf] %v426
  %459 = vst [vmem:[%s3 + $0x10] sm:$0xf] %v427
  %460 = vst [vmem:[%s3 + $0x14] sm:$0xf] %v428
  %461 = vst [vmem:[%s3 + $0x18] sm:$0xf] %v429
  %462 = vst [vmem:[%s3 + $0x1c] sm:$0xf] %v430
  %463 = vst [vmem:[%s3 + $0x20] sm:$0xf] %v431
  %464 = vst [vmem:[%s3 + $0x24] sm:$0xf] %v432
  %465 = vst [vmem:[%s3 + $0x28] sm:$0xf] %v433
  %466 = vst [vmem:[%s3 + $0x2c] sm:$0xf] %v434
  %467 = vst [vmem:[%s3 + $0x30] sm:$0xf] %v435
  %468 = vst [vmem:[%s3 + $0x34] sm:$0xf] %v436
  %469 = vst [vmem:[%s3 + $0x38] sm:$0xf] %v437
  %470 = vst [vmem:[%s3 + $0x3c] sm:$0xf] %v438
  // Predicated region
  $region14: #{rnd_predictor_head_forward.6} parent=0 // pred_check
    _
  $region15: #{rnd_predictor_head_forward.6} parent=0 // pred_check_branch
    %472 = sbr.rel (0) target = $region17
  $region16: #{rnd_predictor_head_forward.6} parent=0 // pred_region
    _
  $region17: #{rnd_predictor_head_forward.6} parent=0 // pred_fallthru
    _
  // Predicated region
  $region18: #{rnd_predictor_head_forward.6} parent=0 // pred_check
    _
  $region19: #{rnd_predictor_head_forward.6} parent=0 // pred_check_branch
    %474 = sbr.rel (0) target = $region21
  $region20: #{rnd_predictor_head_forward.6} parent=0 // pred_region
    _
  $region21: #{rnd_predictor_head_forward.6} parent=0 // pred_fallthru
    _

// kernel: rnd_predictor_head_forward.8
$region0: #{rnd_predictor_head_forward.8}
  #allocation0 [shape = 'u32[]', space=smem, size = 0x4, offset = 0x4, fixed_abs, tag = 'smem constant byte address 0x4 - core index']
  #allocation1 [shape = 'u32[144,128]{1,0:T(1,128)}', space=vmem, size = 0x12000, scoped, tag = 'internal scratch']
  %s0 = inlined_call_operand.vmem [shape: bf16[2,1152], index: 0, kind: input, shape index: {}]
  %s1 = inlined_call_operand.vmem [shape: bf16[1152,128], index: 1, kind: input, shape index: {}]
  %s2 = inlined_call_operand.vmem [shape: f32[1,128], index: 2, kind: input, shape index: {}]
  %s3 = inlined_call_operand.vmem [shape: bf16[2,128], index: 3, kind: output, shape index: {}]
  %s4 = sld [smem:[#allocation0]]
  $region22: #{rnd_predictor_head_forward.8} parent=0
    _
  %s6 = ssub.s32 1, %s4
  %s7 = scalar_select 0, %s6, %s4
  // Predicated region
  $region2: #{rnd_predictor_head_forward.8} parent=0 // pred_check
    _
  $region3: #{rnd_predictor_head_forward.8} parent=0 // pred_check_branch
    %9 = sbr.rel (0) target = $region5
  $region4: #{rnd_predictor_head_forward.8} parent=0 // pred_region
    _
  $region5: #{rnd_predictor_head_forward.8} parent=0 // pred_fallthru
    _
  // Predicated region
  $region6: #{rnd_predictor_head_forward.8} parent=0 // pred_check
    _
  $region7: #{rnd_predictor_head_forward.8} parent=0 // pred_check_branch
    %11 = sbr.rel (0) target = $region9
  $region8: #{rnd_predictor_head_forward.8} parent=0 // pred_region
    _
  $region9: #{rnd_predictor_head_forward.8} parent=0 // pred_fallthru
    _
  // Predicated region
  $region10: #{rnd_predictor_head_forward.8} parent=0 // pred_check
    _
  $region11: #{rnd_predictor_head_forward.8} parent=0 // pred_check_branch
    %13 = sbr.rel (0) target = $region13
  $region12: #{rnd_predictor_head_forward.8} parent=0 // pred_region
    _
  $region13: #{rnd_predictor_head_forward.8} parent=0 // pred_fallthru
    _
  %v15 = vld [vmem:[%s0] sm:$0xff]
  %v16 = vld [vmem:[%s0 + $0x8] sm:$0x1]
  %v17 = vld [vmem:[%s1] sm:$0xf]
  %v18 = vld [vmem:[%s1 + $0x4] sm:$0xf]
  %v19 = vld [vmem:[%s1 + $0x8] sm:$0xf]
  %v20 = vld [vmem:[%s1 + $0xc] sm:$0xf]
  %v21 = vld [vmem:[%s1 + $0x10] sm:$0xf]
  %v22 = vld [vmem:[%s1 + $0x14] sm:$0xf]
  %v23 = vld [vmem:[%s1 + $0x18] sm:$0xf]
  %v24 = vld [vmem:[%s1 + $0x1c] sm:$0xf]
  %v25 = vld [vmem:[%s1 + $0x20] sm:$0xf]
  %v26 = vld [vmem:[%s1 + $0x24] sm:$0xf]
  %v27 = vld [vmem:[%s1 + $0x28] sm:$0xf]
  %v28 = vld [vmem:[%s1 + $0x2c] sm:$0xf]
  %v29 = vld [vmem:[%s1 + $0x30] sm:$0xf]
  %v30 = vld [vmem:[%s1 + $0x34] sm:$0xf]
  %v31 = vld [vmem:[%s1 + $0x38] sm:$0xf]
  %v32 = vld [vmem:[%s1 + $0x3c] sm:$0xf]
  %v33 = vld [vmem:[%s1 + $0x40] sm:$0xf]
  %v34 = vld [vmem:[%s1 + $0x44] sm:$0xf]
  %v35 = vld [vmem:[%s1 + $0x48] sm:$0xf]
  %v36 = vld [vmem:[%s1 + $0x4c] sm:$0xf]
  %v37 = vld [vmem:[%s1 + $0x50] sm:$0xf]
  %v38 = vld [vmem:[%s1 + $0x54] sm:$0xf]
  %v39 = vld [vmem:[%s1 + $0x58] sm:$0xf]
  %v40 = vld [vmem:[%s1 + $0x5c] sm:$0xf]
  %v41 = vld [vmem:[%s1 + $0x60] sm:$0xf]
  %v42 = vld [vmem:[%s1 + $0x64] sm:$0xf]
  %v43 = vld [vmem:[%s1 + $0x68] sm:$0xf]
  %v44 = vld [vmem:[%s1 + $0x6c] sm:$0xf]
  %v45 = vld [vmem:[%s1 + $0x70] sm:$0xf]
  %v46 = vld [vmem:[%s1 + $0x74] sm:$0xf]
  %v47 = vld [vmem:[%s1 + $0x78] sm:$0xf]
  %v48 = vld [vmem:[%s1 + $0x7c] sm:$0xf]
  %v49 = vld [vmem:[%s1 + $0x80] sm:$0xf]
  %v50 = vld [vmem:[%s1 + $0x84] sm:$0xf]
  %v51 = vld [vmem:[%s1 + $0x88] sm:$0xf]
  %v52 = vld [vmem:[%s1 + $0x8c] sm:$0xf]
  %v53 = vld [vmem:[%s1 + $0x90] sm:$0xf]
  %v54 = vld [vmem:[%s1 + $0x94] sm:$0xf]
  %v55 = vld [vmem:[%s1 + $0x98] sm:$0xf]
  %v56 = vld [vmem:[%s1 + $0x9c] sm:$0xf]
  %v57 = vld [vmem:[%s1 + $0xa0] sm:$0xf]
  %v58 = vld [vmem:[%s1 + $0xa4] sm:$0xf]
  %v59 = vld [vmem:[%s1 + $0xa8] sm:$0xf]
  %v60 = vld [vmem:[%s1 + $0xac] sm:$0xf]
  %v61 = vld [vmem:[%s1 + $0xb0] sm:$0xf]
  %v62 = vld [vmem:[%s1 + $0xb4] sm:$0xf]
  %v63 = vld [vmem:[%s1 + $0xb8] sm:$0xf]
  %v64 = vld [vmem:[%s1 + $0xbc] sm:$0xf]
  %v65 = vld [vmem:[%s1 + $0xc0] sm:$0xf]
  %v66 = vld [vmem:[%s1 + $0xc4] sm:$0xf]
  %v67 = vld [vmem:[%s1 + $0xc8] sm:$0xf]
  %v68 = vld [vmem:[%s1 + $0xcc] sm:$0xf]
  %v69 = vld [vmem:[%s1 + $0xd0] sm:$0xf]
  %v70 = vld [vmem:[%s1 + $0xd4] sm:$0xf]
  %v71 = vld [vmem:[%s1 + $0xd8] sm:$0xf]
  %v72 = vld [vmem:[%s1 + $0xdc] sm:$0xf]
  %v73 = vld [vmem:[%s1 + $0xe0] sm:$0xf]
  %v74 = vld [vmem:[%s1 + $0xe4] sm:$0xf]
  %v75 = vld [vmem:[%s1 + $0xe8] sm:$0xf]
  %v76 = vld [vmem:[%s1 + $0xec] sm:$0xf]
  %v77 = vld [vmem:[%s1 + $0xf0] sm:$0xf]
  %v78 = vld [vmem:[%s1 + $0xf4] sm:$0xf]
  %v79 = vld [vmem:[%s1 + $0xf8] sm:$0xf]
  %v80 = vld [vmem:[%s1 + $0xfc] sm:$0xf]
  %v81 = vld [vmem:[%s1 + $0x100] sm:$0xf]
  %v82 = vld [vmem:[%s1 + $0x104] sm:$0xf]
  %v83 = vld [vmem:[%s1 + $0x108] sm:$0xf]
  %v84 = vld [vmem:[%s1 + $0x10c] sm:$0xf]
  %v85 = vld [vmem:[%s1 + $0x110] sm:$0xf]
  %v86 = vld [vmem:[%s1 + $0x114] sm:$0xf]
  %v87 = vld [vmem:[%s1 + $0x118] sm:$0xf]
  %v88 = vld [vmem:[%s1 + $0x11c] sm:$0xf]
  %v89 = vld [vmem:[%s1 + $0x120] sm:$0xf]
  %v90 = vld [vmem:[%s1 + $0x124] sm:$0xf]
  %v91 = vld [vmem:[%s1 + $0x128] sm:$0xf]
  %v92 = vld [vmem:[%s1 + $0x12c] sm:$0xf]
  %v93 = vld [vmem:[%s1 + $0x130] sm:$0xf]
  %v94 = vld [vmem:[%s1 + $0x134] sm:$0xf]
  %v95 = vld [vmem:[%s1 + $0x138] sm:$0xf]
  %v96 = vld [vmem:[%s1 + $0x13c] sm:$0xf]
  %v97 = vld [vmem:[%s1 + $0x140] sm:$0xf]
  %v98 = vld [vmem:[%s1 + $0x144] sm:$0xf]
  %v99 = vld [vmem:[%s1 + $0x148] sm:$0xf]
  %v100 = vld [vmem:[%s1 + $0x14c] sm:$0xf]
  %v101 = vld [vmem:[%s1 + $0x150] sm:$0xf]
  %v102 = vld [vmem:[%s1 + $0x154] sm:$0xf]
  %v103 = vld [vmem:[%s1 + $0x158] sm:$0xf]
  %v104 = vld [vmem:[%s1 + $0x15c] sm:$0xf]
  %v105 = vld [vmem:[%s1 + $0x160] sm:$0xf]
  %v106 = vld [vmem:[%s1 + $0x164] sm:$0xf]
  %v107 = vld [vmem:[%s1 + $0x168] sm:$0xf]
  %v108 = vld [vmem:[%s1 + $0x16c] sm:$0xf]
  %v109 = vld [vmem:[%s1 + $0x170] sm:$0xf]
  %v110 = vld [vmem:[%s1 + $0x174] sm:$0xf]
  %v111 = vld [vmem:[%s1 + $0x178] sm:$0xf]
  %v112 = vld [vmem:[%s1 + $0x17c] sm:$0xf]
  %v113 = vld [vmem:[%s1 + $0x180] sm:$0xf]
  %v114 = vld [vmem:[%s1 + $0x184] sm:$0xf]
  %v115 = vld [vmem:[%s1 + $0x188] sm:$0xf]
  %v116 = vld [vmem:[%s1 + $0x18c] sm:$0xf]
  %v117 = vld [vmem:[%s1 + $0x190] sm:$0xf]
  %v118 = vld [vmem:[%s1 + $0x194] sm:$0xf]
  %v119 = vld [vmem:[%s1 + $0x198] sm:$0xf]
  %v120 = vld [vmem:[%s1 + $0x19c] sm:$0xf]
  %v121 = vld [vmem:[%s1 + $0x1a0] sm:$0xf]
  %v122 = vld [vmem:[%s1 + $0x1a4] sm:$0xf]
  %v123 = vld [vmem:[%s1 + $0x1a8] sm:$0xf]
  %v124 = vld [vmem:[%s1 + $0x1ac] sm:$0xf]
  %v125 = vld [vmem:[%s1 + $0x1b0] sm:$0xf]
  %v126 = vld [vmem:[%s1 + $0x1b4] sm:$0xf]
  %v127 = vld [vmem:[%s1 + $0x1b8] sm:$0xf]
  %v128 = vld [vmem:[%s1 + $0x1bc] sm:$0xf]
  %v129 = vld [vmem:[%s1 + $0x1c0] sm:$0xf]
  %v130 = vld [vmem:[%s1 + $0x1c4] sm:$0xf]
  %v131 = vld [vmem:[%s1 + $0x1c8] sm:$0xf]
  %v132 = vld [vmem:[%s1 + $0x1cc] sm:$0xf]
  %v133 = vld [vmem:[%s1 + $0x1d0] sm:$0xf]
  %v134 = vld [vmem:[%s1 + $0x1d4] sm:$0xf]
  %v135 = vld [vmem:[%s1 + $0x1d8] sm:$0xf]
  %v136 = vld [vmem:[%s1 + $0x1dc] sm:$0xf]
  %v137 = vld [vmem:[%s1 + $0x1e0] sm:$0xf]
  %v138 = vld [vmem:[%s1 + $0x1e4] sm:$0xf]
  %v139 = vld [vmem:[%s1 + $0x1e8] sm:$0xf]
  %v140 = vld [vmem:[%s1 + $0x1ec] sm:$0xf]
  %v141 = vld [vmem:[%s1 + $0x1f0] sm:$0xf]
  %v142 = vld [vmem:[%s1 + $0x1f4] sm:$0xf]
  %v143 = vld [vmem:[%s1 + $0x1f8] sm:$0xf]
  %v144 = vld [vmem:[%s1 + $0x1fc] sm:$0xf]
  %v145 = vld [vmem:[%s1 + $0x200] sm:$0xf]
  %v146 = vld [vmem:[%s1 + $0x204] sm:$0xf]
  %v147 = vld [vmem:[%s1 + $0x208] sm:$0xf]
  %v148 = vld [vmem:[%s1 + $0x20c] sm:$0xf]
  %v149 = vld [vmem:[%s1 + $0x210] sm:$0xf]
  %v150 = vld [vmem:[%s1 + $0x214] sm:$0xf]
  %v151 = vld [vmem:[%s1 + $0x218] sm:$0xf]
  %v152 = vld [vmem:[%s1 + $0x21c] sm:$0xf]
  %v153 = vld [vmem:[%s1 + $0x220] sm:$0xf]
  %v154 = vld [vmem:[%s1 + $0x224] sm:$0xf]
  %v155 = vld [vmem:[%s1 + $0x228] sm:$0xf]
  %v156 = vld [vmem:[%s1 + $0x22c] sm:$0xf]
  %v157 = vld [vmem:[%s1 + $0x230] sm:$0xf]
  %v158 = vld [vmem:[%s1 + $0x234] sm:$0xf]
  %v159 = vld [vmem:[%s1 + $0x238] sm:$0xf]
  %v160 = vld [vmem:[%s1 + $0x23c] sm:$0xf]
  %v161 = vld [vmem:[%s2] sm:$0x1]
  %v163 = vlaneseq
  %v164 = vshrl.u32 %v163, 7
  %v165 = vsub.s32 0, %v164
  %v166 = vrot.slane %v161, %v165
  %v170 = vcombine.high %v15, %v15
  %v172 = vunpack.c.l.s4 1966171168
  %v173 = vunpack.c.0.s8 %v172
  %v174 = vlaneseq
  %v175 = vshrl.u32 %v174, 7
  %v176 = vsub.s32 %v173, %v175
  %v177 = vrot.slane %v15, %v176
  %v179 = vunpack.c.l.s4 1966171168
  %v180 = vunpack.c.0.s8 %v179
  %v181 = vlaneseq
  %v182 = vshrl.u32 %v181, 7
  %v183 = vsub.s32 %v180, %v182
  %v184 = vrot.slane %v170, %v183
  %v185 = vcombine.high %v177, %v177
  %v186 = vcombine.high %v184, %v184
  %v188 = vunpack.c.l.s4 1966171168
  %v189 = vunpack.c.0.s8 %v188
  %v190 = vlaneseq
  %v191 = vshrl.u32 %v190, 7
  %v192 = vsub.s32 %v189, %v191
  %v193 = vrot.slane %v177, %v192
  %v195 = vunpack.c.l.s4 1966171168
  %v196 = vunpack.c.0.s8 %v195
  %v197 = vlaneseq
  %v198 = vshrl.u32 %v197, 7
  %v199 = vsub.s32 %v196, %v198
  %v200 = vrot.slane %v184, %v199
  %v202 = vunpack.c.l.s4 1966171168
  %v203 = vunpack.c.0.s8 %v202
  %v204 = vlaneseq
  %v205 = vshrl.u32 %v204, 7
  %v206 = vsub.s32 %v203, %v205
  %v207 = vrot.slane %v185, %v206
  %v209 = vunpack.c.l.s4 1966171168
  %v210 = vunpack.c.0.s8 %v209
  %v211 = vlaneseq
  %v212 = vshrl.u32 %v211, 7
  %v213 = vsub.s32 %v210, %v212
  %v214 = vrot.slane %v186, %v213
  %v215 = vcombine.high %v193, %v193
  %v216 = vcombine.high %v200, %v200
  %v217 = vcombine.high %v207, %v207
  %v218 = vcombine.high %v214, %v214
  %v220 = vunpack.c.l.s4 1966171168
  %v221 = vunpack.c.0.s8 %v220
  %v222 = vlaneseq
  %v223 = vshrl.u32 %v222, 7
  %v224 = vsub.s32 %v221, %v223
  %v225 = vrot.slane %v16, %v224
  %v227 = vunpack.c.l.s4 1966171168
  %v228 = vunpack.c.0.s8 %v227
  %v229 = vlaneseq
  %v230 = vshrl.u32 %v229, 7
  %v231 = vsub.s32 %v228, %v230
  %v232 = vrot.slane %v225, %v231
  %v386 = vunpack.c.l.b16 %v17
  %v387 = vunpack.c.l.b16 %v18
  %v388 = vunpack.c.l.b16 %v19
  %v389 = vunpack.c.l.b16 %v20
  %v390 = vunpack.c.l.b16 %v21
  %v391 = vunpack.c.l.b16 %v22
  %v392 = vunpack.c.l.b16 %v23
  %v393 = vunpack.c.l.b16 %v24
  %v394 = vunpack.c.l.b16 %v25
  %v395 = vunpack.c.l.b16 %v26
  %v396 = vunpack.c.l.b16 %v27
  %v397 = vunpack.c.l.b16 %v28
  %v398 = vunpack.c.l.b16 %v29
  %v399 = vunpack.c.l.b16 %v30
  %v400 = vunpack.c.l.b16 %v31
  %v401 = vunpack.c.l.b16 %v32
  %v402 = vunpack.c.l.b16 %v33
  %v403 = vunpack.c.l.b16 %v34
  %v404 = vunpack.c.l.b16 %v35
  %v405 = vunpack.c.l.b16 %v36
  %v406 = vunpack.c.l.b16 %v37
  %v407 = vunpack.c.l.b16 %v38
  %v408 = vunpack.c.l.b16 %v39
  %v409 = vunpack.c.l.b16 %v40
  %v410 = vunpack.c.l.b16 %v41
  %v411 = vunpack.c.l.b16 %v42
  %v412 = vunpack.c.l.b16 %v43
  %v413 = vunpack.c.l.b16 %v44
  %v414 = vunpack.c.l.b16 %v45
  %v415 = vunpack.c.l.b16 %v46
  %v416 = vunpack.c.l.b16 %v47
  %v417 = vunpack.c.l.b16 %v48
  %v418 = vunpack.c.l.b16 %v49
  %v419 = vunpack.c.l.b16 %v50
  %v420 = vunpack.c.l.b16 %v51
  %v421 = vunpack.c.l.b16 %v52
  %v422 = vunpack.c.l.b16 %v53
  %v423 = vunpack.c.l.b16 %v54
  %v424 = vunpack.c.l.b16 %v55
  %v425 = vunpack.c.l.b16 %v56
  %v426 = vunpack.c.l.b16 %v57
  %v427 = vunpack.c.l.b16 %v58
  %v428 = vunpack.c.l.b16 %v59
  %v429 = vunpack.c.l.b16 %v60
  %v430 = vunpack.c.l.b16 %v61
  %v431 = vunpack.c.l.b16 %v62
  %v432 = vunpack.c.l.b16 %v63
  %v433 = vunpack.c.l.b16 %v64
  %v434 = vunpack.c.l.b16 %v65
  %v435 = vunpack.c.l.b16 %v66
  %v436 = vunpack.c.l.b16 %v67
  %v437 = vunpack.c.l.b16 %v68
  %v438 = vunpack.c.l.b16 %v69
  %v439 = vunpack.c.l.b16 %v70
  %v440 = vunpack.c.l.b16 %v71
  %v441 = vunpack.c.l.b16 %v72
  %v442 = vunpack.c.l.b16 %v73
  %v443 = vunpack.c.l.b16 %v74
  %v444 = vunpack.c.l.b16 %v75
  %v445 = vunpack.c.l.b16 %v76
  %v446 = vunpack.c.l.b16 %v77
  %v447 = vunpack.c.l.b16 %v78
  %v448 = vunpack.c.l.b16 %v79
  %v449 = vunpack.c.l.b16 %v80
  %v450 = vunpack.c.l.b16 %v81
  %v451 = vunpack.c.l.b16 %v82
  %v452 = vunpack.c.l.b16 %v83
  %v453 = vunpack.c.l.b16 %v84
  %v454 = vunpack.c.l.b16 %v85
  %v455 = vunpack.c.l.b16 %v86
  %v456 = vunpack.c.l.b16 %v87
  %v457 = vunpack.c.l.b16 %v88
  %v458 = vunpack.c.l.b16 %v89
  %v459 = vunpack.c.l.b16 %v90
  %v460 = vunpack.c.l.b16 %v91
  %v461 = vunpack.c.l.b16 %v92
  %v462 = vunpack.c.l.b16 %v93
  %v463 = vunpack.c.l.b16 %v94
  %v464 = vunpack.c.l.b16 %v95
  %v465 = vunpack.c.l.b16 %v96
  %v466 = vunpack.c.l.b16 %v97
  %v467 = vunpack.c.l.b16 %v98
  %v468 = vunpack.c.l.b16 %v99
  %v469 = vunpack.c.l.b16 %v100
  %v470 = vunpack.c.l.b16 %v101
  %v471 = vunpack.c.l.b16 %v102
  %v472 = vunpack.c.l.b16 %v103
  %v473 = vunpack.c.l.b16 %v104
  %v474 = vunpack.c.l.b16 %v105
  %v475 = vunpack.c.l.b16 %v106
  %v476 = vunpack.c.l.b16 %v107
  %v477 = vunpack.c.l.b16 %v108
  %v478 = vunpack.c.l.b16 %v109
  %v479 = vunpack.c.l.b16 %v110
  %v480 = vunpack.c.l.b16 %v111
  %v481 = vunpack.c.l.b16 %v112
  %v482 = vunpack.c.l.b16 %v113
  %v483 = vunpack.c.l.b16 %v114
  %v484 = vunpack.c.l.b16 %v115
  %v485 = vunpack.c.l.b16 %v116
  %v486 = vunpack.c.l.b16 %v117
  %v487 = vunpack.c.l.b16 %v118
  %v488 = vunpack.c.l.b16 %v119
  %v489 = vunpack.c.l.b16 %v120
  %v490 = vunpack.c.l.b16 %v121
  %v491 = vunpack.c.l.b16 %v122
  %v492 = vunpack.c.l.b16 %v123
  %v493 = vunpack.c.l.b16 %v124
  %v494 = vunpack.c.l.b16 %v125
  %v495 = vunpack.c.l.b16 %v126
  %v496 = vunpack.c.l.b16 %v127
  %v497 = vunpack.c.l.b16 %v128
  %v498 = vunpack.c.l.b16 %v129
  %v499 = vunpack.c.l.b16 %v130
  %v500 = vunpack.c.l.b16 %v131
  %v501 = vunpack.c.l.b16 %v132
  %v502 = vunpack.c.l.b16 %v133
  %v503 = vunpack.c.l.b16 %v134
  %v504 = vunpack.c.l.b16 %v135
  %v505 = vunpack.c.l.b16 %v136
  %v506 = vunpack.c.l.b16 %v137
  %v507 = vunpack.c.l.b16 %v138
  %v508 = vunpack.c.l.b16 %v139
  %v509 = vunpack.c.l.b16 %v140
  %v510 = vunpack.c.l.b16 %v141
  %v511 = vunpack.c.l.b16 %v142
  %v512 = vunpack.c.l.b16 %v143
  %v513 = vunpack.c.l.b16 %v144
  %v514 = vunpack.c.l.b16 %v145
  %v515 = vunpack.c.l.b16 %v146
  %v516 = vunpack.c.l.b16 %v147
  %v517 = vunpack.c.l.b16 %v148
  %v518 = vunpack.c.l.b16 %v149
  %v519 = vunpack.c.l.b16 %v150
  %v520 = vunpack.c.l.b16 %v151
  %v521 = vunpack.c.l.b16 %v152
  %v522 = vunpack.c.l.b16 %v153
  %v523 = vunpack.c.l.b16 %v154
  %v524 = vunpack.c.l.b16 %v155
  %v525 = vunpack.c.l.b16 %v156
  %v526 = vunpack.c.l.b16 %v157
  %v527 = vunpack.c.l.b16 %v158
  %v528 = vunpack.c.l.b16 %v159
  %v529 = vunpack.c.l.b16 %v160
  %v530 = vpack.c.b16 %v387, %v386
  %v531 = vpack.c.b16 %v389, %v388
  %v532 = vpack.c.b16 %v391, %v390
  %v533 = vpack.c.b16 %v393, %v392
  %v534 = vpack.c.b16 %v395, %v394
  %v535 = vpack.c.b16 %v397, %v396
  %v536 = vpack.c.b16 %v399, %v398
  %v537 = vpack.c.b16 %v401, %v400
  %v538 = vpack.c.b16 %v403, %v402
  %v539 = vpack.c.b16 %v405, %v404
  %v540 = vpack.c.b16 %v407, %v406
  %v541 = vpack.c.b16 %v409, %v408
  %v542 = vpack.c.b16 %v411, %v410
  %v543 = vpack.c.b16 %v413, %v412
  %v544 = vpack.c.b16 %v415, %v414
  %v545 = vpack.c.b16 %v417, %v416
  %v546 = vpack.c.b16 %v419, %v418
  %v547 = vpack.c.b16 %v421, %v420
  %v548 = vpack.c.b16 %v423, %v422
  %v549 = vpack.c.b16 %v425, %v424
  %v550 = vpack.c.b16 %v427, %v426
  %v551 = vpack.c.b16 %v429, %v428
  %v552 = vpack.c.b16 %v431, %v430
  %v553 = vpack.c.b16 %v433, %v432
  %v554 = vpack.c.b16 %v435, %v434
  %v555 = vpack.c.b16 %v437, %v436
  %v556 = vpack.c.b16 %v439, %v438
  %v557 = vpack.c.b16 %v441, %v440
  %v558 = vpack.c.b16 %v443, %v442
  %v559 = vpack.c.b16 %v445, %v444
  %v560 = vpack.c.b16 %v447, %v446
  %v561 = vpack.c.b16 %v449, %v448
  %v562 = vpack.c.b16 %v451, %v450
  %v563 = vpack.c.b16 %v453, %v452
  %v564 = vpack.c.b16 %v455, %v454
  %v565 = vpack.c.b16 %v457, %v456
  %v566 = vpack.c.b16 %v459, %v458
  %v567 = vpack.c.b16 %v461, %v460
  %v568 = vpack.c.b16 %v463, %v462
  %v569 = vpack.c.b16 %v465, %v464
  %v570 = vpack.c.b16 %v467, %v466
  %v571 = vpack.c.b16 %v469, %v468
  %v572 = vpack.c.b16 %v471, %v470
  %v573 = vpack.c.b16 %v473, %v472
  %v574 = vpack.c.b16 %v475, %v474
  %v575 = vpack.c.b16 %v477, %v476
  %v576 = vpack.c.b16 %v479, %v478
  %v577 = vpack.c.b16 %v481, %v480
  %v578 = vpack.c.b16 %v483, %v482
  %v579 = vpack.c.b16 %v485, %v484
  %v580 = vpack.c.b16 %v487, %v486
  %v581 = vpack.c.b16 %v489, %v488
  %v582 = vpack.c.b16 %v491, %v490
  %v583 = vpack.c.b16 %v493, %v492
  %v584 = vpack.c.b16 %v495, %v494
  %v585 = vpack.c.b16 %v497, %v496
  %v586 = vpack.c.b16 %v499, %v498
  %v587 = vpack.c.b16 %v501, %v500
  %v588 = vpack.c.b16 %v503, %v502
  %v589 = vpack.c.b16 %v505, %v504
  %v590 = vpack.c.b16 %v507, %v506
  %v591 = vpack.c.b16 %v509, %v508
  %v592 = vpack.c.b16 %v511, %v510
  %v593 = vpack.c.b16 %v513, %v512
  %v594 = vpack.c.b16 %v515, %v514
  %v595 = vpack.c.b16 %v517, %v516
  %v596 = vpack.c.b16 %v519, %v518
  %v597 = vpack.c.b16 %v521, %v520
  %v598 = vpack.c.b16 %v523, %v522
  %v599 = vpack.c.b16 %v525, %v524
  %v600 = vpack.c.b16 %v527, %v526
  %v601 = vpack.c.b16 %v529, %v528
  %674 = vmatprep.subr.bf16.mxu0 0
  %675 = vmatpush1.bf16.msra.mxu0 %v530
  %676 = vmatprep.subr.bf16.mxu0 0
  %677 = vmatpush1.bf16.msra.mxu0 %v531
  %678 = vmatprep.subr.bf16.mxu0 0
  %679 = vmatpush1.bf16.msra.mxu0 %v532
  %680 = vmatprep.subr.bf16.mxu0 0
  %681 = vmatpush1.bf16.msra.mxu0 %v533
  %682 = vmatprep.subr.bf16.mxu0 0
  %683 = vmatpush1.bf16.msra.mxu0 %v534
  %684 = vmatprep.subr.bf16.mxu0 0
  %685 = vmatpush1.bf16.msra.mxu0 %v535
  %686 = vmatprep.subr.bf16.mxu0 0
  %687 = vmatpush1.bf16.msra.mxu0 %v536
  %688 = vmatprep.subr.bf16.mxu0 0
  %689 = vmatpush1.bf16.msra.mxu0 %v537
  %690 = vmatprep.subr.bf16.mxu0 0
  %691 = vmatpush1.bf16.msra.mxu0 %v538
  %692 = vmatprep.subr.bf16.mxu0 0
  %693 = vmatpush1.bf16.msra.mxu0 %v539
  %694 = vmatprep.subr.bf16.mxu0 0
  %695 = vmatpush1.bf16.msra.mxu0 %v540
  %696 = vmatprep.subr.bf16.mxu0 0
  %697 = vmatpush1.bf16.msra.mxu0 %v541
  %698 = vmatprep.subr.bf16.mxu0 0
  %699 = vmatpush1.bf16.msra.mxu0 %v542
  %700 = vmatprep.subr.bf16.mxu0 0
  %701 = vmatpush1.bf16.msra.mxu0 %v543
  %702 = vmatprep.subr.bf16.mxu0 0
  %703 = vmatpush1.bf16.msra.mxu0 %v544
  %704 = vmatprep.subr.bf16.mxu0 0
  %705 = vmatpush1.bf16.msra.mxu0 %v545
  %706 = vmatprep.mubr.bf16.mxu0 %v207
  %707 = vmatmul.mubr.bf16.gmra.mrb[0].mxu0 %v193
  %v708 = vpop.f32.mrb[0].mxu0
  %v709 = vadd.f32 %v166, %v708
  %v710 = vpop.f32.mrb[0].mxu0
  %v711 = vpop.f32.mrb[0].mxu0
  %v712 = vpop.f32.mrb[0].mxu0
  %713 = vdwg.mxu0
  %714 = vmatprep.subr.bf16.mxu0 0
  %715 = vmatpush1.bf16.msra.mxu0 %v546
  %716 = vmatprep.subr.bf16.mxu0 0
  %717 = vmatpush1.bf16.msra.mxu0 %v547
  %718 = vmatprep.subr.bf16.mxu0 0
  %719 = vmatpush1.bf16.msra.mxu0 %v548
  %720 = vmatprep.subr.bf16.mxu0 0
  %721 = vmatpush1.bf16.msra.mxu0 %v549
  %722 = vmatprep.subr.bf16.mxu0 0
  %723 = vmatpush1.bf16.msra.mxu0 %v550
  %724 = vmatprep.subr.bf16.mxu0 0
  %725 = vmatpush1.bf16.msra.mxu0 %v551
  %726 = vmatprep.subr.bf16.mxu0 0
  %727 = vmatpush1.bf16.msra.mxu0 %v552
  %728 = vmatprep.subr.bf16.mxu0 0
  %729 = vmatpush1.bf16.msra.mxu0 %v553
  %730 = vmatprep.subr.bf16.mxu0 0
  %731 = vmatpush1.bf16.msra.mxu0 %v554
  %732 = vmatprep.subr.bf16.mxu0 0
  %733 = vmatpush1.bf16.msra.mxu0 %v555
  %734 = vmatprep.subr.bf16.mxu0 0
  %735 = vmatpush1.bf16.msra.mxu0 %v556
  %736 = vmatprep.subr.bf16.mxu0 0
  %737 = vmatpush1.bf16.msra.mxu0 %v557
  %738 = vmatprep.subr.bf16.mxu0 0
  %739 = vmatpush1.bf16.msra.mxu0 %v558
  %740 = vmatprep.subr.bf16.mxu0 0
  %741 = vmatpush1.bf16.msra.mxu0 %v559
  %742 = vmatprep.subr.bf16.mxu0 0
  %743 = vmatpush1.bf16.msra.mxu0 %v560
  %744 = vmatprep.subr.bf16.mxu0 0
  %745 = vmatpush1.bf16.msra.mxu0 %v561
  %746 = vmatprep.mubr.bf16.mxu0 %v217
  %747 = vmatmul.mubr.bf16.gmra.mrb[0].mxu0 %v215
  %v748 = vpop.f32.mrb[0].mxu0
  %v749 = vadd.f32 %v709, %v748
  %v750 = vpop.f32.mrb[0].mxu0
  %v751 = vpop.f32.mrb[0].mxu0
  %v752 = vpop.f32.mrb[0].mxu0
  %753 = vdwg.mxu0
  %754 = vmatprep.subr.bf16.mxu0 0
  %755 = vmatpush1.bf16.msra.mxu0 %v562
  %756 = vmatprep.subr.bf16.mxu0 0
  %757 = vmatpush1.bf16.msra.mxu0 %v563
  %758 = vmatprep.subr.bf16.mxu0 0
  %759 = vmatpush1.bf16.msra.mxu0 %v564
  %760 = vmatprep.subr.bf16.mxu0 0
  %761 = vmatpush1.bf16.msra.mxu0 %v565
  %762 = vmatprep.subr.bf16.mxu0 0
  %763 = vmatpush1.bf16.msra.mxu0 %v566
  %764 = vmatprep.subr.bf16.mxu0 0
  %765 = vmatpush1.bf16.msra.mxu0 %v567
  %766 = vmatprep.subr.bf16.mxu0 0
  %767 = vmatpush1.bf16.msra.mxu0 %v568
  %768 = vmatprep.subr.bf16.mxu0 0
  %769 = vmatpush1.bf16.msra.mxu0 %v569
  %770 = vmatprep.subr.bf16.mxu0 0
  %771 = vmatpush1.bf16.msra.mxu0 %v570
  %772 = vmatprep.subr.bf16.mxu0 0
  %773 = vmatpush1.bf16.msra.mxu0 %v571
  %774 = vmatprep.subr.bf16.mxu0 0
  %775 = vmatpush1.bf16.msra.mxu0 %v572
  %776 = vmatprep.subr.bf16.mxu0 0
  %777 = vmatpush1.bf16.msra.mxu0 %v573
  %778 = vmatprep.subr.bf16.mxu0 0
  %779 = vmatpush1.bf16.msra.mxu0 %v574
  %780 = vmatprep.subr.bf16.mxu0 0
  %781 = vmatpush1.bf16.msra.mxu0 %v575
  %782 = vmatprep.subr.bf16.mxu0 0
  %783 = vmatpush1.bf16.msra.mxu0 %v576
  %784 = vmatprep.subr.bf16.mxu0 0
  %785 = vmatpush1.bf16.msra.mxu0 %v577
  %786 = vmatprep.mubr.bf16.mxu0 %v214
  %787 = vmatmul.mubr.bf16.gmra.mrb[0].mxu0 %v200
  %v788 = vpop.f32.mrb[0].mxu0
  %v789 = vadd.f32 %v749, %v788
  %v790 = vpop.f32.mrb[0].mxu0
  %v791 = vpop.f32.mrb[0].mxu0
  %v792 = vpop.f32.mrb[0].mxu0
  %793 = vdwg.mxu0
  %794 = vmatprep.subr.bf16.mxu0 0
  %795 = vmatpush1.bf16.msra.mxu0 %v578
  %796 = vmatprep.subr.bf16.mxu0 0
  %797 = vmatpush1.bf16.msra.mxu0 %v579
  %798 = vmatprep.subr.bf16.mxu0 0
  %799 = vmatpush1.bf16.msra.mxu0 %v580
  %800 = vmatprep.subr.bf16.mxu0 0
  %801 = vmatpush1.bf16.msra.mxu0 %v581
  %802 = vmatprep.subr.bf16.mxu0 0
  %803 = vmatpush1.bf16.msra.mxu0 %v582
  %804 = vmatprep.subr.bf16.mxu0 0
  %805 = vmatpush1.bf16.msra.mxu0 %v583
  %806 = vmatprep.subr.bf16.mxu0 0
  %807 = vmatpush1.bf16.msra.mxu0 %v584
  %808 = vmatprep.subr.bf16.mxu0 0
  %809 = vmatpush1.bf16.msra.mxu0 %v585
  %810 = vmatprep.subr.bf16.mxu0 0
  %811 = vmatpush1.bf16.msra.mxu0 %v586
  %812 = vmatprep.subr.bf16.mxu0 0
  %813 = vmatpush1.bf16.msra.mxu0 %v587
  %814 = vmatprep.subr.bf16.mxu0 0
  %815 = vmatpush1.bf16.msra.mxu0 %v588
  %816 = vmatprep.subr.bf16.mxu0 0
  %817 = vmatpush1.bf16.msra.mxu0 %v589
  %818 = vmatprep.subr.bf16.mxu0 0
  %819 = vmatpush1.bf16.msra.mxu0 %v590
  %820 = vmatprep.subr.bf16.mxu0 0
  %821 = vmatpush1.bf16.msra.mxu0 %v591
  %822 = vmatprep.subr.bf16.mxu0 0
  %823 = vmatpush1.bf16.msra.mxu0 %v592
  %824 = vmatprep.subr.bf16.mxu0 0
  %825 = vmatpush1.bf16.msra.mxu0 %v593
  %826 = vmatprep.mubr.bf16.mxu0 %v218
  %827 = vmatmul.mubr.bf16.gmra.mrb[0].mxu0 %v216
  %v828 = vpop.f32.mrb[0].mxu0
  %v829 = vadd.f32 %v789, %v828
  %v830 = vpop.f32.mrb[0].mxu0
  %v831 = vpop.f32.mrb[0].mxu0
  %v832 = vpop.f32.mrb[0].mxu0
  %833 = vdwg.mxu0
  %834 = vmatprep.subr.bf16.mxu0 0
  %835 = vmatpush1.bf16.msra.mxu0 %v594
  %836 = vmatprep.subr.bf16.mxu0 0
  %837 = vmatpush1.bf16.msra.mxu0 %v595
  %838 = vmatprep.subr.bf16.mxu0 0
  %839 = vmatpush1.bf16.msra.mxu0 %v596
  %840 = vmatprep.subr.bf16.mxu0 0
  %841 = vmatpush1.bf16.msra.mxu0 %v597
  %842 = vmatprep.subr.bf16.mxu0 0
  %843 = vmatpush1.bf16.msra.mxu0 %v598
  %844 = vmatprep.subr.bf16.mxu0 0
  %845 = vmatpush1.bf16.msra.mxu0 %v599
  %846 = vmatprep.subr.bf16.mxu0 0
  %847 = vmatpush1.bf16.msra.mxu0 %v600
  %848 = vmatprep.subr.bf16.mxu0 0
  %849 = vmatpush1.bf16.msra.mxu0 %v601
  %850 = vmatprep.subr.bf16.mxu0 0
  %851 = vmatpush1.bf16.msra.mxu0 0
  %852 = vmatprep.subr.bf16.mxu0 0
  %853 = vmatpush1.bf16.msra.mxu0 0
  %854 = vmatprep.subr.bf16.mxu0 0
  %855 = vmatpush1.bf16.msra.mxu0 0
  %856 = vmatprep.subr.bf16.mxu0 0
  %857 = vmatpush1.bf16.msra.mxu0 0
  %858 = vmatprep.subr.bf16.mxu0 0
  %859 = vmatpush1.bf16.msra.mxu0 0
  %860 = vmatprep.subr.bf16.mxu0 0
  %861 = vmatpush1.bf16.msra.mxu0 0
  %862 = vmatprep.subr.bf16.mxu0 0
  %863 = vmatpush1.bf16.msra.mxu0 0
  %864 = vmatprep.subr.bf16.mxu0 0
  %865 = vmatpush1.bf16.msra.mxu0 0
  %866 = vmatprep.mubr.bf16.mxu0 0
  %867 = vmatmul.mubr.bf16.gmra.mrb[0].mxu0 %v232
  %v868 = vpop.f32.mrb[0].mxu0
  %v869 = vadd.f32 %v829, %v868
  %v870 = vpop.f32.mrb[0].mxu0
  %v871 = vpop.f32.mrb[0].mxu0
  %v872 = vpop.f32.mrb[0].mxu0
  %873 = vdwg.mxu0
  %vm874 = vcmp.gt.f32.partialorder %v869, 0.0
  %v875 = vmul.f32 %v869, 0.2
  %v876 = vsel %vm874, %v869, %v875
  %v877 = vpack.c.bf16 %v876, %v876
  %878 = vst [vmem:[%s3] sm:$0x1] %v877
  // Predicated region
  $region14: #{rnd_predictor_head_forward.8} parent=0 // pred_check
    _
  $region15: #{rnd_predictor_head_forward.8} parent=0 // pred_check_branch
    %880 = sbr.rel (0) target = $region17
  $region16: #{rnd_predictor_head_forward.8} parent=0 // pred_region
    _
  $region17: #{rnd_predictor_head_forward.8} parent=0 // pred_fallthru
    _
  // Predicated region
  $region18: #{rnd_predictor_head_forward.8} parent=0 // pred_check
    _
  $region19: #{rnd_predictor_head_forward.8} parent=0 // pred_check_branch
    %882 = sbr.rel (0) target = $region21
  $region20: #{rnd_predictor_head_forward.8} parent=0 // pred_region
    _
  $region21: #{rnd_predictor_head_forward.8} parent=0 // pred_fallthru
    _

// kernel: rnd_predictor_head_forward.7
$region0: #{rnd_predictor_head_forward.7}
  #allocation0 [shape = 'u32[]', space=smem, size = 0x4, offset = 0x4, fixed_abs, tag = 'smem constant byte address 0x4 - core index']
  #allocation1 [shape = 'u32[144,128]{1,0:T(1,128)}', space=vmem, size = 0x12000, scoped, tag = 'internal scratch']
  %s0 = inlined_call_operand.vmem [shape: bf16[18,2048], index: 0, kind: input, shape index: {}]
  %s1 = inlined_call_operand.vmem [shape: bf16[2048,128], index: 1, kind: input, shape index: {}]
  %s2 = inlined_call_operand.vmem [shape: f32[1,128], index: 2, kind: input, shape index: {}]
  %s3 = inlined_call_operand.vmem [shape: bf16[18,128], index: 3, kind: output, shape index: {}]
  %s4 = sld [smem:[#allocation0]]
  $region22: #{rnd_predictor_head_forward.7} parent=0
    _
  %s6 = ssub.s32 1, %s4
  %s7 = scalar_select 0, %s6, %s4
  // Predicated region
  $region2: #{rnd_predictor_head_forward.7} parent=0 // pred_check
    _
  $region3: #{rnd_predictor_head_forward.7} parent=0 // pred_check_branch
    %9 = sbr.rel (0) target = $region5
  $region4: #{rnd_predictor_head_forward.7} parent=0 // pred_region
    _
  $region5: #{rnd_predictor_head_forward.7} parent=0 // pred_fallthru
    _
  // Predicated region
  $region6: #{rnd_predictor_head_forward.7} parent=0 // pred_check
    _
  $region7: #{rnd_predictor_head_forward.7} parent=0 // pred_check_branch
    %11 = sbr.rel (0) target = $region9
  $region8: #{rnd_predictor_head_forward.7} parent=0 // pred_region
    _
  $region9: #{rnd_predictor_head_forward.7} parent=0 // pred_fallthru
    _
  // Predicated region
  $region10: #{rnd_predictor_head_forward.7} parent=0 // pred_check
    _
  $region11: #{rnd_predictor_head_forward.7} parent=0 // pred_check_branch
    %13 = sbr.rel (0) target = $region13
  $region12: #{rnd_predictor_head_forward.7} parent=0 // pred_region
    _
  $region13: #{rnd_predictor_head_forward.7} parent=0 // pred_fallthru
    _
  %v15 = vld [vmem:[%s0] sm:$0xff]
  %v16 = vld [vmem:[%s0 + $0x8] sm:$0xff]
  %v17 = vld [vmem:[%s0 + $0x10] sm:$0xff]
  %v18 = vld [vmem:[%s0 + $0x18] sm:$0xff]
  %v19 = vld [vmem:[%s0 + $0x20] sm:$0xff]
  %v20 = vld [vmem:[%s0 + $0x28] sm:$0xff]
  %v21 = vld [vmem:[%s0 + $0x30] sm:$0xff]
  %v22 = vld [vmem:[%s0 + $0x38] sm:$0xff]
  %v23 = vld [vmem:[%s0 + $0x40] sm:$0xff]
  %v24 = vld [vmem:[%s0 + $0x48] sm:$0xff]
  %v25 = vld [vmem:[%s0 + $0x50] sm:$0xff]
  %v26 = vld [vmem:[%s0 + $0x58] sm:$0xff]
  %v27 = vld [vmem:[%s0 + $0x60] sm:$0xff]
  %v28 = vld [vmem:[%s0 + $0x68] sm:$0xff]
  %v29 = vld [vmem:[%s0 + $0x70] sm:$0xff]
  %v30 = vld [vmem:[%s0 + $0x78] sm:$0xff]
  %v31 = vld [vmem:[%s0 + $0x80] sm:$0x11]
  %v32 = vld [vmem:[%s0 + $0x88] sm:$0x11]
  %v33 = vld [vmem:[%s0 + $0x90] sm:$0x11]
  %v34 = vld [vmem:[%s0 + $0x98] sm:$0x11]
  %v35 = vld [vmem:[%s0 + $0xa0] sm:$0x11]
  %v36 = vld [vmem:[%s0 + $0xa8] sm:$0x11]
  %v37 = vld [vmem:[%s0 + $0xb0] sm:$0x11]
  %v38 = vld [vmem:[%s0 + $0xb8] sm:$0x11]
  %v39 = vld [vmem:[%s1] sm:$0xf]
  %v40 = vld [vmem:[%s1 + $0x4] sm:$0xf]
  %v41 = vld [vmem:[%s1 + $0x8] sm:$0xf]
  %v42 = vld [vmem:[%s1 + $0xc] sm:$0xf]
  %v43 = vld [vmem:[%s1 + $0x10] sm:$0xf]
  %v44 = vld [vmem:[%s1 + $0x14] sm:$0xf]
  %v45 = vld [vmem:[%s1 + $0x18] sm:$0xf]
  %v46 = vld [vmem:[%s1 + $0x1c] sm:$0xf]
  %v47 = vld [vmem:[%s1 + $0x20] sm:$0xf]
  %v48 = vld [vmem:[%s1 + $0x24] sm:$0xf]
  %v49 = vld [vmem:[%s1 + $0x28] sm:$0xf]
  %v50 = vld [vmem:[%s1 + $0x2c] sm:$0xf]
  %v51 = vld [vmem:[%s1 + $0x30] sm:$0xf]
  %v52 = vld [vmem:[%s1 + $0x34] sm:$0xf]
  %v53 = vld [vmem:[%s1 + $0x38] sm:$0xf]
  %v54 = vld [vmem:[%s1 + $0x3c] sm:$0xf]
  %v55 = vld [vmem:[%s1 + $0x40] sm:$0xf]
  %v56 = vld [vmem:[%s1 + $0x44] sm:$0xf]
  %v57 = vld [vmem:[%s1 + $0x48] sm:$0xf]
  %v58 = vld [vmem:[%s1 + $0x4c] sm:$0xf]
  %v59 = vld [vmem:[%s1 + $0x50] sm:$0xf]
  %v60 = vld [vmem:[%s1 + $0x54] sm:$0xf]
  %v61 = vld [vmem:[%s1 + $0x58] sm:$0xf]
  %v62 = vld [vmem:[%s1 + $0x5c] sm:$0xf]
  %v63 = vld [vmem:[%s1 + $0x60] sm:$0xf]
  %v64 = vld [vmem:[%s1 + $0x64] sm:$0xf]
  %v65 = vld [vmem:[%s1 + $0x68] sm:$0xf]
  %v66 = vld [vmem:[%s1 + $0x6c] sm:$0xf]
  %v67 = vld [vmem:[%s1 + $0x70] sm:$0xf]
  %v68 = vld [vmem:[%s1 + $0x74] sm:$0xf]
  %v69 = vld [vmem:[%s1 + $0x78] sm:$0xf]
  %v70 = vld [vmem:[%s1 + $0x7c] sm:$0xf]
  %v71 = vld [vmem:[%s1 + $0x80] sm:$0xf]
  %v72 = vld [vmem:[%s1 + $0x84] sm:$0xf]
  %v73 = vld [vmem:[%s1 + $0x88] sm:$0xf]
  %v74 = vld [vmem:[%s1 + $0x8c] sm:$0xf]
  %v75 = vld [vmem:[%s1 + $0x90] sm:$0xf]
  %v76 = vld [vmem:[%s1 + $0x94] sm:$0xf]
  %v77 = vld [vmem:[%s1 + $0x98] sm:$0xf]
  %v78 = vld [vmem:[%s1 + $0x9c] sm:$0xf]
  %v79 = vld [vmem:[%s1 + $0xa0] sm:$0xf]
  %v80 = vld [vmem:[%s1 + $0xa4] sm:$0xf]
  %v81 = vld [vmem:[%s1 + $0xa8] sm:$0xf]
  %v82 = vld [vmem:[%s1 + $0xac] sm:$0xf]
  %v83 = vld [vmem:[%s1 + $0xb0] sm:$0xf]
  %v84 = vld [vmem:[%s1 + $0xb4] sm:$0xf]
  %v85 = vld [vmem:[%s1 + $0xb8] sm:$0xf]
  %v86 = vld [vmem:[%s1 + $0xbc] sm:$0xf]
  %v87 = vld [vmem:[%s1 + $0xc0] sm:$0xf]
  %v88 = vld [vmem:[%s1 + $0xc4] sm:$0xf]
  %v89 = vld [vmem:[%s1 + $0xc8] sm:$0xf]
  %v90 = vld [vmem:[%s1 + $0xcc] sm:$0xf]
  %v91 = vld [vmem:[%s1 + $0xd0] sm:$0xf]
  %v92 = vld [vmem:[%s1 + $0xd4] sm:$0xf]
  %v93 = vld [vmem:[%s1 + $0xd8] sm:$0xf]
  %v94 = vld [vmem:[%s1 + $0xdc] sm:$0xf]
  %v95 = vld [vmem:[%s1 + $0xe0] sm:$0xf]
  %v96 = vld [vmem:[%s1 + $0xe4] sm:$0xf]
  %v97 = vld [vmem:[%s1 + $0xe8] sm:$0xf]
  %v98 = vld [vmem:[%s1 + $0xec] sm:$0xf]
  %v99 = vld [vmem:[%s1 + $0xf0] sm:$0xf]
  %v100 = vld [vmem:[%s1 + $0xf4] sm:$0xf]
  %v101 = vld [vmem:[%s1 + $0xf8] sm:$0xf]
  %v102 = vld [vmem:[%s1 + $0xfc] sm:$0xf]
  %v103 = vld [vmem:[%s1 + $0x100] sm:$0xf]
  %v104 = vld [vmem:[%s1 + $0x104] sm:$0xf]
  %v105 = vld [vmem:[%s1 + $0x108] sm:$0xf]
  %v106 = vld [vmem:[%s1 + $0x10c] sm:$0xf]
  %v107 = vld [vmem:[%s1 + $0x110] sm:$0xf]
  %v108 = vld [vmem:[%s1 + $0x114] sm:$0xf]
  %v109 = vld [vmem:[%s1 + $0x118] sm:$0xf]
  %v110 = vld [vmem:[%s1 + $0x11c] sm:$0xf]
  %v111 = vld [vmem:[%s1 + $0x120] sm:$0xf]
  %v112 = vld [vmem:[%s1 + $0x124] sm:$0xf]
  %v113 = vld [vmem:[%s1 + $0x128] sm:$0xf]
  %v114 = vld [vmem:[%s1 + $0x12c] sm:$0xf]
  %v115 = vld [vmem:[%s1 + $0x130] sm:$0xf]
  %v116 = vld [vmem:[%s1 + $0x134] sm:$0xf]
  %v117 = vld [vmem:[%s1 + $0x138] sm:$0xf]
  %v118 = vld [vmem:[%s1 + $0x13c] sm:$0xf]
  %v119 = vld [vmem:[%s1 + $0x140] sm:$0xf]
  %v120 = vld [vmem:[%s1 + $0x144] sm:$0xf]
  %v121 = vld [vmem:[%s1 + $0x148] sm:$0xf]
  %v122 = vld [vmem:[%s1 + $0x14c] sm:$0xf]
  %v123 = vld [vmem:[%s1 + $0x150] sm:$0xf]
  %v124 = vld [vmem:[%s1 + $0x154] sm:$0xf]
  %v125 = vld [vmem:[%s1 + $0x158] sm:$0xf]
  %v126 = vld [vmem:[%s1 + $0x15c] sm:$0xf]
  %v127 = vld [vmem:[%s1 + $0x160] sm:$0xf]
  %v128 = vld [vmem:[%s1 + $0x164] sm:$0xf]
  %v129 = vld [vmem:[%s1 + $0x168] sm:$0xf]
  %v130 = vld [vmem:[%s1 + $0x16c] sm:$0xf]
  %v131 = vld [vmem:[%s1 + $0x170] sm:$0xf]
  %v132 = vld [vmem:[%s1 + $0x174] sm:$0xf]
  %v133 = vld [vmem:[%s1 + $0x178] sm:$0xf]
  %v134 = vld [vmem:[%s1 + $0x17c] sm:$0xf]
  %v135 = vld [vmem:[%s1 + $0x180] sm:$0xf]
  %v136 = vld [vmem:[%s1 + $0x184] sm:$0xf]
  %v137 = vld [vmem:[%s1 + $0x188] sm:$0xf]
  %v138 = vld [vmem:[%s1 + $0x18c] sm:$0xf]
  %v139 = vld [vmem:[%s1 + $0x190] sm:$0xf]
  %v140 = vld [vmem:[%s1 + $0x194] sm:$0xf]
  %v141 = vld [vmem:[%s1 + $0x198] sm:$0xf]
  %v142 = vld [vmem:[%s1 + $0x19c] sm:$0xf]
  %v143 = vld [vmem:[%s1 + $0x1a0] sm:$0xf]
  %v144 = vld [vmem:[%s1 + $0x1a4] sm:$0xf]
  %v145 = vld [vmem:[%s1 + $0x1a8] sm:$0xf]
  %v146 = vld [vmem:[%s1 + $0x1ac] sm:$0xf]
  %v147 = vld [vmem:[%s1 + $0x1b0] sm:$0xf]
  %v148 = vld [vmem:[%s1 + $0x1b4] sm:$0xf]
  %v149 = vld [vmem:[%s1 + $0x1b8] sm:$0xf]
  %v150 = vld [vmem:[%s1 + $0x1bc] sm:$0xf]
  %v151 = vld [vmem:[%s1 + $0x1c0] sm:$0xf]
  %v152 = vld [vmem:[%s1 + $0x1c4] sm:$0xf]
  %v153 = vld [vmem:[%s1 + $0x1c8] sm:$0xf]
  %v154 = vld [vmem:[%s1 + $0x1cc] sm:$0xf]
  %v155 = vld [vmem:[%s1 + $0x1d0] sm:$0xf]
  %v156 = vld [vmem:[%s1 + $0x1d4] sm:$0xf]
  %v157 = vld [vmem:[%s1 + $0x1d8] sm:$0xf]
  %v158 = vld [vmem:[%s1 + $0x1dc] sm:$0xf]
  %v159 = vld [vmem:[%s1 + $0x1e0] sm:$0xf]
  %v160 = vld [vmem:[%s1 + $0x1e4] sm:$0xf]
  %v161 = vld [vmem:[%s1 + $0x1e8] sm:$0xf]
  %v162 = vld [vmem:[%s1 + $0x1ec] sm:$0xf]
  %v163 = vld [vmem:[%s1 + $0x1f0] sm:$0xf]
  %v164 = vld [vmem:[%s1 + $0x1f4] sm:$0xf]
  %v165 = vld [vmem:[%s1 + $0x1f8] sm:$0xf]
  %v166 = vld [vmem:[%s1 + $0x1fc] sm:$0xf]
  %v167 = vld [vmem:[%s1 + $0x200] sm:$0xf]
  %v168 = vld [vmem:[%s1 + $0x204] sm:$0xf]
  %v169 = vld [vmem:[%s1 + $0x208] sm:$0xf]
  %v170 = vld [vmem:[%s1 + $0x20c] sm:$0xf]
  %v171 = vld [vmem:[%s1 + $0x210] sm:$0xf]
  %v172 = vld [vmem:[%s1 + $0x214] sm:$0xf]
  %v173 = vld [vmem:[%s1 + $0x218] sm:$0xf]
  %v174 = vld [vmem:[%s1 + $0x21c] sm:$0xf]
  %v175 = vld [vmem:[%s1 + $0x220] sm:$0xf]
  %v176 = vld [vmem:[%s1 + $0x224] sm:$0xf]
  %v177 = vld [vmem:[%s1 + $0x228] sm:$0xf]
  %v178 = vld [vmem:[%s1 + $0x22c] sm:$0xf]
  %v179 = vld [vmem:[%s1 + $0x230] sm:$0xf]
  %v180 = vld [vmem:[%s1 + $0x234] sm:$0xf]
  %v181 = vld [vmem:[%s1 + $0x238] sm:$0xf]
  %v182 = vld [vmem:[%s1 + $0x23c] sm:$0xf]
  %v183 = vld [vmem:[%s1 + $0x240] sm:$0xf]
  %v184 = vld [vmem:[%s1 + $0x244] sm:$0xf]
  %v185 = vld [vmem:[%s1 + $0x248] sm:$0xf]
  %v186 = vld [vmem:[%s1 + $0x24c] sm:$0xf]
  %v187 = vld [vmem:[%s1 + $0x250] sm:$0xf]
  %v188 = vld [vmem:[%s1 + $0x254] sm:$0xf]
  %v189 = vld [vmem:[%s1 + $0x258] sm:$0xf]
  %v190 = vld [vmem:[%s1 + $0x25c] sm:$0xf]
  %v191 = vld [vmem:[%s1 + $0x260] sm:$0xf]
  %v192 = vld [vmem:[%s1 + $0x264] sm:$0xf]
  %v193 = vld [vmem:[%s1 + $0x268] sm:$0xf]
  %v194 = vld [vmem:[%s1 + $0x26c] sm:$0xf]
  %v195 = vld [vmem:[%s1 + $0x270] sm:$0xf]
  %v196 = vld [vmem:[%s1 + $0x274] sm:$0xf]
  %v197 = vld [vmem:[%s1 + $0x278] sm:$0xf]
  %v198 = vld [vmem:[%s1 + $0x27c] sm:$0xf]
  %v199 = vld [vmem:[%s1 + $0x280] sm:$0xf]
  %v200 = vld [vmem:[%s1 + $0x284] sm:$0xf]
  %v201 = vld [vmem:[%s1 + $0x288] sm:$0xf]
  %v202 = vld [vmem:[%s1 + $0x28c] sm:$0xf]
  %v203 = vld [vmem:[%s1 + $0x290] sm:$0xf]
  %v204 = vld [vmem:[%s1 + $0x294] sm:$0xf]
  %v205 = vld [vmem:[%s1 + $0x298] sm:$0xf]
  %v206 = vld [vmem:[%s1 + $0x29c] sm:$0xf]
  %v207 = vld [vmem:[%s1 + $0x2a0] sm:$0xf]
  %v208 = vld [vmem:[%s1 + $0x2a4] sm:$0xf]
  %v209 = vld [vmem:[%s1 + $0x2a8] sm:$0xf]
  %v210 = vld [vmem:[%s1 + $0x2ac] sm:$0xf]
  %v211 = vld [vmem:[%s1 + $0x2b0] sm:$0xf]
  %v212 = vld [vmem:[%s1 + $0x2b4] sm:$0xf]
  %v213 = vld [vmem:[%s1 + $0x2b8] sm:$0xf]
  %v214 = vld [vmem:[%s1 + $0x2bc] sm:$0xf]
  %v215 = vld [vmem:[%s1 + $0x2c0] sm:$0xf]
  %v216 = vld [vmem:[%s1 + $0x2c4] sm:$0xf]
  %v217 = vld [vmem:[%s1 + $0x2c8] sm:$0xf]
  %v218 = vld [vmem:[%s1 + $0x2cc] sm:$0xf]
  %v219 = vld [vmem:[%s1 + $0x2d0] sm:$0xf]
  %v220 = vld [vmem:[%s1 + $0x2d4] sm:$0xf]
  %v221 = vld [vmem:[%s1 + $0x2d8] sm:$0xf]
  %v222 = vld [vmem:[%s1 + $0x2dc] sm:$0xf]
  %v223 = vld [vmem:[%s1 + $0x2e0] sm:$0xf]
  %v224 = vld [vmem:[%s1 + $0x2e4] sm:$0xf]
  %v225 = vld [vmem:[%s1 + $0x2e8] sm:$0xf]
  %v226 = vld [vmem:[%s1 + $0x2ec] sm:$0xf]
  %v227 = vld [vmem:[%s1 + $0x2f0] sm:$0xf]
  %v228 = vld [vmem:[%s1 + $0x2f4] sm:$0xf]
  %v229 = vld [vmem:[%s1 + $0x2f8] sm:$0xf]
  %v230 = vld [vmem:[%s1 + $0x2fc] sm:$0xf]
  %v231 = vld [vmem:[%s1 + $0x300] sm:$0xf]
  %v232 = vld [vmem:[%s1 + $0x304] sm:$0xf]
  %v233 = vld [vmem:[%s1 + $0x308] sm:$0xf]
  %v234 = vld [vmem:[%s1 + $0x30c] sm:$0xf]
  %v235 = vld [vmem:[%s1 + $0x310] sm:$0xf]
  %v236 = vld [vmem:[%s1 + $0x314] sm:$0xf]
  %v237 = vld [vmem:[%s1 + $0x318] sm:$0xf]
  %v238 = vld [vmem:[%s1 + $0x31c] sm:$0xf]
  %v239 = vld [vmem:[%s1 + $0x320] sm:$0xf]
  %v240 = vld [vmem:[%s1 + $0x324] sm:$0xf]
  %v241 = vld [vmem:[%s1 + $0x328] sm:$0xf]
  %v242 = vld [vmem:[%s1 + $0x32c] sm:$0xf]
  %v243 = vld [vmem:[%s1 + $0x330] sm:$0xf]
  %v244 = vld [vmem:[%s1 + $0x334] sm:$0xf]
  %v245 = vld [vmem:[%s1 + $0x338] sm:$0xf]
  %v246 = vld [vmem:[%s1 + $0x33c] sm:$0xf]
  %v247 = vld [vmem:[%s1 + $0x340] sm:$0xf]
  %v248 = vld [vmem:[%s1 + $0x344] sm:$0xf]
  %v249 = vld [vmem:[%s1 + $0x348] sm:$0xf]
  %v250 = vld [vmem:[%s1 + $0x34c] sm:$0xf]
  %v251 = vld [vmem:[%s1 + $0x350] sm:$0xf]
  %v252 = vld [vmem:[%s1 + $0x354] sm:$0xf]
  %v253 = vld [vmem:[%s1 + $0x358] sm:$0xf]
  %v254 = vld [vmem:[%s1 + $0x35c] sm:$0xf]
  %v255 = vld [vmem:[%s1 + $0x360] sm:$0xf]
  %v256 = vld [vmem:[%s1 + $0x364] sm:$0xf]
  %v257 = vld [vmem:[%s1 + $0x368] sm:$0xf]
  %v258 = vld [vmem:[%s1 + $0x36c] sm:$0xf]
  %v259 = vld [vmem:[%s1 + $0x370] sm:$0xf]
  %v260 = vld [vmem:[%s1 + $0x374] sm:$0xf]
  %v261 = vld [vmem:[%s1 + $0x378] sm:$0xf]
  %v262 = vld [vmem:[%s1 + $0x37c] sm:$0xf]
  %v263 = vld [vmem:[%s1 + $0x380] sm:$0xf]
  %v264 = vld [vmem:[%s1 + $0x384] sm:$0xf]
  %v265 = vld [vmem:[%s1 + $0x388] sm:$0xf]
  %v266 = vld [vmem:[%s1 + $0x38c] sm:$0xf]
  %v267 = vld [vmem:[%s1 + $0x390] sm:$0xf]
  %v268 = vld [vmem:[%s1 + $0x394] sm:$0xf]
  %v269 = vld [vmem:[%s1 + $0x398] sm:$0xf]
  %v270 = vld [vmem:[%s1 + $0x39c] sm:$0xf]
  %v271 = vld [vmem:[%s1 + $0x3a0] sm:$0xf]
  %v272 = vld [vmem:[%s1 + $0x3a4] sm:$0xf]
  %v273 = vld [vmem:[%s1 + $0x3a8] sm:$0xf]
  %v274 = vld [vmem:[%s1 + $0x3ac] sm:$0xf]
  %v275 = vld [vmem:[%s1 + $0x3b0] sm:$0xf]
  %v276 = vld [vmem:[%s1 + $0x3b4] sm:$0xf]
  %v277 = vld [vmem:[%s1 + $0x3b8] sm:$0xf]
  %v278 = vld [vmem:[%s1 + $0x3bc] sm:$0xf]
  %v279 = vld [vmem:[%s1 + $0x3c0] sm:$0xf]
  %v280 = vld [vmem:[%s1 + $0x3c4] sm:$0xf]
  %v281 = vld [vmem:[%s1 + $0x3c8] sm:$0xf]
  %v282 = vld [vmem:[%s1 + $0x3cc] sm:$0xf]
  %v283 = vld [vmem:[%s1 + $0x3d0] sm:$0xf]
  %v284 = vld [vmem:[%s1 + $0x3d4] sm:$0xf]
  %v285 = vld [vmem:[%s1 + $0x3d8] sm:$0xf]
  %v286 = vld [vmem:[%s1 + $0x3dc] sm:$0xf]
  %v287 = vld [vmem:[%s1 + $0x3e0] sm:$0xf]
  %v288 = vld [vmem:[%s1 + $0x3e4] sm:$0xf]
  %v289 = vld [vmem:[%s1 + $0x3e8] sm:$0xf]
  %v290 = vld [vmem:[%s1 + $0x3ec] sm:$0xf]
  %v291 = vld [vmem:[%s1 + $0x3f0] sm:$0xf]
  %v292 = vld [vmem:[%s1 + $0x3f4] sm:$0xf]
  %v293 = vld [vmem:[%s1 + $0x3f8] sm:$0xf]
  %v294 = vld [vmem:[%s1 + $0x3fc] sm:$0xf]
  %v295 = vld [vmem:[%s2] sm:$0x1]
  %v297 = vlaneseq
  %v298 = vshrl.u32 %v297, 7
  %v299 = vsub.s32 0, %v298
  %v300 = vrot.slane %v295, %v299
  %v326 = vunpack.c.l.b16 %v15
  %v327 = vunpack.c.h.b16 %v15
  %v328 = vunpack.c.l.b16 %v16
  %v329 = vunpack.c.h.b16 %v16
  %v330 = vunpack.c.l.b16 %v17
  %v331 = vunpack.c.h.b16 %v17
  %v332 = vunpack.c.l.b16 %v18
  %v333 = vunpack.c.h.b16 %v18
  %v334 = vunpack.c.l.b16 %v19
  %v335 = vunpack.c.h.b16 %v19
  %v336 = vunpack.c.l.b16 %v20
  %v337 = vunpack.c.h.b16 %v20
  %v338 = vunpack.c.l.b16 %v21
  %v339 = vunpack.c.h.b16 %v21
  %v340 = vunpack.c.l.b16 %v22
  %v341 = vunpack.c.h.b16 %v22
  %v342 = vunpack.c.l.b16 %v23
  %v343 = vunpack.c.h.b16 %v23
  %v344 = vunpack.c.l.b16 %v24
  %v345 = vunpack.c.h.b16 %v24
  %v346 = vunpack.c.l.b16 %v25
  %v347 = vunpack.c.h.b16 %v25
  %v348 = vunpack.c.l.b16 %v26
  %v349 = vunpack.c.h.b16 %v26
  %v350 = vunpack.c.l.b16 %v27
  %v351 = vunpack.c.h.b16 %v27
  %v352 = vunpack.c.l.b16 %v28
  %v353 = vunpack.c.h.b16 %v28
  %v354 = vunpack.c.l.b16 %v29
  %v355 = vunpack.c.h.b16 %v29
  %v356 = vunpack.c.l.b16 %v30
  %v357 = vunpack.c.h.b16 %v30
  %v358 = vunpack.c.l.b16 %v31
  %v359 = vunpack.c.h.b16 %v31
  %v360 = vunpack.c.l.b16 %v32
  %v361 = vunpack.c.h.b16 %v32
  %v362 = vunpack.c.l.b16 %v33
  %v363 = vunpack.c.h.b16 %v33
  %v364 = vunpack.c.l.b16 %v34
  %v365 = vunpack.c.h.b16 %v34
  %v366 = vunpack.c.l.b16 %v35
  %v367 = vunpack.c.h.b16 %v35
  %v368 = vunpack.c.l.b16 %v36
  %v369 = vunpack.c.h.b16 %v36
  %v370 = vunpack.c.l.b16 %v37
  %v371 = vunpack.c.h.b16 %v37
  %v372 = vunpack.c.l.b16 %v38
  %v373 = vunpack.c.h.b16 %v38
  %v374 = vpack.c.b16 %v342, %v326
  %v375 = vpack.c.b16 %v343, %v327
  %v376 = vpack.c.b16 %v344, %v328
  %v377 = vpack.c.b16 %v345, %v329
  %v378 = vpack.c.b16 %v346, %v330
  %v379 = vpack.c.b16 %v347, %v331
  %v380 = vpack.c.b16 %v348, %v332
  %v381 = vpack.c.b16 %v349, %v333
  %v382 = vpack.c.b16 %v350, %v334
  %v383 = vpack.c.b16 %v351, %v335
  %v384 = vpack.c.b16 %v352, %v336
  %v385 = vpack.c.b16 %v353, %v337
  %v386 = vpack.c.b16 %v354, %v338
  %v387 = vpack.c.b16 %v355, %v339
  %v388 = vpack.c.b16 %v356, %v340
  %v389 = vpack.c.b16 %v357, %v341
  %v390 = vpack.c.b16 %v358, %v358
  %v391 = vpack.c.b16 %v359, %v359
  %v392 = vpack.c.b16 %v360, %v360
  %v393 = vpack.c.b16 %v361, %v361
  %v394 = vpack.c.b16 %v362, %v362
  %v395 = vpack.c.b16 %v363, %v363
  %v396 = vpack.c.b16 %v364, %v364
  %v397 = vpack.c.b16 %v365, %v365
  %v398 = vpack.c.b16 %v366, %v366
  %v399 = vpack.c.b16 %v367, %v367
  %v400 = vpack.c.b16 %v368, %v368
  %v401 = vpack.c.b16 %v369, %v369
  %v402 = vpack.c.b16 %v370, %v370
  %v403 = vpack.c.b16 %v371, %v371
  %v404 = vpack.c.b16 %v372, %v372
  %v405 = vpack.c.b16 %v373, %v373
  %v694 = vunpack.c.l.b16 %v39
  %v695 = vunpack.c.l.b16 %v40
  %v696 = vunpack.c.l.b16 %v41
  %v697 = vunpack.c.l.b16 %v42
  %v698 = vunpack.c.l.b16 %v43
  %v699 = vunpack.c.l.b16 %v44
  %v700 = vunpack.c.l.b16 %v45
  %v701 = vunpack.c.l.b16 %v46
  %v702 = vunpack.c.l.b16 %v47
  %v703 = vunpack.c.l.b16 %v48
  %v704 = vunpack.c.l.b16 %v49
  %v705 = vunpack.c.l.b16 %v50
  %v706 = vunpack.c.l.b16 %v51
  %v707 = vunpack.c.l.b16 %v52
  %v708 = vunpack.c.l.b16 %v53
  %v709 = vunpack.c.l.b16 %v54
  %v710 = vunpack.c.l.b16 %v55
  %v711 = vunpack.c.l.b16 %v56
  %v712 = vunpack.c.l.b16 %v57
  %v713 = vunpack.c.l.b16 %v58
  %v714 = vunpack.c.l.b16 %v59
  %v715 = vunpack.c.l.b16 %v60
  %v716 = vunpack.c.l.b16 %v61
  %v717 = vunpack.c.l.b16 %v62
  %v718 = vunpack.c.l.b16 %v63
  %v719 = vunpack.c.l.b16 %v64
  %v720 = vunpack.c.l.b16 %v65
  %v721 = vunpack.c.l.b16 %v66
  %v722 = vunpack.c.l.b16 %v67
  %v723 = vunpack.c.l.b16 %v68
  %v724 = vunpack.c.l.b16 %v69
  %v725 = vunpack.c.l.b16 %v70
  %v726 = vunpack.c.l.b16 %v71
  %v727 = vunpack.c.l.b16 %v72
  %v728 = vunpack.c.l.b16 %v73
  %v729 = vunpack.c.l.b16 %v74
  %v730 = vunpack.c.l.b16 %v75
  %v731 = vunpack.c.l.b16 %v76
  %v732 = vunpack.c.l.b16 %v77
  %v733 = vunpack.c.l.b16 %v78
  %v734 = vunpack.c.l.b16 %v79
  %v735 = vunpack.c.l.b16 %v80
  %v736 = vunpack.c.l.b16 %v81
  %v737 = vunpack.c.l.b16 %v82
  %v738 = vunpack.c.l.b16 %v83
  %v739 = vunpack.c.l.b16 %v84
  %v740 = vunpack.c.l.b16 %v85
  %v741 = vunpack.c.l.b16 %v86
  %v742 = vunpack.c.l.b16 %v87
  %v743 = vunpack.c.l.b16 %v88
  %v744 = vunpack.c.l.b16 %v89
  %v745 = vunpack.c.l.b16 %v90
  %v746 = vunpack.c.l.b16 %v91
  %v747 = vunpack.c.l.b16 %v92
  %v748 = vunpack.c.l.b16 %v93
  %v749 = vunpack.c.l.b16 %v94
  %v750 = vunpack.c.l.b16 %v95
  %v751 = vunpack.c.l.b16 %v96
  %v752 = vunpack.c.l.b16 %v97
  %v753 = vunpack.c.l.b16 %v98
  %v754 = vunpack.c.l.b16 %v99
  %v755 = vunpack.c.l.b16 %v100
  %v756 = vunpack.c.l.b16 %v101
  %v757 = vunpack.c.l.b16 %v102
  %v758 = vunpack.c.l.b16 %v103
  %v759 = vunpack.c.l.b16 %v104
  %v760 = vunpack.c.l.b16 %v105
  %v761 = vunpack.c.l.b16 %v106
  %v762 = vunpack.c.l.b16 %v107
  %v763 = vunpack.c.l.b16 %v108
  %v764 = vunpack.c.l.b16 %v109
  %v765 = vunpack.c.l.b16 %v110
  %v766 = vunpack.c.l.b16 %v111
  %v767 = vunpack.c.l.b16 %v112
  %v768 = vunpack.c.l.b16 %v113
  %v769 = vunpack.c.l.b16 %v114
  %v770 = vunpack.c.l.b16 %v115
  %v771 = vunpack.c.l.b16 %v116
  %v772 = vunpack.c.l.b16 %v117
  %v773 = vunpack.c.l.b16 %v118
  %v774 = vunpack.c.l.b16 %v119
  %v775 = vunpack.c.l.b16 %v120
  %v776 = vunpack.c.l.b16 %v121
  %v777 = vunpack.c.l.b16 %v122
  %v778 = vunpack.c.l.b16 %v123
  %v779 = vunpack.c.l.b16 %v124
  %v780 = vunpack.c.l.b16 %v125
  %v781 = vunpack.c.l.b16 %v126
  %v782 = vunpack.c.l.b16 %v127
  %v783 = vunpack.c.l.b16 %v128
  %v784 = vunpack.c.l.b16 %v129
  %v785 = vunpack.c.l.b16 %v130
  %v786 = vunpack.c.l.b16 %v131
  %v787 = vunpack.c.l.b16 %v132
  %v788 = vunpack.c.l.b16 %v133
  %v789 = vunpack.c.l.b16 %v134
  %v790 = vunpack.c.l.b16 %v135
  %v791 = vunpack.c.l.b16 %v136
  %v792 = vunpack.c.l.b16 %v137
  %v793 = vunpack.c.l.b16 %v138
  %v794 = vunpack.c.l.b16 %v139
  %v795 = vunpack.c.l.b16 %v140
  %v796 = vunpack.c.l.b16 %v141
  %v797 = vunpack.c.l.b16 %v142
  %v798 = vunpack.c.l.b16 %v143
  %v799 = vunpack.c.l.b16 %v144
  %v800 = vunpack.c.l.b16 %v145
  %v801 = vunpack.c.l.b16 %v146
  %v802 = vunpack.c.l.b16 %v147
  %v803 = vunpack.c.l.b16 %v148
  %v804 = vunpack.c.l.b16 %v149
  %v805 = vunpack.c.l.b16 %v150
  %v806 = vunpack.c.l.b16 %v151
  %v807 = vunpack.c.l.b16 %v152
  %v808 = vunpack.c.l.b16 %v153
  %v809 = vunpack.c.l.b16 %v154
  %v810 = vunpack.c.l.b16 %v155
  %v811 = vunpack.c.l.b16 %v156
  %v812 = vunpack.c.l.b16 %v157
  %v813 = vunpack.c.l.b16 %v158
  %v814 = vunpack.c.l.b16 %v159
  %v815 = vunpack.c.l.b16 %v160
  %v816 = vunpack.c.l.b16 %v161
  %v817 = vunpack.c.l.b16 %v162
  %v818 = vunpack.c.l.b16 %v163
  %v819 = vunpack.c.l.b16 %v164
  %v820 = vunpack.c.l.b16 %v165
  %v821 = vunpack.c.l.b16 %v166
  %v822 = vunpack.c.l.b16 %v167
  %v823 = vunpack.c.l.b16 %v168
  %v824 = vunpack.c.l.b16 %v169
  %v825 = vunpack.c.l.b16 %v170
  %v826 = vunpack.c.l.b16 %v171
  %v827 = vunpack.c.l.b16 %v172
  %v828 = vunpack.c.l.b16 %v173
  %v829 = vunpack.c.l.b16 %v174
  %v830 = vunpack.c.l.b16 %v175
  %v831 = vunpack.c.l.b16 %v176
  %v832 = vunpack.c.l.b16 %v177
  %v833 = vunpack.c.l.b16 %v178
  %v834 = vunpack.c.l.b16 %v179
  %v835 = vunpack.c.l.b16 %v180
  %v836 = vunpack.c.l.b16 %v181
  %v837 = vunpack.c.l.b16 %v182
  %v838 = vunpack.c.l.b16 %v183
  %v839 = vunpack.c.l.b16 %v184
  %v840 = vunpack.c.l.b16 %v185
  %v841 = vunpack.c.l.b16 %v186
  %v842 = vunpack.c.l.b16 %v187
  %v843 = vunpack.c.l.b16 %v188
  %v844 = vunpack.c.l.b16 %v189
  %v845 = vunpack.c.l.b16 %v190
  %v846 = vunpack.c.l.b16 %v191
  %v847 = vunpack.c.l.b16 %v192
  %v848 = vunpack.c.l.b16 %v193
  %v849 = vunpack.c.l.b16 %v194
  %v850 = vunpack.c.l.b16 %v195
  %v851 = vunpack.c.l.b16 %v196
  %v852 = vunpack.c.l.b16 %v197
  %v853 = vunpack.c.l.b16 %v198
  %v854 = vunpack.c.l.b16 %v199
  %v855 = vunpack.c.l.b16 %v200
  %v856 = vunpack.c.l.b16 %v201
  %v857 = vunpack.c.l.b16 %v202
  %v858 = vunpack.c.l.b16 %v203
  %v859 = vunpack.c.l.b16 %v204
  %v860 = vunpack.c.l.b16 %v205
  %v861 = vunpack.c.l.b16 %v206
  %v862 = vunpack.c.l.b16 %v207
  %v863 = vunpack.c.l.b16 %v208
  %v864 = vunpack.c.l.b16 %v209
  %v865 = vunpack.c.l.b16 %v210
  %v866 = vunpack.c.l.b16 %v211
  %v867 = vunpack.c.l.b16 %v212
  %v868 = vunpack.c.l.b16 %v213
  %v869 = vunpack.c.l.b16 %v214
  %v870 = vunpack.c.l.b16 %v215
  %v871 = vunpack.c.l.b16 %v216
  %v872 = vunpack.c.l.b16 %v217
  %v873 = vunpack.c.l.b16 %v218
  %v874 = vunpack.c.l.b16 %v219
  %v875 = vunpack.c.l.b16 %v220
  %v876 = vunpack.c.l.b16 %v221
  %v877 = vunpack.c.l.b16 %v222
  %v878 = vunpack.c.l.b16 %v223
  %v879 = vunpack.c.l.b16 %v224
  %v880 = vunpack.c.l.b16 %v225
  %v881 = vunpack.c.l.b16 %v226
  %v882 = vunpack.c.l.b16 %v227
  %v883 = vunpack.c.l.b16 %v228
  %v884 = vunpack.c.l.b16 %v229
  %v885 = vunpack.c.l.b16 %v230
  %v886 = vunpack.c.l.b16 %v231
  %v887 = vunpack.c.l.b16 %v232
  %v888 = vunpack.c.l.b16 %v233
  %v889 = vunpack.c.l.b16 %v234
  %v890 = vunpack.c.l.b16 %v235
  %v891 = vunpack.c.l.b16 %v236
  %v892 = vunpack.c.l.b16 %v237
  %v893 = vunpack.c.l.b16 %v238
  %v894 = vunpack.c.l.b16 %v239
  %v895 = vunpack.c.l.b16 %v240
  %v896 = vunpack.c.l.b16 %v241
  %v897 = vunpack.c.l.b16 %v242
  %v898 = vunpack.c.l.b16 %v243
  %v899 = vunpack.c.l.b16 %v244
  %v900 = vunpack.c.l.b16 %v245
  %v901 = vunpack.c.l.b16 %v246
  %v902 = vunpack.c.l.b16 %v247
  %v903 = vunpack.c.l.b16 %v248
  %v904 = vunpack.c.l.b16 %v249
  %v905 = vunpack.c.l.b16 %v250
  %v906 = vunpack.c.l.b16 %v251
  %v907 = vunpack.c.l.b16 %v252
  %v908 = vunpack.c.l.b16 %v253
  %v909 = vunpack.c.l.b16 %v254
  %v910 = vunpack.c.l.b16 %v255
  %v911 = vunpack.c.l.b16 %v256
  %v912 = vunpack.c.l.b16 %v257
  %v913 = vunpack.c.l.b16 %v258
  %v914 = vunpack.c.l.b16 %v259
  %v915 = vunpack.c.l.b16 %v260
  %v916 = vunpack.c.l.b16 %v261
  %v917 = vunpack.c.l.b16 %v262
  %v918 = vunpack.c.l.b16 %v263
  %v919 = vunpack.c.l.b16 %v264
  %v920 = vunpack.c.l.b16 %v265
  %v921 = vunpack.c.l.b16 %v266
  %v922 = vunpack.c.l.b16 %v267
  %v923 = vunpack.c.l.b16 %v268
  %v924 = vunpack.c.l.b16 %v269
  %v925 = vunpack.c.l.b16 %v270
  %v926 = vunpack.c.l.b16 %v271
  %v927 = vunpack.c.l.b16 %v272
  %v928 = vunpack.c.l.b16 %v273
  %v929 = vunpack.c.l.b16 %v274
  %v930 = vunpack.c.l.b16 %v275
  %v931 = vunpack.c.l.b16 %v276
  %v932 = vunpack.c.l.b16 %v277
  %v933 = vunpack.c.l.b16 %v278
  %v934 = vunpack.c.l.b16 %v279
  %v935 = vunpack.c.l.b16 %v280
  %v936 = vunpack.c.l.b16 %v281
  %v937 = vunpack.c.l.b16 %v282
  %v938 = vunpack.c.l.b16 %v283
  %v939 = vunpack.c.l.b16 %v284
  %v940 = vunpack.c.l.b16 %v285
  %v941 = vunpack.c.l.b16 %v286
  %v942 = vunpack.c.l.b16 %v287
  %v943 = vunpack.c.l.b16 %v288
  %v944 = vunpack.c.l.b16 %v289
  %v945 = vunpack.c.l.b16 %v290
  %v946 = vunpack.c.l.b16 %v291
  %v947 = vunpack.c.l.b16 %v292
  %v948 = vunpack.c.l.b16 %v293
  %v949 = vunpack.c.l.b16 %v294
  %v950 = vpack.c.b16 %v695, %v694
  %v951 = vpack.c.b16 %v697, %v696
  %v952 = vpack.c.b16 %v699, %v698
  %v953 = vpack.c.b16 %v701, %v700
  %v954 = vpack.c.b16 %v703, %v702
  %v955 = vpack.c.b16 %v705, %v704
  %v956 = vpack.c.b16 %v707, %v706
  %v957 = vpack.c.b16 %v709, %v708
  %v958 = vpack.c.b16 %v711, %v710
  %v959 = vpack.c.b16 %v713, %v712
  %v960 = vpack.c.b16 %v715, %v714
  %v961 = vpack.c.b16 %v717, %v716
  %v962 = vpack.c.b16 %v719, %v718
  %v963 = vpack.c.b16 %v721, %v720
  %v964 = vpack.c.b16 %v723, %v722
  %v965 = vpack.c.b16 %v725, %v724
  %v966 = vpack.c.b16 %v727, %v726
  %v967 = vpack.c.b16 %v729, %v728
  %v968 = vpack.c.b16 %v731, %v730
  %v969 = vpack.c.b16 %v733, %v732
  %v970 = vpack.c.b16 %v735, %v734
  %v971 = vpack.c.b16 %v737, %v736
  %v972 = vpack.c.b16 %v739, %v738
  %v973 = vpack.c.b16 %v741, %v740
  %v974 = vpack.c.b16 %v743, %v742
  %v975 = vpack.c.b16 %v745, %v744
  %v976 = vpack.c.b16 %v747, %v746
  %v977 = vpack.c.b16 %v749, %v748
  %v978 = vpack.c.b16 %v751, %v750
  %v979 = vpack.c.b16 %v753, %v752
  %v980 = vpack.c.b16 %v755, %v754
  %v981 = vpack.c.b16 %v757, %v756
  %v982 = vpack.c.b16 %v759, %v758
  %v983 = vpack.c.b16 %v761, %v760
  %v984 = vpack.c.b16 %v763, %v762
  %v985 = vpack.c.b16 %v765, %v764
  %v986 = vpack.c.b16 %v767, %v766
  %v987 = vpack.c.b16 %v769, %v768
  %v988 = vpack.c.b16 %v771, %v770
  %v989 = vpack.c.b16 %v773, %v772
  %v990 = vpack.c.b16 %v775, %v774
  %v991 = vpack.c.b16 %v777, %v776
  %v992 = vpack.c.b16 %v779, %v778
  %v993 = vpack.c.b16 %v781, %v780
  %v994 = vpack.c.b16 %v783, %v782
  %v995 = vpack.c.b16 %v785, %v784
  %v996 = vpack.c.b16 %v787, %v786
  %v997 = vpack.c.b16 %v789, %v788
  %v998 = vpack.c.b16 %v791, %v790
  %v999 = vpack.c.b16 %v793, %v792
  %v1000 = vpack.c.b16 %v795, %v794
  %v1001 = vpack.c.b16 %v797, %v796
  %v1002 = vpack.c.b16 %v799, %v798
  %v1003 = vpack.c.b16 %v801, %v800
  %v1004 = vpack.c.b16 %v803, %v802
  %v1005 = vpack.c.b16 %v805, %v804
  %v1006 = vpack.c.b16 %v807, %v806
  %v1007 = vpack.c.b16 %v809, %v808
  %v1008 = vpack.c.b16 %v811, %v810
  %v1009 = vpack.c.b16 %v813, %v812
  %v1010 = vpack.c.b16 %v815, %v814
  %v1011 = vpack.c.b16 %v817, %v816
  %v1012 = vpack.c.b16 %v819, %v818
  %v1013 = vpack.c.b16 %v821, %v820
  %v1014 = vpack.c.b16 %v823, %v822
  %v1015 = vpack.c.b16 %v825, %v824
  %v1016 = vpack.c.b16 %v827, %v826
  %v1017 = vpack.c.b16 %v829, %v828
  %v1018 = vpack.c.b16 %v831, %v830
  %v1019 = vpack.c.b16 %v833, %v832
  %v1020 = vpack.c.b16 %v835, %v834
  %v1021 = vpack.c.b16 %v837, %v836
  %v1022 = vpack.c.b16 %v839, %v838
  %v1023 = vpack.c.b16 %v841, %v840
  %v1024 = vpack.c.b16 %v843, %v842
  %v1025 = vpack.c.b16 %v845, %v844
  %v1026 = vpack.c.b16 %v847, %v846
  %v1027 = vpack.c.b16 %v849, %v848
  %v1028 = vpack.c.b16 %v851, %v850
  %v1029 = vpack.c.b16 %v853, %v852
  %v1030 = vpack.c.b16 %v855, %v854
  %v1031 = vpack.c.b16 %v857, %v856
  %v1032 = vpack.c.b16 %v859, %v858
  %v1033 = vpack.c.b16 %v861, %v860
  %v1034 = vpack.c.b16 %v863, %v862
  %v1035 = vpack.c.b16 %v865, %v864
  %v1036 = vpack.c.b16 %v867, %v866
  %v1037 = vpack.c.b16 %v869, %v868
  %v1038 = vpack.c.b16 %v871, %v870
  %v1039 = vpack.c.b16 %v873, %v872
  %v1040 = vpack.c.b16 %v875, %v874
  %v1041 = vpack.c.b16 %v877, %v876
  %v1042 = vpack.c.b16 %v879, %v878
  %v1043 = vpack.c.b16 %v881, %v880
  %v1044 = vpack.c.b16 %v883, %v882
  %v1045 = vpack.c.b16 %v885, %v884
  %v1046 = vpack.c.b16 %v887, %v886
  %v1047 = vpack.c.b16 %v889, %v888
  %v1048 = vpack.c.b16 %v891, %v890
  %v1049 = vpack.c.b16 %v893, %v892
  %v1050 = vpack.c.b16 %v895, %v894
  %v1051 = vpack.c.b16 %v897, %v896
  %v1052 = vpack.c.b16 %v899, %v898
  %v1053 = vpack.c.b16 %v901, %v900
  %v1054 = vpack.c.b16 %v903, %v902
  %v1055 = vpack.c.b16 %v905, %v904
  %v1056 = vpack.c.b16 %v907, %v906
  %v1057 = vpack.c.b16 %v909, %v908
  %v1058 = vpack.c.b16 %v911, %v910
  %v1059 = vpack.c.b16 %v913, %v912
  %v1060 = vpack.c.b16 %v915, %v914
  %v1061 = vpack.c.b16 %v917, %v916
  %v1062 = vpack.c.b16 %v919, %v918
  %v1063 = vpack.c.b16 %v921, %v920
  %v1064 = vpack.c.b16 %v923, %v922
  %v1065 = vpack.c.b16 %v925, %v924
  %v1066 = vpack.c.b16 %v927, %v926
  %v1067 = vpack.c.b16 %v929, %v928
  %v1068 = vpack.c.b16 %v931, %v930
  %v1069 = vpack.c.b16 %v933, %v932
  %v1070 = vpack.c.b16 %v935, %v934
  %v1071 = vpack.c.b16 %v937, %v936
  %v1072 = vpack.c.b16 %v939, %v938
  %v1073 = vpack.c.b16 %v941, %v940
  %v1074 = vpack.c.b16 %v943, %v942
  %v1075 = vpack.c.b16 %v945, %v944
  %v1076 = vpack.c.b16 %v947, %v946
  %v1077 = vpack.c.b16 %v949, %v948
  %1206 = vmatprep.subr.bf16.mxu0 0
  %1207 = vmatpush1.bf16.msra.mxu0 %v950
  %1208 = vmatprep.subr.bf16.mxu0 0
  %1209 = vmatpush1.bf16.msra.mxu0 %v951
  %1210 = vmatprep.subr.bf16.mxu0 0
  %1211 = vmatpush1.bf16.msra.mxu0 %v952
  %1212 = vmatprep.subr.bf16.mxu0 0
  %1213 = vmatpush1.bf16.msra.mxu0 %v953
  %1214 = vmatprep.subr.bf16.mxu0 0
  %1215 = vmatpush1.bf16.msra.mxu0 %v954
  %1216 = vmatprep.subr.bf16.mxu0 0
  %1217 = vmatpush1.bf16.msra.mxu0 %v955
  %1218 = vmatprep.subr.bf16.mxu0 0
  %1219 = vmatpush1.bf16.msra.mxu0 %v956
  %1220 = vmatprep.subr.bf16.mxu0 0
  %1221 = vmatpush1.bf16.msra.mxu0 %v957
  %1222 = vmatprep.subr.bf16.mxu0 0
  %1223 = vmatpush1.bf16.msra.mxu0 %v958
  %1224 = vmatprep.subr.bf16.mxu0 0
  %1225 = vmatpush1.bf16.msra.mxu0 %v959
  %1226 = vmatprep.subr.bf16.mxu0 0
  %1227 = vmatpush1.bf16.msra.mxu0 %v960
  %1228 = vmatprep.subr.bf16.mxu0 0
  %1229 = vmatpush1.bf16.msra.mxu0 %v961
  %1230 = vmatprep.subr.bf16.mxu0 0
  %1231 = vmatpush1.bf16.msra.mxu0 %v962
  %1232 = vmatprep.subr.bf16.mxu0 0
  %1233 = vmatpush1.bf16.msra.mxu0 %v963
  %1234 = vmatprep.subr.bf16.mxu0 0
  %1235 = vmatpush1.bf16.msra.mxu0 %v964
  %1236 = vmatprep.subr.bf16.mxu0 0
  %1237 = vmatpush1.bf16.msra.mxu0 %v965
  %1238 = vmatprep.mubr.bf16.mxu0 %v375
  %1239 = vmatmul.mubr.bf16.gmra.mrb[0].mxu0 %v374
  %v1240 = vpop.f32.mrb[0].mxu0
  %v1241 = vadd.f32 %v300, %v1240
  %v1242 = vpop.f32.mrb[0].mxu0
  %v1243 = vpop.f32.mrb[0].mxu0
  %v1244 = vadd.f32 %v300, %v1243
  %v1245 = vpop.f32.mrb[0].mxu0
  %1246 = vmatprep.mubr.bf16.mxu0 %v391
  %1247 = vmatmul.mubr.bf16.gmra.mrb[0].mxu0 %v390
  %v1248 = vpop.f32.mrb[0].mxu0
  %v1249 = vadd.f32 %v300, %v1248
  %v1250 = vpop.f32.mrb[0].mxu0
  %v1251 = vpop.f32.mrb[0].mxu0
  %v1252 = vpop.f32.mrb[0].mxu0
  %1253 = vdwg.mxu0
  %1254 = vmatprep.subr.bf16.mxu0 0
  %1255 = vmatpush1.bf16.msra.mxu0 %v966
  %1256 = vmatprep.subr.bf16.mxu0 0
  %1257 = vmatpush1.bf16.msra.mxu0 %v967
  %1258 = vmatprep.subr.bf16.mxu0 0
  %1259 = vmatpush1.bf16.msra.mxu0 %v968
  %1260 = vmatprep.subr.bf16.mxu0 0
  %1261 = vmatpush1.bf16.msra.mxu0 %v969
  %1262 = vmatprep.subr.bf16.mxu0 0
  %1263 = vmatpush1.bf16.msra.mxu0 %v970
  %1264 = vmatprep.subr.bf16.mxu0 0
  %1265 = vmatpush1.bf16.msra.mxu0 %v971
  %1266 = vmatprep.subr.bf16.mxu0 0
  %1267 = vmatpush1.bf16.msra.mxu0 %v972
  %1268 = vmatprep.subr.bf16.mxu0 0
  %1269 = vmatpush1.bf16.msra.mxu0 %v973
  %1270 = vmatprep.subr.bf16.mxu0 0
  %1271 = vmatpush1.bf16.msra.mxu0 %v974
  %1272 = vmatprep.subr.bf16.mxu0 0
  %1273 = vmatpush1.bf16.msra.mxu0 %v975
  %1274 = vmatprep.subr.bf16.mxu0 0
  %1275 = vmatpush1.bf16.msra.mxu0 %v976
  %1276 = vmatprep.subr.bf16.mxu0 0
  %1277 = vmatpush1.bf16.msra.mxu0 %v977
  %1278 = vmatprep.subr.bf16.mxu0 0
  %1279 = vmatpush1.bf16.msra.mxu0 %v978
  %1280 = vmatprep.subr.bf16.mxu0 0
  %1281 = vmatpush1.bf16.msra.mxu0 %v979
  %1282 = vmatprep.subr.bf16.mxu0 0
  %1283 = vmatpush1.bf16.msra.mxu0 %v980
  %1284 = vmatprep.subr.bf16.mxu0 0
  %1285 = vmatpush1.bf16.msra.mxu0 %v981
  %1286 = vmatprep.mubr.bf16.mxu0 %v377
  %1287 = vmatmul.mubr.bf16.gmra.mrb[0].mxu0 %v376
  %v1288 = vpop.f32.mrb[0].mxu0
  %v1289 = vadd.f32 %v1241, %v1288
  %v1290 = vpop.f32.mrb[0].mxu0
  %v1291 = vpop.f32.mrb[0].mxu0
  %v1292 = vadd.f32 %v1244, %v1291
  %v1293 = vpop.f32.mrb[0].mxu0
  %1294 = vmatprep.mubr.bf16.mxu0 %v393
  %1295 = vmatmul.mubr.bf16.gmra.mrb[0].mxu0 %v392
  %v1296 = vpop.f32.mrb[0].mxu0
  %v1297 = vadd.f32 %v1249, %v1296
  %v1298 = vpop.f32.mrb[0].mxu0
  %v1299 = vpop.f32.mrb[0].mxu0
  %v1300 = vpop.f32.mrb[0].mxu0
  %1301 = vdwg.mxu0
  %1302 = vmatprep.subr.bf16.mxu0 0
  %1303 = vmatpush1.bf16.msra.mxu0 %v982
  %1304 = vmatprep.subr.bf16.mxu0 0
  %1305 = vmatpush1.bf16.msra.mxu0 %v983
  %1306 = vmatprep.subr.bf16.mxu0 0
  %1307 = vmatpush1.bf16.msra.mxu0 %v984
  %1308 = vmatprep.subr.bf16.mxu0 0
  %1309 = vmatpush1.bf16.msra.mxu0 %v985
  %1310 = vmatprep.subr.bf16.mxu0 0
  %1311 = vmatpush1.bf16.msra.mxu0 %v986
  %1312 = vmatprep.subr.bf16.mxu0 0
  %1313 = vmatpush1.bf16.msra.mxu0 %v987
  %1314 = vmatprep.subr.bf16.mxu0 0
  %1315 = vmatpush1.bf16.msra.mxu0 %v988
  %1316 = vmatprep.subr.bf16.mxu0 0
  %1317 = vmatpush1.bf16.msra.mxu0 %v989
  %1318 = vmatprep.subr.bf16.mxu0 0
  %1319 = vmatpush1.bf16.msra.mxu0 %v990
  %1320 = vmatprep.subr.bf16.mxu0 0
  %1321 = vmatpush1.bf16.msra.mxu0 %v991
  %1322 = vmatprep.subr.bf16.mxu0 0
  %1323 = vmatpush1.bf16.msra.mxu0 %v992
  %1324 = vmatprep.subr.bf16.mxu0 0
  %1325 = vmatpush1.bf16.msra.mxu0 %v993
  %1326 = vmatprep.subr.bf16.mxu0 0
  %1327 = vmatpush1.bf16.msra.mxu0 %v994
  %1328 = vmatprep.subr.bf16.mxu0 0
  %1329 = vmatpush1.bf16.msra.mxu0 %v995
  %1330 = vmatprep.subr.bf16.mxu0 0
  %1331 = vmatpush1.bf16.msra.mxu0 %v996
  %1332 = vmatprep.subr.bf16.mxu0 0
  %1333 = vmatpush1.bf16.msra.mxu0 %v997
  %1334 = vmatprep.mubr.bf16.mxu0 %v379
  %1335 = vmatmul.mubr.bf16.gmra.mrb[0].mxu0 %v378
  %v1336 = vpop.f32.mrb[0].mxu0
  %v1337 = vadd.f32 %v1289, %v1336
  %v1338 = vpop.f32.mrb[0].mxu0
  %v1339 = vpop.f32.mrb[0].mxu0
  %v1340 = vadd.f32 %v1292, %v1339
  %v1341 = vpop.f32.mrb[0].mxu0
  %1342 = vmatprep.mubr.bf16.mxu0 %v395
  %1343 = vmatmul.mubr.bf16.gmra.mrb[0].mxu0 %v394
  %v1344 = vpop.f32.mrb[0].mxu0
  %v1345 = vadd.f32 %v1297, %v1344
  %v1346 = vpop.f32.mrb[0].mxu0
  %v1347 = vpop.f32.mrb[0].mxu0
  %v1348 = vpop.f32.mrb[0].mxu0
  %1349 = vdwg.mxu0
  %1350 = vmatprep.subr.bf16.mxu0 0
  %1351 = vmatpush1.bf16.msra.mxu0 %v998
  %1352 = vmatprep.subr.bf16.mxu0 0
  %1353 = vmatpush1.bf16.msra.mxu0 %v999
  %1354 = vmatprep.subr.bf16.mxu0 0
  %1355 = vmatpush1.bf16.msra.mxu0 %v1000
  %1356 = vmatprep.subr.bf16.mxu0 0
  %1357 = vmatpush1.bf16.msra.mxu0 %v1001
  %1358 = vmatprep.subr.bf16.mxu0 0
  %1359 = vmatpush1.bf16.msra.mxu0 %v1002
  %1360 = vmatprep.subr.bf16.mxu0 0
  %1361 = vmatpush1.bf16.msra.mxu0 %v1003
  %1362 = vmatprep.subr.bf16.mxu0 0
  %1363 = vmatpush1.bf16.msra.mxu0 %v1004
  %1364 = vmatprep.subr.bf16.mxu0 0
  %1365 = vmatpush1.bf16.msra.mxu0 %v1005
  %1366 = vmatprep.subr.bf16.mxu0 0
  %1367 = vmatpush1.bf16.msra.mxu0 %v1006
  %1368 = vmatprep.subr.bf16.mxu0 0
  %1369 = vmatpush1.bf16.msra.mxu0 %v1007
  %1370 = vmatprep.subr.bf16.mxu0 0
  %1371 = vmatpush1.bf16.msra.mxu0 %v1008
  %1372 = vmatprep.subr.bf16.mxu0 0
  %1373 = vmatpush1.bf16.msra.mxu0 %v1009
  %1374 = vmatprep.subr.bf16.mxu0 0
  %1375 = vmatpush1.bf16.msra.mxu0 %v1010
  %1376 = vmatprep.subr.bf16.mxu0 0
  %1377 = vmatpush1.bf16.msra.mxu0 %v1011
  %1378 = vmatprep.subr.bf16.mxu0 0
  %1379 = vmatpush1.bf16.msra.mxu0 %v1012
  %1380 = vmatprep.subr.bf16.mxu0 0
  %1381 = vmatpush1.bf16.msra.mxu0 %v1013
  %1382 = vmatprep.mubr.bf16.mxu0 %v381
  %1383 = vmatmul.mubr.bf16.gmra.mrb[0].mxu0 %v380
  %v1384 = vpop.f32.mrb[0].mxu0
  %v1385 = vadd.f32 %v1337, %v1384
  %v1386 = vpop.f32.mrb[0].mxu0
  %v1387 = vpop.f32.mrb[0].mxu0
  %v1388 = vadd.f32 %v1340, %v1387
  %v1389 = vpop.f32.mrb[0].mxu0
  %1390 = vmatprep.mubr.bf16.mxu0 %v397
  %1391 = vmatmul.mubr.bf16.gmra.mrb[0].mxu0 %v396
  %v1392 = vpop.f32.mrb[0].mxu0
  %v1393 = vadd.f32 %v1345, %v1392
  %v1394 = vpop.f32.mrb[0].mxu0
  %v1395 = vpop.f32.mrb[0].mxu0
  %v1396 = vpop.f32.mrb[0].mxu0
  %1397 = vdwg.mxu0
  %1398 = vmatprep.subr.bf16.mxu0 0
  %1399 = vmatpush1.bf16.msra.mxu0 %v1014
  %1400 = vmatprep.subr.bf16.mxu0 0
  %1401 = vmatpush1.bf16.msra.mxu0 %v1015
  %1402 = vmatprep.subr.bf16.mxu0 0
  %1403 = vmatpush1.bf16.msra.mxu0 %v1016
  %1404 = vmatprep.subr.bf16.mxu0 0
  %1405 = vmatpush1.bf16.msra.mxu0 %v1017
  %1406 = vmatprep.subr.bf16.mxu0 0
  %1407 = vmatpush1.bf16.msra.mxu0 %v1018
  %1408 = vmatprep.subr.bf16.mxu0 0
  %1409 = vmatpush1.bf16.msra.mxu0 %v1019
  %1410 = vmatprep.subr.bf16.mxu0 0
  %1411 = vmatpush1.bf16.msra.mxu0 %v1020
  %1412 = vmatprep.subr.bf16.mxu0 0
  %1413 = vmatpush1.bf16.msra.mxu0 %v1021
  %1414 = vmatprep.subr.bf16.mxu0 0
  %1415 = vmatpush1.bf16.msra.mxu0 %v1022
  %1416 = vmatprep.subr.bf16.mxu0 0
  %1417 = vmatpush1.bf16.msra.mxu0 %v1023
  %1418 = vmatprep.subr.bf16.mxu0 0
  %1419 = vmatpush1.bf16.msra.mxu0 %v1024
  %1420 = vmatprep.subr.bf16.mxu0 0
  %1421 = vmatpush1.bf16.msra.mxu0 %v1025
  %1422 = vmatprep.subr.bf16.mxu0 0
  %1423 = vmatpush1.bf16.msra.mxu0 %v1026
  %1424 = vmatprep.subr.bf16.mxu0 0
  %1425 = vmatpush1.bf16.msra.mxu0 %v1027
  %1426 = vmatprep.subr.bf16.mxu0 0
  %1427 = vmatpush1.bf16.msra.mxu0 %v1028
  %1428 = vmatprep.subr.bf16.mxu0 0
  %1429 = vmatpush1.bf16.msra.mxu0 %v1029
  %1430 = vmatprep.mubr.bf16.mxu0 %v383
  %1431 = vmatmul.mubr.bf16.gmra.mrb[0].mxu0 %v382
  %v1432 = vpop.f32.mrb[0].mxu0
  %v1433 = vadd.f32 %v1385, %v1432
  %v1434 = vpop.f32.mrb[0].mxu0
  %v1435 = vpop.f32.mrb[0].mxu0
  %v1436 = vadd.f32 %v1388, %v1435
  %v1437 = vpop.f32.mrb[0].mxu0
  %1438 = vmatprep.mubr.bf16.mxu0 %v399
  %1439 = vmatmul.mubr.bf16.gmra.mrb[0].mxu0 %v398
  %v1440 = vpop.f32.mrb[0].mxu0
  %v1441 = vadd.f32 %v1393, %v1440
  %v1442 = vpop.f32.mrb[0].mxu0
  %v1443 = vpop.f32.mrb[0].mxu0
  %v1444 = vpop.f32.mrb[0].mxu0
  %1445 = vdwg.mxu0
  %1446 = vmatprep.subr.bf16.mxu0 0
  %1447 = vmatpush1.bf16.msra.mxu0 %v1030
  %1448 = vmatprep.subr.bf16.mxu0 0
  %1449 = vmatpush1.bf16.msra.mxu0 %v1031
  %1450 = vmatprep.subr.bf16.mxu0 0
  %1451 = vmatpush1.bf16.msra.mxu0 %v1032
  %1452 = vmatprep.subr.bf16.mxu0 0
  %1453 = vmatpush1.bf16.msra.mxu0 %v1033
  %1454 = vmatprep.subr.bf16.mxu0 0
  %1455 = vmatpush1.bf16.msra.mxu0 %v1034
  %1456 = vmatprep.subr.bf16.mxu0 0
  %1457 = vmatpush1.bf16.msra.mxu0 %v1035
  %1458 = vmatprep.subr.bf16.mxu0 0
  %1459 = vmatpush1.bf16.msra.mxu0 %v1036
  %1460 = vmatprep.subr.bf16.mxu0 0
  %1461 = vmatpush1.bf16.msra.mxu0 %v1037
  %1462 = vmatprep.subr.bf16.mxu0 0
  %1463 = vmatpush1.bf16.msra.mxu0 %v1038
  %1464 = vmatprep.subr.bf16.mxu0 0
  %1465 = vmatpush1.bf16.msra.mxu0 %v1039
  %1466 = vmatprep.subr.bf16.mxu0 0
  %1467 = vmatpush1.bf16.msra.mxu0 %v1040
  %1468 = vmatprep.subr.bf16.mxu0 0
  %1469 = vmatpush1.bf16.msra.mxu0 %v1041
  %1470 = vmatprep.subr.bf16.mxu0 0
  %1471 = vmatpush1.bf16.msra.mxu0 %v1042
  %1472 = vmatprep.subr.bf16.mxu0 0
  %1473 = vmatpush1.bf16.msra.mxu0 %v1043
  %1474 = vmatprep.subr.bf16.mxu0 0
  %1475 = vmatpush1.bf16.msra.mxu0 %v1044
  %1476 = vmatprep.subr.bf16.mxu0 0
  %1477 = vmatpush1.bf16.msra.mxu0 %v1045
  %1478 = vmatprep.mubr.bf16.mxu0 %v385
  %1479 = vmatmul.mubr.bf16.gmra.mrb[0].mxu0 %v384
  %v1480 = vpop.f32.mrb[0].mxu0
  %v1481 = vadd.f32 %v1433, %v1480
  %v1482 = vpop.f32.mrb[0].mxu0
  %v1483 = vpop.f32.mrb[0].mxu0
  %v1484 = vadd.f32 %v1436, %v1483
  %v1485 = vpop.f32.mrb[0].mxu0
  %1486 = vmatprep.mubr.bf16.mxu0 %v401
  %1487 = vmatmul.mubr.bf16.gmra.mrb[0].mxu0 %v400
  %v1488 = vpop.f32.mrb[0].mxu0
  %v1489 = vadd.f32 %v1441, %v1488
  %v1490 = vpop.f32.mrb[0].mxu0
  %v1491 = vpop.f32.mrb[0].mxu0
  %v1492 = vpop.f32.mrb[0].mxu0
  %1493 = vdwg.mxu0
  %1494 = vmatprep.subr.bf16.mxu0 0
  %1495 = vmatpush1.bf16.msra.mxu0 %v1046
  %1496 = vmatprep.subr.bf16.mxu0 0
  %1497 = vmatpush1.bf16.msra.mxu0 %v1047
  %1498 = vmatprep.subr.bf16.mxu0 0
  %1499 = vmatpush1.bf16.msra.mxu0 %v1048
  %1500 = vmatprep.subr.bf16.mxu0 0
  %1501 = vmatpush1.bf16.msra.mxu0 %v1049
  %1502 = vmatprep.subr.bf16.mxu0 0
  %1503 = vmatpush1.bf16.msra.mxu0 %v1050
  %1504 = vmatprep.subr.bf16.mxu0 0
  %1505 = vmatpush1.bf16.msra.mxu0 %v1051
  %1506 = vmatprep.subr.bf16.mxu0 0
  %1507 = vmatpush1.bf16.msra.mxu0 %v1052
  %1508 = vmatprep.subr.bf16.mxu0 0
  %1509 = vmatpush1.bf16.msra.mxu0 %v1053
  %1510 = vmatprep.subr.bf16.mxu0 0
  %1511 = vmatpush1.bf16.msra.mxu0 %v1054
  %1512 = vmatprep.subr.bf16.mxu0 0
  %1513 = vmatpush1.bf16.msra.mxu0 %v1055
  %1514 = vmatprep.subr.bf16.mxu0 0
  %1515 = vmatpush1.bf16.msra.mxu0 %v1056
  %1516 = vmatprep.subr.bf16.mxu0 0
  %1517 = vmatpush1.bf16.msra.mxu0 %v1057
  %1518 = vmatprep.subr.bf16.mxu0 0
  %1519 = vmatpush1.bf16.msra.mxu0 %v1058
  %1520 = vmatprep.subr.bf16.mxu0 0
  %1521 = vmatpush1.bf16.msra.mxu0 %v1059
  %1522 = vmatprep.subr.bf16.mxu0 0
  %1523 = vmatpush1.bf16.msra.mxu0 %v1060
  %1524 = vmatprep.subr.bf16.mxu0 0
  %1525 = vmatpush1.bf16.msra.mxu0 %v1061
  %1526 = vmatprep.mubr.bf16.mxu0 %v387
  %1527 = vmatmul.mubr.bf16.gmra.mrb[0].mxu0 %v386
  %v1528 = vpop.f32.mrb[0].mxu0
  %v1529 = vadd.f32 %v1481, %v1528
  %v1530 = vpop.f32.mrb[0].mxu0
  %v1531 = vpop.f32.mrb[0].mxu0
  %v1532 = vadd.f32 %v1484, %v1531
  %v1533 = vpop.f32.mrb[0].mxu0
  %1534 = vmatprep.mubr.bf16.mxu0 %v403
  %1535 = vmatmul.mubr.bf16.gmra.mrb[0].mxu0 %v402
  %v1536 = vpop.f32.mrb[0].mxu0
  %v1537 = vadd.f32 %v1489, %v1536
  %v1538 = vpop.f32.mrb[0].mxu0
  %v1539 = vpop.f32.mrb[0].mxu0
  %v1540 = vpop.f32.mrb[0].mxu0
  %1541 = vdwg.mxu0
  %1542 = vmatprep.subr.bf16.mxu0 0
  %1543 = vmatpush1.bf16.msra.mxu0 %v1062
  %1544 = vmatprep.subr.bf16.mxu0 0
  %1545 = vmatpush1.bf16.msra.mxu0 %v1063
  %1546 = vmatprep.subr.bf16.mxu0 0
  %1547 = vmatpush1.bf16.msra.mxu0 %v1064
  %1548 = vmatprep.subr.bf16.mxu0 0
  %1549 = vmatpush1.bf16.msra.mxu0 %v1065
  %1550 = vmatprep.subr.bf16.mxu0 0
  %1551 = vmatpush1.bf16.msra.mxu0 %v1066
  %1552 = vmatprep.subr.bf16.mxu0 0
  %1553 = vmatpush1.bf16.msra.mxu0 %v1067
  %1554 = vmatprep.subr.bf16.mxu0 0
  %1555 = vmatpush1.bf16.msra.mxu0 %v1068
  %1556 = vmatprep.subr.bf16.mxu0 0
  %1557 = vmatpush1.bf16.msra.mxu0 %v1069
  %1558 = vmatprep.subr.bf16.mxu0 0
  %1559 = vmatpush1.bf16.msra.mxu0 %v1070
  %1560 = vmatprep.subr.bf16.mxu0 0
  %1561 = vmatpush1.bf16.msra.mxu0 %v1071
  %1562 = vmatprep.subr.bf16.mxu0 0
  %1563 = vmatpush1.bf16.msra.mxu0 %v1072
  %1564 = vmatprep.subr.bf16.mxu0 0
  %1565 = vmatpush1.bf16.msra.mxu0 %v1073
  %1566 = vmatprep.subr.bf16.mxu0 0
  %1567 = vmatpush1.bf16.msra.mxu0 %v1074
  %1568 = vmatprep.subr.bf16.mxu0 0
  %1569 = vmatpush1.bf16.msra.mxu0 %v1075
  %1570 = vmatprep.subr.bf16.mxu0 0
  %1571 = vmatpush1.bf16.msra.mxu0 %v1076
  %1572 = vmatprep.subr.bf16.mxu0 0
  %1573 = vmatpush1.bf16.msra.mxu0 %v1077
  %1574 = vmatprep.mubr.bf16.mxu0 %v389
  %1575 = vmatmul.mubr.bf16.gmra.mrb[0].mxu0 %v388
  %v1576 = vpop.f32.mrb[0].mxu0
  %v1577 = vadd.f32 %v1529, %v1576
  %v1578 = vpop.f32.mrb[0].mxu0
  %v1579 = vpop.f32.mrb[0].mxu0
  %v1580 = vadd.f32 %v1532, %v1579
  %v1581 = vpop.f32.mrb[0].mxu0
  %1582 = vmatprep.mubr.bf16.mxu0 %v405
  %1583 = vmatmul.mubr.bf16.gmra.mrb[0].mxu0 %v404
  %v1584 = vpop.f32.mrb[0].mxu0
  %v1585 = vadd.f32 %v1537, %v1584
  %v1586 = vpop.f32.mrb[0].mxu0
  %v1587 = vpop.f32.mrb[0].mxu0
  %v1588 = vpop.f32.mrb[0].mxu0
  %1589 = vdwg.mxu0
  %vm1590 = vcmp.gt.f32.partialorder %v1577, 0.0
  %vm1591 = vcmp.gt.f32.partialorder %v1580, 0.0
  %vm1592 = vcmp.gt.f32.partialorder %v1585, 0.0
  %v1593 = vmul.f32 %v1577, 0.2
  %v1594 = vmul.f32 %v1580, 0.2
  %v1595 = vmul.f32 %v1585, 0.2
  %v1596 = vsel %vm1590, %v1577, %v1593
  %v1597 = vsel %vm1591, %v1580, %v1594
  %v1598 = vsel %vm1592, %v1585, %v1595
  %v1599 = vpack.c.bf16 %v1597, %v1596
  %v1600 = vpack.c.bf16 %v1598, %v1598
  %v1603 = vunpack.c.l.b16 %v1599
  %v1604 = vunpack.c.h.b16 %v1599
  %v1605 = vunpack.c.l.b16 %v1600
  %v1606 = vpack.c.b16 %v1603, %v1603
  %v1607 = vpack.c.b16 %v1604, %v1604
  %v1608 = vpack.c.b16 %v1605, %v1605
  %1612 = vst [vmem:[%s3] sm:$0xf] %v1606
  %1613 = vst [vmem:[%s3 + $0x4] sm:$0xf] %v1607
  %1614 = vst [vmem:[%s3 + $0x8] sm:$0x1] %v1608
  // Predicated region
  $region14: #{rnd_predictor_head_forward.7} parent=0 // pred_check
    _
  $region15: #{rnd_predictor_head_forward.7} parent=0 // pred_check_branch
    %1616 = sbr.rel (0) target = $region17
  $region16: #{rnd_predictor_head_forward.7} parent=0 // pred_region
    _
  $region17: #{rnd_predictor_head_forward.7} parent=0 // pred_fallthru
    _
  // Predicated region
  $region18: #{rnd_predictor_head_forward.7} parent=0 // pred_check
    _
  $region19: #{rnd_predictor_head_forward.7} parent=0 // pred_check_branch
    %1618 = sbr.rel (0) target = $region21
  $region20: #{rnd_predictor_head_forward.7} parent=0 // pred_region
    _
  $region21: #{rnd_predictor_head_forward.7} parent=0 // pred_fallthru
    _

// kernel: rnd_predictor_head_forward.9
$region0: #{rnd_predictor_head_forward.9}
  #allocation0 [shape = 'u32[]', space=smem, size = 0x4, offset = 0x4, fixed_abs, tag = 'smem constant byte address 0x4 - core index']
  #allocation1 [shape = 'u32[144,128]{1,0:T(1,128)}', space=vmem, size = 0x12000, scoped, tag = 'internal scratch']
  %s0 = inlined_call_operand.vmem [shape: bf16[8,128], index: 0, kind: input, shape index: {}]
  %s1 = inlined_call_operand.vmem [shape: bf16[128,512], index: 1, kind: input, shape index: {}]
  %s2 = inlined_call_operand.vmem [shape: f32[1,512], index: 2, kind: input, shape index: {}]
  %s3 = inlined_call_operand.vmem [shape: bf16[8,512], index: 3, kind: output, shape index: {}]
  %s4 = sld [smem:[#allocation0]]
  $region86: #{rnd_predictor_head_forward.9} parent=0
    _
  %s6 = ssub.s32 1, %s4
  %s7 = scalar_select 0, %s6, %s4
  $region1: #{rnd_predictor_head_forward.9} parent=0
    #allocation2 [shape = 'u8[65536]{0}', space=vmem, size = 0x10000, scoped, tag = 'input window, operand 1']
    loop: start=0, step=1, limit=6
    $region2: #{rnd_predictor_head_forward.9} parent=1 // loop_pre_header
      _
    $region3: #{rnd_predictor_head_forward.9} parent=1 // loop_header
      %s9 = sphi 0, %s13
      %p10 = scmp.ge.s32.totalorder %s9, 6
      %s16 = sphi 0, %s28
      %s17 = sphi 0, %s24
      %s18 = sphi 0, %s16
      %s19 = sphi 0, %s17
      %s20 = sphi 0, %s18
      %s21 = sphi 0, %s19
      %s31 = sphi 0, %s33
      %s34 = sphi 0, %s31
      %s35 = sphi 0, %s34
      %s51 = sphi 0, %s35
      %s57 = sphi 0, %s59
      %s60 = sphi 0, %s57
      %s61 = sphi 0, %s60
      %s77 = sphi 0, %s61
      %s83 = sphi 0, %s85
      %s86 = sphi 0, %s83
      %s87 = sphi 0, %s86
      %s103 = sphi 0, %s87
      %s111 = sphi 0, %s113
      %s114 = sphi 0, %s111
      %s115 = sphi 0, %s114
      %s131 = sphi 0, %s115
    $region4: #{rnd_predictor_head_forward.9} parent=1 // loop_header_branch
      %12 = sbr.rel (%p10) target = $region8
    $region5: #{rnd_predictor_head_forward.9} parent=1 // loop_body
      %s14 = ssub.s32 %s9, 1
      %s15 = ssub.s32 %s9, 2
      %s22 = sadd.s32 1, %s17
      %p23 = scmp.ge.s32.totalorder %s22, 4
      %s24 = scalar_select %p23, 0, %s22
      %s25 = sadd.s32 1, %s16
      %s26 = scalar_select %p23, %s25, %s16
      %p27 = scmp.ge.s32.totalorder %s26, 1
      %s28 = scalar_select %p27, 0, %s26
      %s29 = ssub.s32 %s16, %s28
      %p30 = scmp.eq.s32.totalorder %s29, 0
      %s32 = sadd.s32 %s31, 1
      %s33 = scalar_select %p30, %s31, %s32
      %p36 = pneg %p30
      %p37 = scmp.eq.s32.totalorder %s9, 3
      %p38 = por %p36, %p37
      %p39 = scmp.ne.s32.totalorder %s31, %s34
      %p40 = scmp.eq.s32.totalorder %s9, 0
      %p41 = por %p39, %p40
      %p42 = scmp.ne.s32.totalorder %s31, %s34
      %p43 = scmp.eq.s32.totalorder %s14, 3
      %p44 = por %p42, %p43
      %p45 = scmp.ne.s32.totalorder %s34, %s35
      %p46 = scmp.eq.s32.totalorder %s14, 0
      %p47 = por %p45, %p46
      %p48 = scmp.ne.s32.totalorder %s34, %s35
      %p49 = scmp.eq.s32.totalorder %s15, 3
      %p50 = por %p48, %p49
      %p52 = scmp.ne.s32.totalorder %s35, %s51
      %p53 = scmp.eq.s32.totalorder %s15, 0
      %p54 = por %p52, %p53
      %s55 = ssub.s32 %s17, %s24
      %p56 = scmp.eq.s32.totalorder %s55, 0
      %s58 = sadd.s32 %s57, 1
      %s59 = scalar_select %p56, %s57, %s58
      %p62 = pneg %p56
      %p63 = scmp.eq.s32.totalorder %s9, 3
      %p64 = por %p62, %p63
      %p65 = scmp.ne.s32.totalorder %s57, %s60
      %p66 = scmp.eq.s32.totalorder %s9, 0
      %p67 = por %p65, %p66
      %p68 = scmp.ne.s32.totalorder %s57, %s60
      %p69 = scmp.eq.s32.totalorder %s14, 3
      %p70 = por %p68, %p69
      %p71 = scmp.ne.s32.totalorder %s60, %s61
      %p72 = scmp.eq.s32.totalorder %s14, 0
      %p73 = por %p71, %p72
      %p74 = scmp.ne.s32.totalorder %s60, %s61
      %p75 = scmp.eq.s32.totalorder %s15, 3
      %p76 = por %p74, %p75
      %p78 = scmp.ne.s32.totalorder %s61, %s77
      %p79 = scmp.eq.s32.totalorder %s15, 0
      %p80 = por %p78, %p79
      %s81 = ssub.s32 %s17, %s24
      %p82 = scmp.eq.s32.totalorder %s81, 0
      %s84 = sadd.s32 %s83, 1
      %s85 = scalar_select %p82, %s83, %s84
      %p88 = pneg %p82
      %p89 = scmp.eq.s32.totalorder %s9, 3
      %p90 = por %p88, %p89
      %p91 = scmp.ne.s32.totalorder %s83, %s86
      %p92 = scmp.eq.s32.totalorder %s9, 0
      %p93 = por %p91, %p92
      %p94 = scmp.ne.s32.totalorder %s83, %s86
      %p95 = scmp.eq.s32.totalorder %s14, 3
      %p96 = por %p94, %p95
      %p97 = scmp.ne.s32.totalorder %s86, %s87
      %p98 = scmp.eq.s32.totalorder %s14, 0
      %p99 = por %p97, %p98
      %p100 = scmp.ne.s32.totalorder %s86, %s87
      %p101 = scmp.eq.s32.totalorder %s15, 3
      %p102 = por %p100, %p101
      %p104 = scmp.ne.s32.totalorder %s87, %s103
      %p105 = scmp.eq.s32.totalorder %s15, 0
      %p106 = por %p104, %p105
      %s107 = ssub.s32 %s16, %s28
      %s108 = ssub.s32 %s17, %s24
      %s109 = sor.u32 %s107, %s108
      %p110 = scmp.eq.s32.totalorder %s109, 0
      %s112 = sadd.s32 %s111, 1
      %s113 = scalar_select %p110, %s111, %s112
      %p116 = pneg %p110
      %p117 = scmp.eq.s32.totalorder %s9, 3
      %p118 = por %p116, %p117
      %p119 = scmp.ne.s32.totalorder %s111, %s114
      %p120 = scmp.eq.s32.totalorder %s9, 0
      %p121 = por %p119, %p120
      %p122 = scmp.ne.s32.totalorder %s111, %s114
      %p123 = scmp.eq.s32.totalorder %s14, 3
      %p124 = por %p122, %p123
      %p125 = scmp.ne.s32.totalorder %s114, %s115
      %p126 = scmp.eq.s32.totalorder %s14, 0
      %p127 = por %p125, %p126
      %p128 = scmp.ne.s32.totalorder %s114, %s115
      %p129 = scmp.eq.s32.totalorder %s15, 3
      %p130 = por %p128, %p129
      %p132 = scmp.ne.s32.totalorder %s115, %s131
      %p133 = scmp.eq.s32.totalorder %s15, 0
      %p134 = por %p132, %p133
      %p135 = scmp.le.s32.totalorder 1, %s9
      %p136 = scmp.lt.s32.totalorder %s9, 5
      %p137 = pnand %p135, %p136
      %p138 = pneg %p137
      // Predicated region
      $region9: #{rnd_predictor_head_forward.9} parent=5 // pred_check
        _
      $region10: #{rnd_predictor_head_forward.9} parent=5 // pred_check_branch
        %140 = sbr.rel (%p137) target = $region12
      $region11: #{rnd_predictor_head_forward.9} parent=5 // pred_region
        %s141 = ssub.s32 %s9, 1
        // Predicated region
        $region13: #{rnd_predictor_head_forward.9} parent=11 // pred_check
          %p142 = pneg %p47
        $region14: #{rnd_predictor_head_forward.9} parent=11 // pred_check_branch
          %144 = sbr.rel (%p142) target = $region16
        $region15: #{rnd_predictor_head_forward.9} parent=11 // pred_region
          %p145 = scmp.lt.s32.totalorder %s18, 0
          %s146 = scalar_select %p145, %s18, 0
          %s147 = smul.addr %s146, 4
          %s148 = scalar_lea.vmem %s0, %s147
        $region16: #{rnd_predictor_head_forward.9} parent=11 // pred_fallthru
          _
      $region12: #{rnd_predictor_head_forward.9} parent=5 // pred_fallthru
        _
      %p149 = scmp.lt.s32.totalorder %s9, 4
      // Predicated region
      $region17: #{rnd_predictor_head_forward.9} parent=5 // pred_check
        %p150 = pneg %p149
      $region18: #{rnd_predictor_head_forward.9} parent=5 // pred_check_branch
        %152 = sbr.rel (%p150) target = $region20
      $region19: #{rnd_predictor_head_forward.9} parent=5 // pred_region
        // Predicated region
        $region21: #{rnd_predictor_head_forward.9} parent=19 // pred_check
          %p153 = pneg %p67
        $region22: #{rnd_predictor_head_forward.9} parent=19 // pred_check_branch
          %155 = sbr.rel (%p153) target = $region24
        $region23: #{rnd_predictor_head_forward.9} parent=19 // pred_region
          %s156 = sand.u32 %s57, 1
          %s157 = sand.u32 %s57, 1
          %s158 = smul.addr %s157, 64
          %s159 = scalar_lea.vmem [#allocation2], %s158
          %s160 = smul.addr %s17, 4
          %s161 = scalar_lea.vmem %s1, %s160
          // Predicated region
          $region25: #{rnd_predictor_head_forward.9} parent=23 // pred_check
            _
          $region26: #{rnd_predictor_head_forward.9} parent=23 // pred_check_branch
            %163 = sbr.rel (0) target = $region28
          $region27: #{rnd_predictor_head_forward.9} parent=23 // pred_region
            // Predicated region
            $region29: #{rnd_predictor_head_forward.9} parent=27 // pred_check
              _
            $region30: #{rnd_predictor_head_forward.9} parent=27 // pred_check_branch
              %165 = sbr.rel target = $region32
            $region31: #{rnd_predictor_head_forward.9} parent=27 // pred_region
              // Predicated region
              $region44: #{rnd_predictor_head_forward.9} parent=31 // pred_check
                _
              $region45: #{rnd_predictor_head_forward.9} parent=31 // pred_check_branch
                %210 = sbr.rel (0) target = $region47
              $region46: #{rnd_predictor_head_forward.9} parent=31 // pred_region
                loop: start=0, step=1, limit=1
                $region48: #{rnd_predictor_head_forward.9} parent=46 // loop_pre_header
                  _
                $region49: #{rnd_predictor_head_forward.9} parent=46 // loop_header
                  %s212 = sphi 0, %s216
                  %p213 = scmp.ge.s32.totalorder %s212, 1
                  %s217 = sphi %s161, %s161
                  %s218 = sphi %s159, %s159
                $region50: #{rnd_predictor_head_forward.9} parent=46 // loop_header_branch
                  %215 = sbr.rel (%p213) target = $region54
                $region51: #{rnd_predictor_head_forward.9} parent=46 // loop_body
                  _
                $region52: #{rnd_predictor_head_forward.9} parent=46 // loop_footer
                  %s216 = sadd.s32 1, %s212
                $region53: #{rnd_predictor_head_forward.9} parent=46 // loop_footer_branch
                  %211 = sbr.rel target = $region49
                $region54: #{rnd_predictor_head_forward.9} parent=46 // loop_exit
                  _
                loop: start=0, step=1, limit=1
                $region55: #{rnd_predictor_head_forward.9} parent=46 // loop_pre_header
                  _
                $region56: #{rnd_predictor_head_forward.9} parent=46 // loop_header
                  %s221 = sphi 0, %s225
                  %p222 = scmp.ge.s32.totalorder %s221, 1
                  %s226 = sphi %s161, %s161
                  %s227 = sphi %s159, %s159
                $region57: #{rnd_predictor_head_forward.9} parent=46 // loop_header_branch
                  %224 = sbr.rel (%p222) target = $region61
                $region58: #{rnd_predictor_head_forward.9} parent=46 // loop_body
                  %v228 = vld [vmem:[%s226] sm:$0xf]
                  %229 = vst [vmem:[%s227] sm:$0xf] %v228
                  %v230 = vld [vmem:[%s226 + $0x10] sm:$0xf]
                  %231 = vst [vmem:[%s227 + $0x4] sm:$0xf] %v230
                  %v232 = vld [vmem:[%s226 + $0x20] sm:$0xf]
                  %233 = vst [vmem:[%s227 + $0x8] sm:$0xf] %v232
                  %v234 = vld [vmem:[%s226 + $0x30] sm:$0xf]
                  %235 = vst [vmem:[%s227 + $0xc] sm:$0xf] %v234
                  %v236 = vld [vmem:[%s226 + $0x40] sm:$0xf]
                  %237 = vst [vmem:[%s227 + $0x10] sm:$0xf] %v236
                  %v238 = vld [vmem:[%s226 + $0x50] sm:$0xf]
                  %239 = vst [vmem:[%s227 + $0x14] sm:$0xf] %v238
                  %v240 = vld [vmem:[%s226 + $0x60] sm:$0xf]
                  %241 = vst [vmem:[%s227 + $0x18] sm:$0xf] %v240
                  %v242 = vld [vmem:[%s226 + $0x70] sm:$0xf]
                  %243 = vst [vmem:[%s227 + $0x1c] sm:$0xf] %v242
                  %v244 = vld [vmem:[%s226 + $0x80] sm:$0xf]
                  %245 = vst [vmem:[%s227 + $0x20] sm:$0xf] %v244
                  %v246 = vld [vmem:[%s226 + $0x90] sm:$0xf]
                  %247 = vst [vmem:[%s227 + $0x24] sm:$0xf] %v246
                  %v248 = vld [vmem:[%s226 + $0xa0] sm:$0xf]
                  %249 = vst [vmem:[%s227 + $0x28] sm:$0xf] %v248
                  %v250 = vld [vmem:[%s226 + $0xb0] sm:$0xf]
                  %251 = vst [vmem:[%s227 + $0x2c] sm:$0xf] %v250
                  %v252 = vld [vmem:[%s226 + $0xc0] sm:$0xf]
                  %253 = vst [vmem:[%s227 + $0x30] sm:$0xf] %v252
                  %v254 = vld [vmem:[%s226 + $0xd0] sm:$0xf]
                  %255 = vst [vmem:[%s227 + $0x34] sm:$0xf] %v254
                  %v256 = vld [vmem:[%s226 + $0xe0] sm:$0xf]
                  %257 = vst [vmem:[%s227 + $0x38] sm:$0xf] %v256
                  %v258 = vld [vmem:[%s226 + $0xf0] sm:$0xf]
                  %259 = vst [vmem:[%s227 + $0x3c] sm:$0xf] %v258
                $region59: #{rnd_predictor_head_forward.9} parent=46 // loop_footer
                  %s225 = sadd.s32 1, %s221
                $region60: #{rnd_predictor_head_forward.9} parent=46 // loop_footer_branch
                  %220 = sbr.rel target = $region56
                $region61: #{rnd_predictor_head_forward.9} parent=46 // loop_exit
                  _
              $region47: #{rnd_predictor_head_forward.9} parent=31 // pred_fallthru
                _
            $region32: #{rnd_predictor_head_forward.9} parent=27 // pred_fallthru
              _
            // Predicated region
            $region33: #{rnd_predictor_head_forward.9} parent=27 // pred_check
              _
            $region34: #{rnd_predictor_head_forward.9} parent=27 // pred_check_branch
              %167 = sbr.rel (0) target = $region36
            $region35: #{rnd_predictor_head_forward.9} parent=27 // pred_region
              loop: start=0, step=1, limit=1
              $region37: #{rnd_predictor_head_forward.9} parent=35 // loop_pre_header
                _
              $region38: #{rnd_predictor_head_forward.9} parent=35 // loop_header
                %s170 = sphi 0, %s174
                %p171 = scmp.ge.s32.totalorder %s170, 1
                %s175 = sphi %s161, %s161
                %s176 = sphi %s159, %s159
              $region39: #{rnd_predictor_head_forward.9} parent=35 // loop_header_branch
                %173 = sbr.rel (%p171) target = $region43
              $region40: #{rnd_predictor_head_forward.9} parent=35 // loop_body
                %v177 = vld [vmem:[%s175] sm:$0xf]
                %178 = vst [vmem:[%s176] sm:$0xf] %v177
                %v179 = vld [vmem:[%s175 + $0x10] sm:$0xf]
                %180 = vst [vmem:[%s176 + $0x4] sm:$0xf] %v179
                %v181 = vld [vmem:[%s175 + $0x20] sm:$0xf]
                %182 = vst [vmem:[%s176 + $0x8] sm:$0xf] %v181
                %v183 = vld [vmem:[%s175 + $0x30] sm:$0xf]
                %184 = vst [vmem:[%s176 + $0xc] sm:$0xf] %v183
                %v185 = vld [vmem:[%s175 + $0x40] sm:$0xf]
                %186 = vst [vmem:[%s176 + $0x10] sm:$0xf] %v185
                %v187 = vld [vmem:[%s175 + $0x50] sm:$0xf]
                %188 = vst [vmem:[%s176 + $0x14] sm:$0xf] %v187
                %v189 = vld [vmem:[%s175 + $0x60] sm:$0xf]
                %190 = vst [vmem:[%s176 + $0x18] sm:$0xf] %v189
                %v191 = vld [vmem:[%s175 + $0x70] sm:$0xf]
                %192 = vst [vmem:[%s176 + $0x1c] sm:$0xf] %v191
                %v193 = vld [vmem:[%s175 + $0x80] sm:$0xf]
                %194 = vst [vmem:[%s176 + $0x20] sm:$0xf] %v193
                %v195 = vld [vmem:[%s175 + $0x90] sm:$0xf]
                %196 = vst [vmem:[%s176 + $0x24] sm:$0xf] %v195
                %v197 = vld [vmem:[%s175 + $0xa0] sm:$0xf]
                %198 = vst [vmem:[%s176 + $0x28] sm:$0xf] %v197
                %v199 = vld [vmem:[%s175 + $0xb0] sm:$0xf]
                %200 = vst [vmem:[%s176 + $0x2c] sm:$0xf] %v199
                %v201 = vld [vmem:[%s175 + $0xc0] sm:$0xf]
                %202 = vst [vmem:[%s176 + $0x30] sm:$0xf] %v201
                %v203 = vld [vmem:[%s175 + $0xd0] sm:$0xf]
                %204 = vst [vmem:[%s176 + $0x34] sm:$0xf] %v203
                %v205 = vld [vmem:[%s175 + $0xe0] sm:$0xf]
                %206 = vst [vmem:[%s176 + $0x38] sm:$0xf] %v205
                %v207 = vld [vmem:[%s175 + $0xf0] sm:$0xf]
                %208 = vst [vmem:[%s176 + $0x3c] sm:$0xf] %v207
              $region41: #{rnd_predictor_head_forward.9} parent=35 // loop_footer
                %s174 = sadd.s32 1, %s170
              $region42: #{rnd_predictor_head_forward.9} parent=35 // loop_footer_branch
                %169 = sbr.rel target = $region38
              $region43: #{rnd_predictor_head_forward.9} parent=35 // loop_exit
                _
            $region36: #{rnd_predictor_head_forward.9} parent=27 // pred_fallthru
              _
          $region28: #{rnd_predictor_head_forward.9} parent=23 // pred_fallthru
            _
          %260 = vnop
        $region24: #{rnd_predictor_head_forward.9} parent=19 // pred_fallthru
          _
        // Predicated region
        $region62: #{rnd_predictor_head_forward.9} parent=19 // pred_check
          %p261 = pneg %p93
        $region63: #{rnd_predictor_head_forward.9} parent=19 // pred_check_branch
          %263 = sbr.rel (%p261) target = $region65
        $region64: #{rnd_predictor_head_forward.9} parent=19 // pred_region
          %p264 = scmp.lt.s32.totalorder %s17, 3
          %s265 = scalar_select %p264, %s17, 3
          %s266 = scalar_lea.vmem %s2, %s265
        $region65: #{rnd_predictor_head_forward.9} parent=19 // pred_fallthru
          _
      $region20: #{rnd_predictor_head_forward.9} parent=5 // pred_fallthru
        _
      %p267 = scmp.le.s32.totalorder 1, %s9
      %p268 = scmp.lt.s32.totalorder %s9, 5
      %p269 = pnand %p267, %p268
      %p270 = pneg %p269
      // Predicated region
      $region66: #{rnd_predictor_head_forward.9} parent=5 // pred_check
        _
      $region67: #{rnd_predictor_head_forward.9} parent=5 // pred_check_branch
        %272 = sbr.rel (%p269) target = $region69
      $region68: #{rnd_predictor_head_forward.9} parent=5 // pred_region
        %s273 = ssub.s32 %s9, 1
        %s274 = sand.u32 %s60, 1
        %s275 = sand.u32 %s60, 1
        %s276 = smul.addr %s275, 64
        %s277 = scalar_lea.vmem [#allocation2], %s276
        // Predicated region
        $region70: #{rnd_predictor_head_forward.9} parent=68 // pred_check
          %p278 = pneg %p73
        $region71: #{rnd_predictor_head_forward.9} parent=68 // pred_check_branch
          %280 = sbr.rel (%p278) target = $region73
        $region72: #{rnd_predictor_head_forward.9} parent=68 // pred_region
          _
        $region73: #{rnd_predictor_head_forward.9} parent=68 // pred_fallthru
          _
        %p281 = scmp.lt.s32.totalorder %s18, 0
        %s282 = scalar_select %p281, %s18, 0
        %s283 = smul.addr %s282, 4
        %s284 = scalar_lea.vmem %s0, %s283
        %p285 = pneg %p47
        %p286 = pneg %p44
        %s287 = sand.u32 %s60, 1
        %s288 = sand.u32 %s60, 1
        %s289 = smul.addr %s288, 64
        %s290 = scalar_lea.vmem [#allocation2], %s289
        %p291 = pneg %p73
        %p292 = pneg %p70
        %p293 = scmp.lt.s32.totalorder %s19, 3
        %s294 = scalar_select %p293, %s19, 3
        %s295 = scalar_lea.vmem %s2, %s294
        %p296 = pneg %p99
        %p297 = pneg %p96
        %p298 = pneg %p127
        %p299 = pneg %p124
        %p300 = scmp.lt.s32.totalorder %s18, 0
        %s301 = scalar_select %p300, %s18, 0
        %p302 = scmp.lt.s32.totalorder %s19, 3
        %s303 = scalar_select %p302, %s19, 3
        %s304 = smul.addr %s301, 4
        %s305 = sadd.s32 %s303, %s304
        %s306 = smul.addr %s305, 4
        %s307 = scalar_lea.vmem %s3, %s306
        %p308 = scmp.lt.s32.totalorder %s18, 0
        %s309 = scalar_select %p308, %s18, 0
        %s310 = smul.addr %s309, 4
        %s311 = scalar_lea.vmem %s0, %s310
        %p312 = scmp.lt.s32.totalorder %s19, 3
        %s313 = scalar_select %p312, %s19, 3
        %s314 = scalar_lea.vmem %s2, %s313
        %p315 = scmp.lt.s32.totalorder %s18, 0
        %s316 = scalar_select %p315, %s18, 0
        %p317 = scmp.lt.s32.totalorder %s19, 3
        %s318 = scalar_select %p317, %s19, 3
        %s319 = smul.addr %s316, 4
        %s320 = sadd.s32 %s318, %s319
        %s321 = smul.addr %s320, 4
        %s322 = scalar_lea.vmem %s3, %s321
        %v324 = vld [vmem:[%s311] sm:$0xf]
        %v325 = vld [vmem:[%s277] sm:$0xf]
        %v326 = vld [vmem:[%s277 + $0x4] sm:$0xf]
        %v327 = vld [vmem:[%s277 + $0x8] sm:$0xf]
        %v328 = vld [vmem:[%s277 + $0xc] sm:$0xf]
        %v329 = vld [vmem:[%s277 + $0x10] sm:$0xf]
        %v330 = vld [vmem:[%s277 + $0x14] sm:$0xf]
        %v331 = vld [vmem:[%s277 + $0x18] sm:$0xf]
        %v332 = vld [vmem:[%s277 + $0x1c] sm:$0xf]
        %v333 = vld [vmem:[%s277 + $0x20] sm:$0xf]
        %v334 = vld [vmem:[%s277 + $0x24] sm:$0xf]
        %v335 = vld [vmem:[%s277 + $0x28] sm:$0xf]
        %v336 = vld [vmem:[%s277 + $0x2c] sm:$0xf]
        %v337 = vld [vmem:[%s277 + $0x30] sm:$0xf]
        %v338 = vld [vmem:[%s277 + $0x34] sm:$0xf]
        %v339 = vld [vmem:[%s277 + $0x38] sm:$0xf]
        %v340 = vld [vmem:[%s277 + $0x3c] sm:$0xf]
        %v341 = vld [vmem:[%s314] sm:$0x1]
        %v343 = vlaneseq
        %v344 = vshrl.u32 %v343, 7
        %v345 = vsub.s32 0, %v344
        %v346 = vrot.slane %v341, %v345
        %v364 = vunpack.c.l.b16 %v325
        %v365 = vunpack.c.l.b16 %v326
        %v366 = vunpack.c.l.b16 %v327
        %v367 = vunpack.c.l.b16 %v328
        %v368 = vunpack.c.l.b16 %v329
        %v369 = vunpack.c.l.b16 %v330
        %v370 = vunpack.c.l.b16 %v331
        %v371 = vunpack.c.l.b16 %v332
        %v372 = vunpack.c.l.b16 %v333
        %v373 = vunpack.c.l.b16 %v334
        %v374 = vunpack.c.l.b16 %v335
        %v375 = vunpack.c.l.b16 %v336
        %v376 = vunpack.c.l.b16 %v337
        %v377 = vunpack.c.l.b16 %v338
        %v378 = vunpack.c.l.b16 %v339
        %v379 = vunpack.c.l.b16 %v340
        %v380 = vpack.c.b16 %v365, %v364
        %v381 = vpack.c.b16 %v367, %v366
        %v382 = vpack.c.b16 %v369, %v368
        %v383 = vpack.c.b16 %v371, %v370
        %v384 = vpack.c.b16 %v373, %v372
        %v385 = vpack.c.b16 %v375, %v374
        %v386 = vpack.c.b16 %v377, %v376
        %v387 = vpack.c.b16 %v379, %v378
        %396 = vmatprep.subr.bf16.mxu0 0
        %397 = vmatpush1.bf16.msra.mxu0 %v380
        %398 = vmatprep.subr.bf16.mxu0 0
        %399 = vmatpush1.bf16.msra.mxu0 %v381
        %400 = vmatprep.subr.bf16.mxu0 0
        %401 = vmatpush1.bf16.msra.mxu0 %v382
        %402 = vmatprep.subr.bf16.mxu0 0
        %403 = vmatpush1.bf16.msra.mxu0 %v383
        %404 = vmatprep.subr.bf16.mxu0 0
        %405 = vmatpush1.bf16.msra.mxu0 %v384
        %406 = vmatprep.subr.bf16.mxu0 0
        %407 = vmatpush1.bf16.msra.mxu0 %v385
        %408 = vmatprep.subr.bf16.mxu0 0
        %409 = vmatpush1.bf16.msra.mxu0 %v386
        %410 = vmatprep.subr.bf16.mxu0 0
        %411 = vmatpush1.bf16.msra.mxu0 %v387
        %412 = vmatprep.subr.bf16.mxu0 0
        %413 = vmatpush1.bf16.msra.mxu0 0
        %414 = vmatprep.subr.bf16.mxu0 0
        %415 = vmatpush1.bf16.msra.mxu0 0
        %416 = vmatprep.subr.bf16.mxu0 0
        %417 = vmatpush1.bf16.msra.mxu0 0
        %418 = vmatprep.subr.bf16.mxu0 0
        %419 = vmatpush1.bf16.msra.mxu0 0
        %420 = vmatprep.subr.bf16.mxu0 0
        %421 = vmatpush1.bf16.msra.mxu0 0
        %422 = vmatprep.subr.bf16.mxu0 0
        %423 = vmatpush1.bf16.msra.mxu0 0
        %424 = vmatprep.subr.bf16.mxu0 0
        %425 = vmatpush1.bf16.msra.mxu0 0
        %426 = vmatprep.subr.bf16.mxu0 0
        %427 = vmatpush1.bf16.msra.mxu0 0
        %428 = vmatprep.mubr.bf16.mxu0 0
        %429 = vmatmul.mubr.bf16.gmra.mrb[0].mxu0 %v324
        %v430 = vpop.f32.mrb[0].mxu0
        %v431 = vadd.f32 %v346, %v430
        %v432 = vpop.f32.mrb[0].mxu0
        %v433 = vpop.f32.mrb[0].mxu0
        %v434 = vpop.f32.mrb[0].mxu0
        %435 = vdwg.mxu0
        %v436 = vmax.f32 %v431, 0.0
        %v437 = vpack.c.bf16 %v436, %v436
        %438 = vst [vmem:[%s322] sm:$0xf] %v437
        %p439 = scmp.lt.s32.totalorder %s18, 0
        %s440 = scalar_select %p439, %s18, 0
        %p441 = scmp.lt.s32.totalorder %s19, 3
        %s442 = scalar_select %p441, %s19, 3
        %s443 = smul.addr %s440, 4
        %s444 = sadd.s32 %s442, %s443
        %s445 = smul.addr %s444, 4
        %s446 = scalar_lea.vmem %s3, %s445
        // Predicated region
        $region74: #{rnd_predictor_head_forward.9} parent=68 // pred_check
          %p447 = pneg %p124
        $region75: #{rnd_predictor_head_forward.9} parent=68 // pred_check_branch
          %449 = sbr.rel (%p447) target = $region77
        $region76: #{rnd_predictor_head_forward.9} parent=68 // pred_region
          _
        $region77: #{rnd_predictor_head_forward.9} parent=68 // pred_fallthru
          _
      $region69: #{rnd_predictor_head_forward.9} parent=5 // pred_fallthru
        _
      %p450 = scmp.le.s32.totalorder 2, %s9
      // Predicated region
      $region78: #{rnd_predictor_head_forward.9} parent=5 // pred_check
        %p451 = pneg %p450
      $region79: #{rnd_predictor_head_forward.9} parent=5 // pred_check_branch
        %453 = sbr.rel (%p451) target = $region81
      $region80: #{rnd_predictor_head_forward.9} parent=5 // pred_region
        %s454 = ssub.s32 %s9, 2
        // Predicated region
        $region82: #{rnd_predictor_head_forward.9} parent=80 // pred_check
          %p455 = pneg %p130
        $region83: #{rnd_predictor_head_forward.9} parent=80 // pred_check_branch
          %457 = sbr.rel (%p455) target = $region85
        $region84: #{rnd_predictor_head_forward.9} parent=80 // pred_region
          %p458 = scmp.lt.s32.totalorder %s20, 0
          %s459 = scalar_select %p458, %s20, 0
          %p460 = scmp.lt.s32.totalorder %s21, 3
          %s461 = scalar_select %p460, %s21, 3
          %s462 = smul.addr %s459, 4
          %s463 = sadd.s32 %s461, %s462
          %s464 = smul.addr %s463, 4
          %s465 = scalar_lea.vmem %s3, %s464
        $region85: #{rnd_predictor_head_forward.9} parent=80 // pred_fallthru
          _
      $region81: #{rnd_predictor_head_forward.9} parent=5 // pred_fallthru
        _
    $region6: #{rnd_predictor_head_forward.9} parent=1 // loop_footer
      %s13 = sadd.s32 1, %s9
    $region7: #{rnd_predictor_head_forward.9} parent=1 // loop_footer_branch
      %8 = sbr.rel target = $region3
    $region8: #{rnd_predictor_head_forward.9} parent=1 // loop_exit
      _

// kernel: rnd_predictor_head_forward.10
$region0: #{rnd_predictor_head_forward.10}
  #allocation0 [shape = 'u32[]', space=smem, size = 0x4, offset = 0x4, fixed_abs, tag = 'smem constant byte address 0x4 - core index']
  #allocation1 [shape = 'u32[144,128]{1,0:T(1,128)}', space=vmem, size = 0x12000, scoped, tag = 'internal scratch']
  %s0 = inlined_call_operand.vmem [shape: bf16[8,512], index: 0, kind: input, shape index: {}]
  %s1 = inlined_call_operand.vmem [shape: bf16[512,512], index: 1, kind: input, shape index: {}]
  %s2 = inlined_call_operand.vmem [shape: f32[1,512], index: 2, kind: input, shape index: {}]
  %s3 = inlined_call_operand.vmem [shape: bf16[8,512], index: 3, kind: output, shape index: {}]
  %s4 = sld [smem:[#allocation0]]
  $region86: #{rnd_predictor_head_forward.10} parent=0
    _
  %s6 = ssub.s32 1, %s4
  %s7 = scalar_select 0, %s6, %s4
  $region1: #{rnd_predictor_head_forward.10} parent=0
    #allocation2 [shape = 'u8[262144]{0}', space=vmem, size = 0x40000, scoped, tag = 'input window, operand 1']
    loop: start=0, step=1, limit=6
    $region2: #{rnd_predictor_head_forward.10} parent=1 // loop_pre_header
      _
    $region3: #{rnd_predictor_head_forward.10} parent=1 // loop_header
      %s9 = sphi 0, %s13
      %p10 = scmp.ge.s32.totalorder %s9, 6
      %s16 = sphi 0, %s28
      %s17 = sphi 0, %s24
      %s18 = sphi 0, %s16
      %s19 = sphi 0, %s17
      %s20 = sphi 0, %s18
      %s21 = sphi 0, %s19
      %s31 = sphi 0, %s33
      %s34 = sphi 0, %s31
      %s35 = sphi 0, %s34
      %s51 = sphi 0, %s35
      %s57 = sphi 0, %s59
      %s60 = sphi 0, %s57
      %s61 = sphi 0, %s60
      %s77 = sphi 0, %s61
      %s83 = sphi 0, %s85
      %s86 = sphi 0, %s83
      %s87 = sphi 0, %s86
      %s103 = sphi 0, %s87
      %s111 = sphi 0, %s113
      %s114 = sphi 0, %s111
      %s115 = sphi 0, %s114
      %s131 = sphi 0, %s115
    $region4: #{rnd_predictor_head_forward.10} parent=1 // loop_header_branch
      %12 = sbr.rel (%p10) target = $region8
    $region5: #{rnd_predictor_head_forward.10} parent=1 // loop_body
      %s14 = ssub.s32 %s9, 1
      %s15 = ssub.s32 %s9, 2
      %s22 = sadd.s32 1, %s17
      %p23 = scmp.ge.s32.totalorder %s22, 4
      %s24 = scalar_select %p23, 0, %s22
      %s25 = sadd.s32 1, %s16
      %s26 = scalar_select %p23, %s25, %s16
      %p27 = scmp.ge.s32.totalorder %s26, 1
      %s28 = scalar_select %p27, 0, %s26
      %s29 = ssub.s32 %s16, %s28
      %p30 = scmp.eq.s32.totalorder %s29, 0
      %s32 = sadd.s32 %s31, 1
      %s33 = scalar_select %p30, %s31, %s32
      %p36 = pneg %p30
      %p37 = scmp.eq.s32.totalorder %s9, 3
      %p38 = por %p36, %p37
      %p39 = scmp.ne.s32.totalorder %s31, %s34
      %p40 = scmp.eq.s32.totalorder %s9, 0
      %p41 = por %p39, %p40
      %p42 = scmp.ne.s32.totalorder %s31, %s34
      %p43 = scmp.eq.s32.totalorder %s14, 3
      %p44 = por %p42, %p43
      %p45 = scmp.ne.s32.totalorder %s34, %s35
      %p46 = scmp.eq.s32.totalorder %s14, 0
      %p47 = por %p45, %p46
      %p48 = scmp.ne.s32.totalorder %s34, %s35
      %p49 = scmp.eq.s32.totalorder %s15, 3
      %p50 = por %p48, %p49
      %p52 = scmp.ne.s32.totalorder %s35, %s51
      %p53 = scmp.eq.s32.totalorder %s15, 0
      %p54 = por %p52, %p53
      %s55 = ssub.s32 %s17, %s24
      %p56 = scmp.eq.s32.totalorder %s55, 0
      %s58 = sadd.s32 %s57, 1
      %s59 = scalar_select %p56, %s57, %s58
      %p62 = pneg %p56
      %p63 = scmp.eq.s32.totalorder %s9, 3
      %p64 = por %p62, %p63
      %p65 = scmp.ne.s32.totalorder %s57, %s60
      %p66 = scmp.eq.s32.totalorder %s9, 0
      %p67 = por %p65, %p66
      %p68 = scmp.ne.s32.totalorder %s57, %s60
      %p69 = scmp.eq.s32.totalorder %s14, 3
      %p70 = por %p68, %p69
      %p71 = scmp.ne.s32.totalorder %s60, %s61
      %p72 = scmp.eq.s32.totalorder %s14, 0
      %p73 = por %p71, %p72
      %p74 = scmp.ne.s32.totalorder %s60, %s61
      %p75 = scmp.eq.s32.totalorder %s15, 3
      %p76 = por %p74, %p75
      %p78 = scmp.ne.s32.totalorder %s61, %s77
      %p79 = scmp.eq.s32.totalorder %s15, 0
      %p80 = por %p78, %p79
      %s81 = ssub.s32 %s17, %s24
      %p82 = scmp.eq.s32.totalorder %s81, 0
      %s84 = sadd.s32 %s83, 1
      %s85 = scalar_select %p82, %s83, %s84
      %p88 = pneg %p82
      %p89 = scmp.eq.s32.totalorder %s9, 3
      %p90 = por %p88, %p89
      %p91 = scmp.ne.s32.totalorder %s83, %s86
      %p92 = scmp.eq.s32.totalorder %s9, 0
      %p93 = por %p91, %p92
      %p94 = scmp.ne.s32.totalorder %s83, %s86
      %p95 = scmp.eq.s32.totalorder %s14, 3
      %p96 = por %p94, %p95
      %p97 = scmp.ne.s32.totalorder %s86, %s87
      %p98 = scmp.eq.s32.totalorder %s14, 0
      %p99 = por %p97, %p98
      %p100 = scmp.ne.s32.totalorder %s86, %s87
      %p101 = scmp.eq.s32.totalorder %s15, 3
      %p102 = por %p100, %p101
      %p104 = scmp.ne.s32.totalorder %s87, %s103
      %p105 = scmp.eq.s32.totalorder %s15, 0
      %p106 = por %p104, %p105
      %s107 = ssub.s32 %s16, %s28
      %s108 = ssub.s32 %s17, %s24
      %s109 = sor.u32 %s107, %s108
      %p110 = scmp.eq.s32.totalorder %s109, 0
      %s112 = sadd.s32 %s111, 1
      %s113 = scalar_select %p110, %s111, %s112
      %p116 = pneg %p110
      %p117 = scmp.eq.s32.totalorder %s9, 3
      %p118 = por %p116, %p117
      %p119 = scmp.ne.s32.totalorder %s111, %s114
      %p120 = scmp.eq.s32.totalorder %s9, 0
      %p121 = por %p119, %p120
      %p122 = scmp.ne.s32.totalorder %s111, %s114
      %p123 = scmp.eq.s32.totalorder %s14, 3
      %p124 = por %p122, %p123
      %p125 = scmp.ne.s32.totalorder %s114, %s115
      %p126 = scmp.eq.s32.totalorder %s14, 0
      %p127 = por %p125, %p126
      %p128 = scmp.ne.s32.totalorder %s114, %s115
      %p129 = scmp.eq.s32.totalorder %s15, 3
      %p130 = por %p128, %p129
      %p132 = scmp.ne.s32.totalorder %s115, %s131
      %p133 = scmp.eq.s32.totalorder %s15, 0
      %p134 = por %p132, %p133
      %p135 = scmp.le.s32.totalorder 1, %s9
      %p136 = scmp.lt.s32.totalorder %s9, 5
      %p137 = pnand %p135, %p136
      %p138 = pneg %p137
      // Predicated region
      $region9: #{rnd_predictor_head_forward.10} parent=5 // pred_check
        _
      $region10: #{rnd_predictor_head_forward.10} parent=5 // pred_check_branch
        %140 = sbr.rel (%p137) target = $region12
      $region11: #{rnd_predictor_head_forward.10} parent=5 // pred_region
        %s141 = ssub.s32 %s9, 1
        // Predicated region
        $region13: #{rnd_predictor_head_forward.10} parent=11 // pred_check
          %p142 = pneg %p47
        $region14: #{rnd_predictor_head_forward.10} parent=11 // pred_check_branch
          %144 = sbr.rel (%p142) target = $region16
        $region15: #{rnd_predictor_head_forward.10} parent=11 // pred_region
          %p145 = scmp.lt.s32.totalorder %s18, 0
          %s146 = scalar_select %p145, %s18, 0
          %s147 = smul.addr %s146, 4
          %s148 = smul.addr %s147, 4
          %s149 = scalar_lea.vmem %s0, %s148
        $region16: #{rnd_predictor_head_forward.10} parent=11 // pred_fallthru
          _
      $region12: #{rnd_predictor_head_forward.10} parent=5 // pred_fallthru
        _
      %p150 = scmp.lt.s32.totalorder %s9, 4
      // Predicated region
      $region17: #{rnd_predictor_head_forward.10} parent=5 // pred_check
        %p151 = pneg %p150
      $region18: #{rnd_predictor_head_forward.10} parent=5 // pred_check_branch
        %153 = sbr.rel (%p151) target = $region20
      $region19: #{rnd_predictor_head_forward.10} parent=5 // pred_region
        // Predicated region
        $region21: #{rnd_predictor_head_forward.10} parent=19 // pred_check
          %p154 = pneg %p67
        $region22: #{rnd_predictor_head_forward.10} parent=19 // pred_check_branch
          %156 = sbr.rel (%p154) target = $region24
        $region23: #{rnd_predictor_head_forward.10} parent=19 // pred_region
          %s157 = sand.u32 %s57, 1
          %s158 = sand.u32 %s57, 1
          %s159 = smul.addr %s158, 256
          %s160 = scalar_lea.vmem [#allocation2], %s159
          %s161 = smul.addr %s17, 4
          %s162 = scalar_lea.vmem %s1, %s161
          // Predicated region
          $region25: #{rnd_predictor_head_forward.10} parent=23 // pred_check
            _
          $region26: #{rnd_predictor_head_forward.10} parent=23 // pred_check_branch
            %164 = sbr.rel (0) target = $region28
          $region27: #{rnd_predictor_head_forward.10} parent=23 // pred_region
            // Predicated region
            $region29: #{rnd_predictor_head_forward.10} parent=27 // pred_check
              _
            $region30: #{rnd_predictor_head_forward.10} parent=27 // pred_check_branch
              %166 = sbr.rel target = $region32
            $region31: #{rnd_predictor_head_forward.10} parent=27 // pred_region
              // Predicated region
              $region44: #{rnd_predictor_head_forward.10} parent=31 // pred_check
                _
              $region45: #{rnd_predictor_head_forward.10} parent=31 // pred_check_branch
                %307 = sbr.rel (0) target = $region47
              $region46: #{rnd_predictor_head_forward.10} parent=31 // pred_region
                loop: start=0, step=1, limit=1
                $region48: #{rnd_predictor_head_forward.10} parent=46 // loop_pre_header
                  _
                $region49: #{rnd_predictor_head_forward.10} parent=46 // loop_header
                  %s309 = sphi 0, %s313
                  %p310 = scmp.ge.s32.totalorder %s309, 1
                  %s314 = sphi %s162, %s162
                  %s315 = sphi %s160, %s160
                $region50: #{rnd_predictor_head_forward.10} parent=46 // loop_header_branch
                  %312 = sbr.rel (%p310) target = $region54
                $region51: #{rnd_predictor_head_forward.10} parent=46 // loop_body
                  _
                $region52: #{rnd_predictor_head_forward.10} parent=46 // loop_footer
                  %s313 = sadd.s32 1, %s309
                $region53: #{rnd_predictor_head_forward.10} parent=46 // loop_footer_branch
                  %308 = sbr.rel target = $region49
                $region54: #{rnd_predictor_head_forward.10} parent=46 // loop_exit
                  _
                loop: start=0, step=1, limit=1
                $region55: #{rnd_predictor_head_forward.10} parent=46 // loop_pre_header
                  _
                $region56: #{rnd_predictor_head_forward.10} parent=46 // loop_header
                  %s318 = sphi 0, %s322
                  %p319 = scmp.ge.s32.totalorder %s318, 1
                  %s323 = sphi %s162, %s162
                  %s324 = sphi %s160, %s160
                $region57: #{rnd_predictor_head_forward.10} parent=46 // loop_header_branch
                  %321 = sbr.rel (%p319) target = $region61
                $region58: #{rnd_predictor_head_forward.10} parent=46 // loop_body
                  %v325 = vld [vmem:[%s323] sm:$0xf]
                  %326 = vst [vmem:[%s324] sm:$0xf] %v325
                  %v327 = vld [vmem:[%s323 + $0x10] sm:$0xf]
                  %328 = vst [vmem:[%s324 + $0x4] sm:$0xf] %v327
                  %v329 = vld [vmem:[%s323 + $0x20] sm:$0xf]
                  %330 = vst [vmem:[%s324 + $0x8] sm:$0xf] %v329
                  %v331 = vld [vmem:[%s323 + $0x30] sm:$0xf]
                  %332 = vst [vmem:[%s324 + $0xc] sm:$0xf] %v331
                  %v333 = vld [vmem:[%s323 + $0x40] sm:$0xf]
                  %334 = vst [vmem:[%s324 + $0x10] sm:$0xf] %v333
                  %v335 = vld [vmem:[%s323 + $0x50] sm:$0xf]
                  %336 = vst [vmem:[%s324 + $0x14] sm:$0xf] %v335
                  %v337 = vld [vmem:[%s323 + $0x60] sm:$0xf]
                  %338 = vst [vmem:[%s324 + $0x18] sm:$0xf] %v337
                  %v339 = vld [vmem:[%s323 + $0x70] sm:$0xf]
                  %340 = vst [vmem:[%s324 + $0x1c] sm:$0xf] %v339
                  %v341 = vld [vmem:[%s323 + $0x80] sm:$0xf]
                  %342 = vst [vmem:[%s324 + $0x20] sm:$0xf] %v341
                  %v343 = vld [vmem:[%s323 + $0x90] sm:$0xf]
                  %344 = vst [vmem:[%s324 + $0x24] sm:$0xf] %v343
                  %v345 = vld [vmem:[%s323 + $0xa0] sm:$0xf]
                  %346 = vst [vmem:[%s324 + $0x28] sm:$0xf] %v345
                  %v347 = vld [vmem:[%s323 + $0xb0] sm:$0xf]
                  %348 = vst [vmem:[%s324 + $0x2c] sm:$0xf] %v347
                  %v349 = vld [vmem:[%s323 + $0xc0] sm:$0xf]
                  %350 = vst [vmem:[%s324 + $0x30] sm:$0xf] %v349
                  %v351 = vld [vmem:[%s323 + $0xd0] sm:$0xf]
                  %352 = vst [vmem:[%s324 + $0x34] sm:$0xf] %v351
                  %v353 = vld [vmem:[%s323 + $0xe0] sm:$0xf]
                  %354 = vst [vmem:[%s324 + $0x38] sm:$0xf] %v353
                  %v355 = vld [vmem:[%s323 + $0xf0] sm:$0xf]
                  %356 = vst [vmem:[%s324 + $0x3c] sm:$0xf] %v355
                  %v357 = vld [vmem:[%s323 + $0x100] sm:$0xf]
                  %358 = vst [vmem:[%s324 + $0x40] sm:$0xf] %v357
                  %v359 = vld [vmem:[%s323 + $0x110] sm:$0xf]
                  %360 = vst [vmem:[%s324 + $0x44] sm:$0xf] %v359
                  %v361 = vld [vmem:[%s323 + $0x120] sm:$0xf]
                  %362 = vst [vmem:[%s324 + $0x48] sm:$0xf] %v361
                  %v363 = vld [vmem:[%s323 + $0x130] sm:$0xf]
                  %364 = vst [vmem:[%s324 + $0x4c] sm:$0xf] %v363
                  %v365 = vld [vmem:[%s323 + $0x140] sm:$0xf]
                  %366 = vst [vmem:[%s324 + $0x50] sm:$0xf] %v365
                  %v367 = vld [vmem:[%s323 + $0x150] sm:$0xf]
                  %368 = vst [vmem:[%s324 + $0x54] sm:$0xf] %v367
                  %v369 = vld [vmem:[%s323 + $0x160] sm:$0xf]
                  %370 = vst [vmem:[%s324 + $0x58] sm:$0xf] %v369
                  %v371 = vld [vmem:[%s323 + $0x170] sm:$0xf]
                  %372 = vst [vmem:[%s324 + $0x5c] sm:$0xf] %v371
                  %v373 = vld [vmem:[%s323 + $0x180] sm:$0xf]
                  %374 = vst [vmem:[%s324 + $0x60] sm:$0xf] %v373
                  %v375 = vld [vmem:[%s323 + $0x190] sm:$0xf]
                  %376 = vst [vmem:[%s324 + $0x64] sm:$0xf] %v375
                  %v377 = vld [vmem:[%s323 + $0x1a0] sm:$0xf]
                  %378 = vst [vmem:[%s324 + $0x68] sm:$0xf] %v377
                  %v379 = vld [vmem:[%s323 + $0x1b0] sm:$0xf]
                  %380 = vst [vmem:[%s324 + $0x6c] sm:$0xf] %v379
                  %v381 = vld [vmem:[%s323 + $0x1c0] sm:$0xf]
                  %382 = vst [vmem:[%s324 + $0x70] sm:$0xf] %v381
                  %v383 = vld [vmem:[%s323 + $0x1d0] sm:$0xf]
                  %384 = vst [vmem:[%s324 + $0x74] sm:$0xf] %v383
                  %v385 = vld [vmem:[%s323 + $0x1e0] sm:$0xf]
                  %386 = vst [vmem:[%s324 + $0x78] sm:$0xf] %v385
                  %v387 = vld [vmem:[%s323 + $0x1f0] sm:$0xf]
                  %388 = vst [vmem:[%s324 + $0x7c] sm:$0xf] %v387
                  %v389 = vld [vmem:[%s323 + $0x200] sm:$0xf]
                  %390 = vst [vmem:[%s324 + $0x80] sm:$0xf] %v389
                  %v391 = vld [vmem:[%s323 + $0x210] sm:$0xf]
                  %392 = vst [vmem:[%s324 + $0x84] sm:$0xf] %v391
                  %v393 = vld [vmem:[%s323 + $0x220] sm:$0xf]
                  %394 = vst [vmem:[%s324 + $0x88] sm:$0xf] %v393
                  %v395 = vld [vmem:[%s323 + $0x230] sm:$0xf]
                  %396 = vst [vmem:[%s324 + $0x8c] sm:$0xf] %v395
                  %v397 = vld [vmem:[%s323 + $0x240] sm:$0xf]
                  %398 = vst [vmem:[%s324 + $0x90] sm:$0xf] %v397
                  %v399 = vld [vmem:[%s323 + $0x250] sm:$0xf]
                  %400 = vst [vmem:[%s324 + $0x94] sm:$0xf] %v399
                  %v401 = vld [vmem:[%s323 + $0x260] sm:$0xf]
                  %402 = vst [vmem:[%s324 + $0x98] sm:$0xf] %v401
                  %v403 = vld [vmem:[%s323 + $0x270] sm:$0xf]
                  %404 = vst [vmem:[%s324 + $0x9c] sm:$0xf] %v403
                  %v405 = vld [vmem:[%s323 + $0x280] sm:$0xf]
                  %406 = vst [vmem:[%s324 + $0xa0] sm:$0xf] %v405
                  %v407 = vld [vmem:[%s323 + $0x290] sm:$0xf]
                  %408 = vst [vmem:[%s324 + $0xa4] sm:$0xf] %v407
                  %v409 = vld [vmem:[%s323 + $0x2a0] sm:$0xf]
                  %410 = vst [vmem:[%s324 + $0xa8] sm:$0xf] %v409
                  %v411 = vld [vmem:[%s323 + $0x2b0] sm:$0xf]
                  %412 = vst [vmem:[%s324 + $0xac] sm:$0xf] %v411
                  %v413 = vld [vmem:[%s323 + $0x2c0] sm:$0xf]
                  %414 = vst [vmem:[%s324 + $0xb0] sm:$0xf] %v413
                  %v415 = vld [vmem:[%s323 + $0x2d0] sm:$0xf]
                  %416 = vst [vmem:[%s324 + $0xb4] sm:$0xf] %v415
                  %v417 = vld [vmem:[%s323 + $0x2e0] sm:$0xf]
                  %418 = vst [vmem:[%s324 + $0xb8] sm:$0xf] %v417
                  %v419 = vld [vmem:[%s323 + $0x2f0] sm:$0xf]
                  %420 = vst [vmem:[%s324 + $0xbc] sm:$0xf] %v419
                  %v421 = vld [vmem:[%s323 + $0x300] sm:$0xf]
                  %422 = vst [vmem:[%s324 + $0xc0] sm:$0xf] %v421
                  %v423 = vld [vmem:[%s323 + $0x310] sm:$0xf]
                  %424 = vst [vmem:[%s324 + $0xc4] sm:$0xf] %v423
                  %v425 = vld [vmem:[%s323 + $0x320] sm:$0xf]
                  %426 = vst [vmem:[%s324 + $0xc8] sm:$0xf] %v425
                  %v427 = vld [vmem:[%s323 + $0x330] sm:$0xf]
                  %428 = vst [vmem:[%s324 + $0xcc] sm:$0xf] %v427
                  %v429 = vld [vmem:[%s323 + $0x340] sm:$0xf]
                  %430 = vst [vmem:[%s324 + $0xd0] sm:$0xf] %v429
                  %v431 = vld [vmem:[%s323 + $0x350] sm:$0xf]
                  %432 = vst [vmem:[%s324 + $0xd4] sm:$0xf] %v431
                  %v433 = vld [vmem:[%s323 + $0x360] sm:$0xf]
                  %434 = vst [vmem:[%s324 + $0xd8] sm:$0xf] %v433
                  %v435 = vld [vmem:[%s323 + $0x370] sm:$0xf]
                  %436 = vst [vmem:[%s324 + $0xdc] sm:$0xf] %v435
                  %v437 = vld [vmem:[%s323 + $0x380] sm:$0xf]
                  %438 = vst [vmem:[%s324 + $0xe0] sm:$0xf] %v437
                  %v439 = vld [vmem:[%s323 + $0x390] sm:$0xf]
                  %440 = vst [vmem:[%s324 + $0xe4] sm:$0xf] %v439
                  %v441 = vld [vmem:[%s323 + $0x3a0] sm:$0xf]
                  %442 = vst [vmem:[%s324 + $0xe8] sm:$0xf] %v441
                  %v443 = vld [vmem:[%s323 + $0x3b0] sm:$0xf]
                  %444 = vst [vmem:[%s324 + $0xec] sm:$0xf] %v443
                  %v445 = vld [vmem:[%s323 + $0x3c0] sm:$0xf]
                  %446 = vst [vmem:[%s324 + $0xf0] sm:$0xf] %v445
                  %v447 = vld [vmem:[%s323 + $0x3d0] sm:$0xf]
                  %448 = vst [vmem:[%s324 + $0xf4] sm:$0xf] %v447
                  %v449 = vld [vmem:[%s323 + $0x3e0] sm:$0xf]
                  %450 = vst [vmem:[%s324 + $0xf8] sm:$0xf] %v449
                  %v451 = vld [vmem:[%s323 + $0x3f0] sm:$0xf]
                  %452 = vst [vmem:[%s324 + $0xfc] sm:$0xf] %v451
                $region59: #{rnd_predictor_head_forward.10} parent=46 // loop_footer
                  %s322 = sadd.s32 1, %s318
                $region60: #{rnd_predictor_head_forward.10} parent=46 // loop_footer_branch
                  %317 = sbr.rel target = $region56
                $region61: #{rnd_predictor_head_forward.10} parent=46 // loop_exit
                  _
              $region47: #{rnd_predictor_head_forward.10} parent=31 // pred_fallthru
                _
            $region32: #{rnd_predictor_head_forward.10} parent=27 // pred_fallthru
              _
            // Predicated region
            $region33: #{rnd_predictor_head_forward.10} parent=27 // pred_check
              _
            $region34: #{rnd_predictor_head_forward.10} parent=27 // pred_check_branch
              %168 = sbr.rel (0) target = $region36
            $region35: #{rnd_predictor_head_forward.10} parent=27 // pred_region
              loop: start=0, step=1, limit=1
              $region37: #{rnd_predictor_head_forward.10} parent=35 // loop_pre_header
                _
              $region38: #{rnd_predictor_head_forward.10} parent=35 // loop_header
                %s171 = sphi 0, %s175
                %p172 = scmp.ge.s32.totalorder %s171, 1
                %s176 = sphi %s162, %s162
                %s177 = sphi %s160, %s160
              $region39: #{rnd_predictor_head_forward.10} parent=35 // loop_header_branch
                %174 = sbr.rel (%p172) target = $region43
              $region40: #{rnd_predictor_head_forward.10} parent=35 // loop_body
                %v178 = vld [vmem:[%s176] sm:$0xf]
                %179 = vst [vmem:[%s177] sm:$0xf] %v178
                %v180 = vld [vmem:[%s176 + $0x10] sm:$0xf]
                %181 = vst [vmem:[%s177 + $0x4] sm:$0xf] %v180
                %v182 = vld [vmem:[%s176 + $0x20] sm:$0xf]
                %183 = vst [vmem:[%s177 + $0x8] sm:$0xf] %v182
                %v184 = vld [vmem:[%s176 + $0x30] sm:$0xf]
                %185 = vst [vmem:[%s177 + $0xc] sm:$0xf] %v184
                %v186 = vld [vmem:[%s176 + $0x40] sm:$0xf]
                %187 = vst [vmem:[%s177 + $0x10] sm:$0xf] %v186
                %v188 = vld [vmem:[%s176 + $0x50] sm:$0xf]
                %189 = vst [vmem:[%s177 + $0x14] sm:$0xf] %v188
                %v190 = vld [vmem:[%s176 + $0x60] sm:$0xf]
                %191 = vst [vmem:[%s177 + $0x18] sm:$0xf] %v190
                %v192 = vld [vmem:[%s176 + $0x70] sm:$0xf]
                %193 = vst [vmem:[%s177 + $0x1c] sm:$0xf] %v192
                %v194 = vld [vmem:[%s176 + $0x80] sm:$0xf]
                %195 = vst [vmem:[%s177 + $0x20] sm:$0xf] %v194
                %v196 = vld [vmem:[%s176 + $0x90] sm:$0xf]
                %197 = vst [vmem:[%s177 + $0x24] sm:$0xf] %v196
                %v198 = vld [vmem:[%s176 + $0xa0] sm:$0xf]
                %199 = vst [vmem:[%s177 + $0x28] sm:$0xf] %v198
                %v200 = vld [vmem:[%s176 + $0xb0] sm:$0xf]
                %201 = vst [vmem:[%s177 + $0x2c] sm:$0xf] %v200
                %v202 = vld [vmem:[%s176 + $0xc0] sm:$0xf]
                %203 = vst [vmem:[%s177 + $0x30] sm:$0xf] %v202
                %v204 = vld [vmem:[%s176 + $0xd0] sm:$0xf]
                %205 = vst [vmem:[%s177 + $0x34] sm:$0xf] %v204
                %v206 = vld [vmem:[%s176 + $0xe0] sm:$0xf]
                %207 = vst [vmem:[%s177 + $0x38] sm:$0xf] %v206
                %v208 = vld [vmem:[%s176 + $0xf0] sm:$0xf]
                %209 = vst [vmem:[%s177 + $0x3c] sm:$0xf] %v208
                %v210 = vld [vmem:[%s176 + $0x100] sm:$0xf]
                %211 = vst [vmem:[%s177 + $0x40] sm:$0xf] %v210
                %v212 = vld [vmem:[%s176 + $0x110] sm:$0xf]
                %213 = vst [vmem:[%s177 + $0x44] sm:$0xf] %v212
                %v214 = vld [vmem:[%s176 + $0x120] sm:$0xf]
                %215 = vst [vmem:[%s177 + $0x48] sm:$0xf] %v214
                %v216 = vld [vmem:[%s176 + $0x130] sm:$0xf]
                %217 = vst [vmem:[%s177 + $0x4c] sm:$0xf] %v216
                %v218 = vld [vmem:[%s176 + $0x140] sm:$0xf]
                %219 = vst [vmem:[%s177 + $0x50] sm:$0xf] %v218
                %v220 = vld [vmem:[%s176 + $0x150] sm:$0xf]
                %221 = vst [vmem:[%s177 + $0x54] sm:$0xf] %v220
                %v222 = vld [vmem:[%s176 + $0x160] sm:$0xf]
                %223 = vst [vmem:[%s177 + $0x58] sm:$0xf] %v222
                %v224 = vld [vmem:[%s176 + $0x170] sm:$0xf]
                %225 = vst [vmem:[%s177 + $0x5c] sm:$0xf] %v224
                %v226 = vld [vmem:[%s176 + $0x180] sm:$0xf]
                %227 = vst [vmem:[%s177 + $0x60] sm:$0xf] %v226
                %v228 = vld [vmem:[%s176 + $0x190] sm:$0xf]
                %229 = vst [vmem:[%s177 + $0x64] sm:$0xf] %v228
                %v230 = vld [vmem:[%s176 + $0x1a0] sm:$0xf]
                %231 = vst [vmem:[%s177 + $0x68] sm:$0xf] %v230
                %v232 = vld [vmem:[%s176 + $0x1b0] sm:$0xf]
                %233 = vst [vmem:[%s177 + $0x6c] sm:$0xf] %v232
                %v234 = vld [vmem:[%s176 + $0x1c0] sm:$0xf]
                %235 = vst [vmem:[%s177 + $0x70] sm:$0xf] %v234
                %v236 = vld [vmem:[%s176 + $0x1d0] sm:$0xf]
                %237 = vst [vmem:[%s177 + $0x74] sm:$0xf] %v236
                %v238 = vld [vmem:[%s176 + $0x1e0] sm:$0xf]
                %239 = vst [vmem:[%s177 + $0x78] sm:$0xf] %v238
                %v240 = vld [vmem:[%s176 + $0x1f0] sm:$0xf]
                %241 = vst [vmem:[%s177 + $0x7c] sm:$0xf] %v240
                %v242 = vld [vmem:[%s176 + $0x200] sm:$0xf]
                %243 = vst [vmem:[%s177 + $0x80] sm:$0xf] %v242
                %v244 = vld [vmem:[%s176 + $0x210] sm:$0xf]
                %245 = vst [vmem:[%s177 + $0x84] sm:$0xf] %v244
                %v246 = vld [vmem:[%s176 + $0x220] sm:$0xf]
                %247 = vst [vmem:[%s177 + $0x88] sm:$0xf] %v246
                %v248 = vld [vmem:[%s176 + $0x230] sm:$0xf]
                %249 = vst [vmem:[%s177 + $0x8c] sm:$0xf] %v248
                %v250 = vld [vmem:[%s176 + $0x240] sm:$0xf]
                %251 = vst [vmem:[%s177 + $0x90] sm:$0xf] %v250
                %v252 = vld [vmem:[%s176 + $0x250] sm:$0xf]
                %253 = vst [vmem:[%s177 + $0x94] sm:$0xf] %v252
                %v254 = vld [vmem:[%s176 + $0x260] sm:$0xf]
                %255 = vst [vmem:[%s177 + $0x98] sm:$0xf] %v254
                %v256 = vld [vmem:[%s176 + $0x270] sm:$0xf]
                %257 = vst [vmem:[%s177 + $0x9c] sm:$0xf] %v256
                %v258 = vld [vmem:[%s176 + $0x280] sm:$0xf]
                %259 = vst [vmem:[%s177 + $0xa0] sm:$0xf] %v258
                %v260 = vld [vmem:[%s176 + $0x290] sm:$0xf]
                %261 = vst [vmem:[%s177 + $0xa4] sm:$0xf] %v260
                %v262 = vld [vmem:[%s176 + $0x2a0] sm:$0xf]
                %263 = vst [vmem:[%s177 + $0xa8] sm:$0xf] %v262
                %v264 = vld [vmem:[%s176 + $0x2b0] sm:$0xf]
                %265 = vst [vmem:[%s177 + $0xac] sm:$0xf] %v264
                %v266 = vld [vmem:[%s176 + $0x2c0] sm:$0xf]
                %267 = vst [vmem:[%s177 + $0xb0] sm:$0xf] %v266
                %v268 = vld [vmem:[%s176 + $0x2d0] sm:$0xf]
                %269 = vst [vmem:[%s177 + $0xb4] sm:$0xf] %v268
                %v270 = vld [vmem:[%s176 + $0x2e0] sm:$0xf]
                %271 = vst [vmem:[%s177 + $0xb8] sm:$0xf] %v270
                %v272 = vld [vmem:[%s176 + $0x2f0] sm:$0xf]
                %273 = vst [vmem:[%s177 + $0xbc] sm:$0xf] %v272
                %v274 = vld [vmem:[%s176 + $0x300] sm:$0xf]
                %275 = vst [vmem:[%s177 + $0xc0] sm:$0xf] %v274
                %v276 = vld [vmem:[%s176 + $0x310] sm:$0xf]
                %277 = vst [vmem:[%s177 + $0xc4] sm:$0xf] %v276
                %v278 = vld [vmem:[%s176 + $0x320] sm:$0xf]
                %279 = vst [vmem:[%s177 + $0xc8] sm:$0xf] %v278
                %v280 = vld [vmem:[%s176 + $0x330] sm:$0xf]
                %281 = vst [vmem:[%s177 + $0xcc] sm:$0xf] %v280
                %v282 = vld [vmem:[%s176 + $0x340] sm:$0xf]
                %283 = vst [vmem:[%s177 + $0xd0] sm:$0xf] %v282
                %v284 = vld [vmem:[%s176 + $0x350] sm:$0xf]
                %285 = vst [vmem:[%s177 + $0xd4] sm:$0xf] %v284
                %v286 = vld [vmem:[%s176 + $0x360] sm:$0xf]
                %287 = vst [vmem:[%s177 + $0xd8] sm:$0xf] %v286
                %v288 = vld [vmem:[%s176 + $0x370] sm:$0xf]
                %289 = vst [vmem:[%s177 + $0xdc] sm:$0xf] %v288
                %v290 = vld [vmem:[%s176 + $0x380] sm:$0xf]
                %291 = vst [vmem:[%s177 + $0xe0] sm:$0xf] %v290
                %v292 = vld [vmem:[%s176 + $0x390] sm:$0xf]
                %293 = vst [vmem:[%s177 + $0xe4] sm:$0xf] %v292
                %v294 = vld [vmem:[%s176 + $0x3a0] sm:$0xf]
                %295 = vst [vmem:[%s177 + $0xe8] sm:$0xf] %v294
                %v296 = vld [vmem:[%s176 + $0x3b0] sm:$0xf]
                %297 = vst [vmem:[%s177 + $0xec] sm:$0xf] %v296
                %v298 = vld [vmem:[%s176 + $0x3c0] sm:$0xf]
                %299 = vst [vmem:[%s177 + $0xf0] sm:$0xf] %v298
                %v300 = vld [vmem:[%s176 + $0x3d0] sm:$0xf]
                %301 = vst [vmem:[%s177 + $0xf4] sm:$0xf] %v300
                %v302 = vld [vmem:[%s176 + $0x3e0] sm:$0xf]
                %303 = vst [vmem:[%s177 + $0xf8] sm:$0xf] %v302
                %v304 = vld [vmem:[%s176 + $0x3f0] sm:$0xf]
                %305 = vst [vmem:[%s177 + $0xfc] sm:$0xf] %v304
              $region41: #{rnd_predictor_head_forward.10} parent=35 // loop_footer
                %s175 = sadd.s32 1, %s171
              $region42: #{rnd_predictor_head_forward.10} parent=35 // loop_footer_branch
                %170 = sbr.rel target = $region38
              $region43: #{rnd_predictor_head_forward.10} parent=35 // loop_exit
                _
            $region36: #{rnd_predictor_head_forward.10} parent=27 // pred_fallthru
              _
          $region28: #{rnd_predictor_head_forward.10} parent=23 // pred_fallthru
            _
          %453 = vnop
        $region24: #{rnd_predictor_head_forward.10} parent=19 // pred_fallthru
          _
        // Predicated region
        $region62: #{rnd_predictor_head_forward.10} parent=19 // pred_check
          %p454 = pneg %p93
        $region63: #{rnd_predictor_head_forward.10} parent=19 // pred_check_branch
          %456 = sbr.rel (%p454) target = $region65
        $region64: #{rnd_predictor_head_forward.10} parent=19 // pred_region
          %p457 = scmp.lt.s32.totalorder %s17, 3
          %s458 = scalar_select %p457, %s17, 3
          %s459 = scalar_lea.vmem %s2, %s458
        $region65: #{rnd_predictor_head_forward.10} parent=19 // pred_fallthru
          _
      $region20: #{rnd_predictor_head_forward.10} parent=5 // pred_fallthru
        _
      %p460 = scmp.le.s32.totalorder 1, %s9
      %p461 = scmp.lt.s32.totalorder %s9, 5
      %p462 = pnand %p460, %p461
      %p463 = pneg %p462
      // Predicated region
      $region66: #{rnd_predictor_head_forward.10} parent=5 // pred_check
        _
      $region67: #{rnd_predictor_head_forward.10} parent=5 // pred_check_branch
        %465 = sbr.rel (%p462) target = $region69
      $region68: #{rnd_predictor_head_forward.10} parent=5 // pred_region
        %s466 = ssub.s32 %s9, 1
        %s467 = sand.u32 %s60, 1
        %s468 = sand.u32 %s60, 1
        %s469 = smul.addr %s468, 256
        %s470 = scalar_lea.vmem [#allocation2], %s469
        // Predicated region
        $region70: #{rnd_predictor_head_forward.10} parent=68 // pred_check
          %p471 = pneg %p73
        $region71: #{rnd_predictor_head_forward.10} parent=68 // pred_check_branch
          %473 = sbr.rel (%p471) target = $region73
        $region72: #{rnd_predictor_head_forward.10} parent=68 // pred_region
          _
        $region73: #{rnd_predictor_head_forward.10} parent=68 // pred_fallthru
          _
        %p474 = scmp.lt.s32.totalorder %s18, 0
        %s475 = scalar_select %p474, %s18, 0
        %s476 = smul.addr %s475, 4
        %s477 = smul.addr %s476, 4
        %s478 = scalar_lea.vmem %s0, %s477
        %p479 = pneg %p47
        %p480 = pneg %p44
        %s481 = sand.u32 %s60, 1
        %s482 = sand.u32 %s60, 1
        %s483 = smul.addr %s482, 256
        %s484 = scalar_lea.vmem [#allocation2], %s483
        %p485 = pneg %p73
        %p486 = pneg %p70
        %p487 = scmp.lt.s32.totalorder %s19, 3
        %s488 = scalar_select %p487, %s19, 3
        %s489 = scalar_lea.vmem %s2, %s488
        %p490 = pneg %p99
        %p491 = pneg %p96
        %p492 = pneg %p127
        %p493 = pneg %p124
        %p494 = scmp.lt.s32.totalorder %s18, 0
        %s495 = scalar_select %p494, %s18, 0
        %p496 = scmp.lt.s32.totalorder %s19, 3
        %s497 = scalar_select %p496, %s19, 3
        %s498 = smul.addr %s495, 4
        %s499 = sadd.s32 %s497, %s498
        %s500 = smul.addr %s499, 4
        %s501 = scalar_lea.vmem %s3, %s500
        %p502 = scmp.lt.s32.totalorder %s18, 0
        %s503 = scalar_select %p502, %s18, 0
        %s504 = smul.addr %s503, 4
        %s505 = smul.addr %s504, 4
        %s506 = scalar_lea.vmem %s0, %s505
        %p507 = scmp.lt.s32.totalorder %s19, 3
        %s508 = scalar_select %p507, %s19, 3
        %s509 = scalar_lea.vmem %s2, %s508
        %p510 = scmp.lt.s32.totalorder %s18, 0
        %s511 = scalar_select %p510, %s18, 0
        %p512 = scmp.lt.s32.totalorder %s19, 3
        %s513 = scalar_select %p512, %s19, 3
        %s514 = smul.addr %s511, 4
        %s515 = sadd.s32 %s513, %s514
        %s516 = smul.addr %s515, 4
        %s517 = scalar_lea.vmem %s3, %s516
        %v519 = vld [vmem:[%s506] sm:$0xff]
        %v520 = vld [vmem:[%s506 + $0x8] sm:$0xff]
        %v521 = vld [vmem:[%s470] sm:$0xf]
        %v522 = vld [vmem:[%s470 + $0x4] sm:$0xf]
        %v523 = vld [vmem:[%s470 + $0x8] sm:$0xf]
        %v524 = vld [vmem:[%s470 + $0xc] sm:$0xf]
        %v525 = vld [vmem:[%s470 + $0x10] sm:$0xf]
        %v526 = vld [vmem:[%s470 + $0x14] sm:$0xf]
        %v527 = vld [vmem:[%s470 + $0x18] sm:$0xf]
        %v528 = vld [vmem:[%s470 + $0x1c] sm:$0xf]
        %v529 = vld [vmem:[%s470 + $0x20] sm:$0xf]
        %v530 = vld [vmem:[%s470 + $0x24] sm:$0xf]
        %v531 = vld [vmem:[%s470 + $0x28] sm:$0xf]
        %v532 = vld [vmem:[%s470 + $0x2c] sm:$0xf]
        %v533 = vld [vmem:[%s470 + $0x30] sm:$0xf]
        %v534 = vld [vmem:[%s470 + $0x34] sm:$0xf]
        %v535 = vld [vmem:[%s470 + $0x38] sm:$0xf]
        %v536 = vld [vmem:[%s470 + $0x3c] sm:$0xf]
        %v537 = vld [vmem:[%s470 + $0x40] sm:$0xf]
        %v538 = vld [vmem:[%s470 + $0x44] sm:$0xf]
        %v539 = vld [vmem:[%s470 + $0x48] sm:$0xf]
        %v540 = vld [vmem:[%s470 + $0x4c] sm:$0xf]
        %v541 = vld [vmem:[%s470 + $0x50] sm:$0xf]
        %v542 = vld [vmem:[%s470 + $0x54] sm:$0xf]
        %v543 = vld [vmem:[%s470 + $0x58] sm:$0xf]
        %v544 = vld [vmem:[%s470 + $0x5c] sm:$0xf]
        %v545 = vld [vmem:[%s470 + $0x60] sm:$0xf]
        %v546 = vld [vmem:[%s470 + $0x64] sm:$0xf]
        %v547 = vld [vmem:[%s470 + $0x68] sm:$0xf]
        %v548 = vld [vmem:[%s470 + $0x6c] sm:$0xf]
        %v549 = vld [vmem:[%s470 + $0x70] sm:$0xf]
        %v550 = vld [vmem:[%s470 + $0x74] sm:$0xf]
        %v551 = vld [vmem:[%s470 + $0x78] sm:$0xf]
        %v552 = vld [vmem:[%s470 + $0x7c] sm:$0xf]
        %v553 = vld [vmem:[%s470 + $0x80] sm:$0xf]
        %v554 = vld [vmem:[%s470 + $0x84] sm:$0xf]
        %v555 = vld [vmem:[%s470 + $0x88] sm:$0xf]
        %v556 = vld [vmem:[%s470 + $0x8c] sm:$0xf]
        %v557 = vld [vmem:[%s470 + $0x90] sm:$0xf]
        %v558 = vld [vmem:[%s470 + $0x94] sm:$0xf]
        %v559 = vld [vmem:[%s470 + $0x98] sm:$0xf]
        %v560 = vld [vmem:[%s470 + $0x9c] sm:$0xf]
        %v561 = vld [vmem:[%s470 + $0xa0] sm:$0xf]
        %v562 = vld [vmem:[%s470 + $0xa4] sm:$0xf]
        %v563 = vld [vmem:[%s470 + $0xa8] sm:$0xf]
        %v564 = vld [vmem:[%s470 + $0xac] sm:$0xf]
        %v565 = vld [vmem:[%s470 + $0xb0] sm:$0xf]
        %v566 = vld [vmem:[%s470 + $0xb4] sm:$0xf]
        %v567 = vld [vmem:[%s470 + $0xb8] sm:$0xf]
        %v568 = vld [vmem:[%s470 + $0xbc] sm:$0xf]
        %v569 = vld [vmem:[%s470 + $0xc0] sm:$0xf]
        %v570 = vld [vmem:[%s470 + $0xc4] sm:$0xf]
        %v571 = vld [vmem:[%s470 + $0xc8] sm:$0xf]
        %v572 = vld [vmem:[%s470 + $0xcc] sm:$0xf]
        %v573 = vld [vmem:[%s470 + $0xd0] sm:$0xf]
        %v574 = vld [vmem:[%s470 + $0xd4] sm:$0xf]
        %v575 = vld [vmem:[%s470 + $0xd8] sm:$0xf]
        %v576 = vld [vmem:[%s470 + $0xdc] sm:$0xf]
        %v577 = vld [vmem:[%s470 + $0xe0] sm:$0xf]
        %v578 = vld [vmem:[%s470 + $0xe4] sm:$0xf]
        %v579 = vld [vmem:[%s470 + $0xe8] sm:$0xf]
        %v580 = vld [vmem:[%s470 + $0xec] sm:$0xf]
        %v581 = vld [vmem:[%s470 + $0xf0] sm:$0xf]
        %v582 = vld [vmem:[%s470 + $0xf4] sm:$0xf]
        %v583 = vld [vmem:[%s470 + $0xf8] sm:$0xf]
        %v584 = vld [vmem:[%s470 + $0xfc] sm:$0xf]
        %v585 = vld [vmem:[%s509] sm:$0x1]
        %v587 = vlaneseq
        %v588 = vshrl.u32 %v587, 7
        %v589 = vsub.s32 0, %v588
        %v590 = vrot.slane %v585, %v589
        %v594 = vunpack.c.l.b16 %v519
        %v595 = vunpack.c.h.b16 %v519
        %v596 = vunpack.c.l.b16 %v520
        %v597 = vunpack.c.h.b16 %v520
        %v598 = vpack.c.b16 %v594, %v594
        %v599 = vpack.c.b16 %v595, %v595
        %v600 = vpack.c.b16 %v596, %v596
        %v601 = vpack.c.b16 %v597, %v597
        %v670 = vunpack.c.l.b16 %v521
        %v671 = vunpack.c.l.b16 %v522
        %v672 = vunpack.c.l.b16 %v523
        %v673 = vunpack.c.l.b16 %v524
        %v674 = vunpack.c.l.b16 %v525
        %v675 = vunpack.c.l.b16 %v526
        %v676 = vunpack.c.l.b16 %v527
        %v677 = vunpack.c.l.b16 %v528
        %v678 = vunpack.c.l.b16 %v529
        %v679 = vunpack.c.l.b16 %v530
        %v680 = vunpack.c.l.b16 %v531
        %v681 = vunpack.c.l.b16 %v532
        %v682 = vunpack.c.l.b16 %v533
        %v683 = vunpack.c.l.b16 %v534
        %v684 = vunpack.c.l.b16 %v535
        %v685 = vunpack.c.l.b16 %v536
        %v686 = vunpack.c.l.b16 %v537
        %v687 = vunpack.c.l.b16 %v538
        %v688 = vunpack.c.l.b16 %v539
        %v689 = vunpack.c.l.b16 %v540
        %v690 = vunpack.c.l.b16 %v541
        %v691 = vunpack.c.l.b16 %v542
        %v692 = vunpack.c.l.b16 %v543
        %v693 = vunpack.c.l.b16 %v544
        %v694 = vunpack.c.l.b16 %v545
        %v695 = vunpack.c.l.b16 %v546
        %v696 = vunpack.c.l.b16 %v547
        %v697 = vunpack.c.l.b16 %v548
        %v698 = vunpack.c.l.b16 %v549
        %v699 = vunpack.c.l.b16 %v550
        %v700 = vunpack.c.l.b16 %v551
        %v701 = vunpack.c.l.b16 %v552
        %v702 = vunpack.c.l.b16 %v553
        %v703 = vunpack.c.l.b16 %v554
        %v704 = vunpack.c.l.b16 %v555
        %v705 = vunpack.c.l.b16 %v556
        %v706 = vunpack.c.l.b16 %v557
        %v707 = vunpack.c.l.b16 %v558
        %v708 = vunpack.c.l.b16 %v559
        %v709 = vunpack.c.l.b16 %v560
        %v710 = vunpack.c.l.b16 %v561
        %v711 = vunpack.c.l.b16 %v562
        %v712 = vunpack.c.l.b16 %v563
        %v713 = vunpack.c.l.b16 %v564
        %v714 = vunpack.c.l.b16 %v565
        %v715 = vunpack.c.l.b16 %v566
        %v716 = vunpack.c.l.b16 %v567
        %v717 = vunpack.c.l.b16 %v568
        %v718 = vunpack.c.l.b16 %v569
        %v719 = vunpack.c.l.b16 %v570
        %v720 = vunpack.c.l.b16 %v571
        %v721 = vunpack.c.l.b16 %v572
        %v722 = vunpack.c.l.b16 %v573
        %v723 = vunpack.c.l.b16 %v574
        %v724 = vunpack.c.l.b16 %v575
        %v725 = vunpack.c.l.b16 %v576
        %v726 = vunpack.c.l.b16 %v577
        %v727 = vunpack.c.l.b16 %v578
        %v728 = vunpack.c.l.b16 %v579
        %v729 = vunpack.c.l.b16 %v580
        %v730 = vunpack.c.l.b16 %v581
        %v731 = vunpack.c.l.b16 %v582
        %v732 = vunpack.c.l.b16 %v583
        %v733 = vunpack.c.l.b16 %v584
        %v734 = vpack.c.b16 %v671, %v670
        %v735 = vpack.c.b16 %v673, %v672
        %v736 = vpack.c.b16 %v675, %v674
        %v737 = vpack.c.b16 %v677, %v676
        %v738 = vpack.c.b16 %v679, %v678
        %v739 = vpack.c.b16 %v681, %v680
        %v740 = vpack.c.b16 %v683, %v682
        %v741 = vpack.c.b16 %v685, %v684
        %v742 = vpack.c.b16 %v687, %v686
        %v743 = vpack.c.b16 %v689, %v688
        %v744 = vpack.c.b16 %v691, %v690
        %v745 = vpack.c.b16 %v693, %v692
        %v746 = vpack.c.b16 %v695, %v694
        %v747 = vpack.c.b16 %v697, %v696
        %v748 = vpack.c.b16 %v699, %v698
        %v749 = vpack.c.b16 %v701, %v700
        %v750 = vpack.c.b16 %v703, %v702
        %v751 = vpack.c.b16 %v705, %v704
        %v752 = vpack.c.b16 %v707, %v706
        %v753 = vpack.c.b16 %v709, %v708
        %v754 = vpack.c.b16 %v711, %v710
        %v755 = vpack.c.b16 %v713, %v712
        %v756 = vpack.c.b16 %v715, %v714
        %v757 = vpack.c.b16 %v717, %v716
        %v758 = vpack.c.b16 %v719, %v718
        %v759 = vpack.c.b16 %v721, %v720
        %v760 = vpack.c.b16 %v723, %v722
        %v761 = vpack.c.b16 %v725, %v724
        %v762 = vpack.c.b16 %v727, %v726
        %v763 = vpack.c.b16 %v729, %v728
        %v764 = vpack.c.b16 %v731, %v730
        %v765 = vpack.c.b16 %v733, %v732
        %798 = vmatprep.subr.bf16.mxu0 0
        %799 = vmatpush1.bf16.msra.mxu0 %v734
        %800 = vmatprep.subr.bf16.mxu0 0
        %801 = vmatpush1.bf16.msra.mxu0 %v735
        %802 = vmatprep.subr.bf16.mxu0 0
        %803 = vmatpush1.bf16.msra.mxu0 %v736
        %804 = vmatprep.subr.bf16.mxu0 0
        %805 = vmatpush1.bf16.msra.mxu0 %v737
        %806 = vmatprep.subr.bf16.mxu0 0
        %807 = vmatpush1.bf16.msra.mxu0 %v738
        %808 = vmatprep.subr.bf16.mxu0 0
        %809 = vmatpush1.bf16.msra.mxu0 %v739
        %810 = vmatprep.subr.bf16.mxu0 0
        %811 = vmatpush1.bf16.msra.mxu0 %v740
        %812 = vmatprep.subr.bf16.mxu0 0
        %813 = vmatpush1.bf16.msra.mxu0 %v741
        %814 = vmatprep.subr.bf16.mxu0 0
        %815 = vmatpush1.bf16.msra.mxu0 %v742
        %816 = vmatprep.subr.bf16.mxu0 0
        %817 = vmatpush1.bf16.msra.mxu0 %v743
        %818 = vmatprep.subr.bf16.mxu0 0
        %819 = vmatpush1.bf16.msra.mxu0 %v744
        %820 = vmatprep.subr.bf16.mxu0 0
        %821 = vmatpush1.bf16.msra.mxu0 %v745
        %822 = vmatprep.subr.bf16.mxu0 0
        %823 = vmatpush1.bf16.msra.mxu0 %v746
        %824 = vmatprep.subr.bf16.mxu0 0
        %825 = vmatpush1.bf16.msra.mxu0 %v747
        %826 = vmatprep.subr.bf16.mxu0 0
        %827 = vmatpush1.bf16.msra.mxu0 %v748
        %828 = vmatprep.subr.bf16.mxu0 0
        %829 = vmatpush1.bf16.msra.mxu0 %v749
        %830 = vmatprep.mubr.bf16.mxu0 %v599
        %831 = vmatmul.mubr.bf16.gmra.mrb[0].mxu0 %v598
        %v832 = vpop.f32.mrb[0].mxu0
        %v833 = vadd.f32 %v590, %v832
        %v834 = vpop.f32.mrb[0].mxu0
        %v835 = vpop.f32.mrb[0].mxu0
        %v836 = vpop.f32.mrb[0].mxu0
        %837 = vdwg.mxu0
        %838 = vmatprep.subr.bf16.mxu0 0
        %839 = vmatpush1.bf16.msra.mxu0 %v750
        %840 = vmatprep.subr.bf16.mxu0 0
        %841 = vmatpush1.bf16.msra.mxu0 %v751
        %842 = vmatprep.subr.bf16.mxu0 0
        %843 = vmatpush1.bf16.msra.mxu0 %v752
        %844 = vmatprep.subr.bf16.mxu0 0
        %845 = vmatpush1.bf16.msra.mxu0 %v753
        %846 = vmatprep.subr.bf16.mxu0 0
        %847 = vmatpush1.bf16.msra.mxu0 %v754
        %848 = vmatprep.subr.bf16.mxu0 0
        %849 = vmatpush1.bf16.msra.mxu0 %v755
        %850 = vmatprep.subr.bf16.mxu0 0
        %851 = vmatpush1.bf16.msra.mxu0 %v756
        %852 = vmatprep.subr.bf16.mxu0 0
        %853 = vmatpush1.bf16.msra.mxu0 %v757
        %854 = vmatprep.subr.bf16.mxu0 0
        %855 = vmatpush1.bf16.msra.mxu0 %v758
        %856 = vmatprep.subr.bf16.mxu0 0
        %857 = vmatpush1.bf16.msra.mxu0 %v759
        %858 = vmatprep.subr.bf16.mxu0 0
        %859 = vmatpush1.bf16.msra.mxu0 %v760
        %860 = vmatprep.subr.bf16.mxu0 0
        %861 = vmatpush1.bf16.msra.mxu0 %v761
        %862 = vmatprep.subr.bf16.mxu0 0
        %863 = vmatpush1.bf16.msra.mxu0 %v762
        %864 = vmatprep.subr.bf16.mxu0 0
        %865 = vmatpush1.bf16.msra.mxu0 %v763
        %866 = vmatprep.subr.bf16.mxu0 0
        %867 = vmatpush1.bf16.msra.mxu0 %v764
        %868 = vmatprep.subr.bf16.mxu0 0
        %869 = vmatpush1.bf16.msra.mxu0 %v765
        %870 = vmatprep.mubr.bf16.mxu0 %v601
        %871 = vmatmul.mubr.bf16.gmra.mrb[0].mxu0 %v600
        %v872 = vpop.f32.mrb[0].mxu0
        %v873 = vadd.f32 %v833, %v872
        %v874 = vpop.f32.mrb[0].mxu0
        %v875 = vpop.f32.mrb[0].mxu0
        %v876 = vpop.f32.mrb[0].mxu0
        %877 = vdwg.mxu0
        %v878 = vmax.f32 %v873, 0.0
        %v879 = vpack.c.bf16 %v878, %v878
        %880 = vst [vmem:[%s517] sm:$0xf] %v879
        %p881 = scmp.lt.s32.totalorder %s18, 0
        %s882 = scalar_select %p881, %s18, 0
        %p883 = scmp.lt.s32.totalorder %s19, 3
        %s884 = scalar_select %p883, %s19, 3
        %s885 = smul.addr %s882, 4
        %s886 = sadd.s32 %s884, %s885
        %s887 = smul.addr %s886, 4
        %s888 = scalar_lea.vmem %s3, %s887
        // Predicated region
        $region74: #{rnd_predictor_head_forward.10} parent=68 // pred_check
          %p889 = pneg %p124
        $region75: #{rnd_predictor_head_forward.10} parent=68 // pred_check_branch
          %891 = sbr.rel (%p889) target = $region77
        $region76: #{rnd_predictor_head_forward.10} parent=68 // pred_region
          _
        $region77: #{rnd_predictor_head_forward.10} parent=68 // pred_fallthru
          _
      $region69: #{rnd_predictor_head_forward.10} parent=5 // pred_fallthru
        _
      %p892 = scmp.le.s32.totalorder 2, %s9
      // Predicated region
      $region78: #{rnd_predictor_head_forward.10} parent=5 // pred_check
        %p893 = pneg %p892
      $region79: #{rnd_predictor_head_forward.10} parent=5 // pred_check_branch
        %895 = sbr.rel (%p893) target = $region81
      $region80: #{rnd_predictor_head_forward.10} parent=5 // pred_region
        %s896 = ssub.s32 %s9, 2
        // Predicated region
        $region82: #{rnd_predictor_head_forward.10} parent=80 // pred_check
          %p897 = pneg %p130
        $region83: #{rnd_predictor_head_forward.10} parent=80 // pred_check_branch
          %899 = sbr.rel (%p897) target = $region85
        $region84: #{rnd_predictor_head_forward.10} parent=80 // pred_region
          %p900 = scmp.lt.s32.totalorder %s20, 0
          %s901 = scalar_select %p900, %s20, 0
          %p902 = scmp.lt.s32.totalorder %s21, 3
          %s903 = scalar_select %p902, %s21, 3
          %s904 = smul.addr %s901, 4
          %s905 = sadd.s32 %s903, %s904
          %s906 = smul.addr %s905, 4
          %s907 = scalar_lea.vmem %s3, %s906
        $region85: #{rnd_predictor_head_forward.10} parent=80 // pred_fallthru
          _
      $region81: #{rnd_predictor_head_forward.10} parent=5 // pred_fallthru
        _
    $region6: #{rnd_predictor_head_forward.10} parent=1 // loop_footer
      %s13 = sadd.s32 1, %s9
    $region7: #{rnd_predictor_head_forward.10} parent=1 // loop_footer_branch
      %8 = sbr.rel target = $region3
    $region8: #{rnd_predictor_head_forward.10} parent=1 // loop_exit
      _

// kernel: rnd_predictor_head_forward.11
$region0: #{rnd_predictor_head_forward.11}
  #allocation0 [shape = 'u32[]', space=smem, size = 0x4, offset = 0x4, fixed_abs, tag = 'smem constant byte address 0x4 - core index']
  #allocation1 [shape = 'u32[144,128]{1,0:T(1,128)}', space=vmem, size = 0x12000, scoped, tag = 'internal scratch']
  %s0 = inlined_call_operand.vmem [shape: bf16[8,512], index: 0, kind: input, shape index: {}]
  %s1 = inlined_call_operand.vmem [shape: bf16[512,512], index: 1, kind: input, shape index: {}]
  %s2 = inlined_call_operand.vmem [shape: f32[1,512], index: 2, kind: input, shape index: {}]
  %s3 = inlined_call_operand.vmem [shape: f32[8,512], index: 3, kind: output, shape index: {}]
  %s4 = sld [smem:[#allocation0]]
  $region86: #{rnd_predictor_head_forward.11} parent=0
    _
  %s6 = ssub.s32 1, %s4
  %s7 = scalar_select 0, %s6, %s4
  $region1: #{rnd_predictor_head_forward.11} parent=0
    #allocation2 [shape = 'u8[262144]{0}', space=vmem, size = 0x40000, scoped, tag = 'input window, operand 1']
    loop: start=0, step=1, limit=6
    $region2: #{rnd_predictor_head_forward.11} parent=1 // loop_pre_header
      _
    $region3: #{rnd_predictor_head_forward.11} parent=1 // loop_header
      %s9 = sphi 0, %s13
      %p10 = scmp.ge.s32.totalorder %s9, 6
      %s16 = sphi 0, %s28
      %s17 = sphi 0, %s24
      %s18 = sphi 0, %s16
      %s19 = sphi 0, %s17
      %s20 = sphi 0, %s18
      %s21 = sphi 0, %s19
      %s31 = sphi 0, %s33
      %s34 = sphi 0, %s31
      %s35 = sphi 0, %s34
      %s51 = sphi 0, %s35
      %s57 = sphi 0, %s59
      %s60 = sphi 0, %s57
      %s61 = sphi 0, %s60
      %s77 = sphi 0, %s61
      %s83 = sphi 0, %s85
      %s86 = sphi 0, %s83
      %s87 = sphi 0, %s86
      %s103 = sphi 0, %s87
      %s111 = sphi 0, %s113
      %s114 = sphi 0, %s111
      %s115 = sphi 0, %s114
      %s131 = sphi 0, %s115
    $region4: #{rnd_predictor_head_forward.11} parent=1 // loop_header_branch
      %12 = sbr.rel (%p10) target = $region8
    $region5: #{rnd_predictor_head_forward.11} parent=1 // loop_body
      %s14 = ssub.s32 %s9, 1
      %s15 = ssub.s32 %s9, 2
      %s22 = sadd.s32 1, %s17
      %p23 = scmp.ge.s32.totalorder %s22, 4
      %s24 = scalar_select %p23, 0, %s22
      %s25 = sadd.s32 1, %s16
      %s26 = scalar_select %p23, %s25, %s16
      %p27 = scmp.ge.s32.totalorder %s26, 1
      %s28 = scalar_select %p27, 0, %s26
      %s29 = ssub.s32 %s16, %s28
      %p30 = scmp.eq.s32.totalorder %s29, 0
      %s32 = sadd.s32 %s31, 1
      %s33 = scalar_select %p30, %s31, %s32
      %p36 = pneg %p30
      %p37 = scmp.eq.s32.totalorder %s9, 3
      %p38 = por %p36, %p37
      %p39 = scmp.ne.s32.totalorder %s31, %s34
      %p40 = scmp.eq.s32.totalorder %s9, 0
      %p41 = por %p39, %p40
      %p42 = scmp.ne.s32.totalorder %s31, %s34
      %p43 = scmp.eq.s32.totalorder %s14, 3
      %p44 = por %p42, %p43
      %p45 = scmp.ne.s32.totalorder %s34, %s35
      %p46 = scmp.eq.s32.totalorder %s14, 0
      %p47 = por %p45, %p46
      %p48 = scmp.ne.s32.totalorder %s34, %s35
      %p49 = scmp.eq.s32.totalorder %s15, 3
      %p50 = por %p48, %p49
      %p52 = scmp.ne.s32.totalorder %s35, %s51
      %p53 = scmp.eq.s32.totalorder %s15, 0
      %p54 = por %p52, %p53
      %s55 = ssub.s32 %s17, %s24
      %p56 = scmp.eq.s32.totalorder %s55, 0
      %s58 = sadd.s32 %s57, 1
      %s59 = scalar_select %p56, %s57, %s58
      %p62 = pneg %p56
      %p63 = scmp.eq.s32.totalorder %s9, 3
      %p64 = por %p62, %p63
      %p65 = scmp.ne.s32.totalorder %s57, %s60
      %p66 = scmp.eq.s32.totalorder %s9, 0
      %p67 = por %p65, %p66
      %p68 = scmp.ne.s32.totalorder %s57, %s60
      %p69 = scmp.eq.s32.totalorder %s14, 3
      %p70 = por %p68, %p69
      %p71 = scmp.ne.s32.totalorder %s60, %s61
      %p72 = scmp.eq.s32.totalorder %s14, 0
      %p73 = por %p71, %p72
      %p74 = scmp.ne.s32.totalorder %s60, %s61
      %p75 = scmp.eq.s32.totalorder %s15, 3
      %p76 = por %p74, %p75
      %p78 = scmp.ne.s32.totalorder %s61, %s77
      %p79 = scmp.eq.s32.totalorder %s15, 0
      %p80 = por %p78, %p79
      %s81 = ssub.s32 %s17, %s24
      %p82 = scmp.eq.s32.totalorder %s81, 0
      %s84 = sadd.s32 %s83, 1
      %s85 = scalar_select %p82, %s83, %s84
      %p88 = pneg %p82
      %p89 = scmp.eq.s32.totalorder %s9, 3
      %p90 = por %p88, %p89
      %p91 = scmp.ne.s32.totalorder %s83, %s86
      %p92 = scmp.eq.s32.totalorder %s9, 0
      %p93 = por %p91, %p92
      %p94 = scmp.ne.s32.totalorder %s83, %s86
      %p95 = scmp.eq.s32.totalorder %s14, 3
      %p96 = por %p94, %p95
      %p97 = scmp.ne.s32.totalorder %s86, %s87
      %p98 = scmp.eq.s32.totalorder %s14, 0
      %p99 = por %p97, %p98
      %p100 = scmp.ne.s32.totalorder %s86, %s87
      %p101 = scmp.eq.s32.totalorder %s15, 3
      %p102 = por %p100, %p101
      %p104 = scmp.ne.s32.totalorder %s87, %s103
      %p105 = scmp.eq.s32.totalorder %s15, 0
      %p106 = por %p104, %p105
      %s107 = ssub.s32 %s16, %s28
      %s108 = ssub.s32 %s17, %s24
      %s109 = sor.u32 %s107, %s108
      %p110 = scmp.eq.s32.totalorder %s109, 0
      %s112 = sadd.s32 %s111, 1
      %s113 = scalar_select %p110, %s111, %s112
      %p116 = pneg %p110
      %p117 = scmp.eq.s32.totalorder %s9, 3
      %p118 = por %p116, %p117
      %p119 = scmp.ne.s32.totalorder %s111, %s114
      %p120 = scmp.eq.s32.totalorder %s9, 0
      %p121 = por %p119, %p120
      %p122 = scmp.ne.s32.totalorder %s111, %s114
      %p123 = scmp.eq.s32.totalorder %s14, 3
      %p124 = por %p122, %p123
      %p125 = scmp.ne.s32.totalorder %s114, %s115
      %p126 = scmp.eq.s32.totalorder %s14, 0
      %p127 = por %p125, %p126
      %p128 = scmp.ne.s32.totalorder %s114, %s115
      %p129 = scmp.eq.s32.totalorder %s15, 3
      %p130 = por %p128, %p129
      %p132 = scmp.ne.s32.totalorder %s115, %s131
      %p133 = scmp.eq.s32.totalorder %s15, 0
      %p134 = por %p132, %p133
      %p135 = scmp.le.s32.totalorder 1, %s9
      %p136 = scmp.lt.s32.totalorder %s9, 5
      %p137 = pnand %p135, %p136
      %p138 = pneg %p137
      // Predicated region
      $region9: #{rnd_predictor_head_forward.11} parent=5 // pred_check
        _
      $region10: #{rnd_predictor_head_forward.11} parent=5 // pred_check_branch
        %140 = sbr.rel (%p137) target = $region12
      $region11: #{rnd_predictor_head_forward.11} parent=5 // pred_region
        %s141 = ssub.s32 %s9, 1
        // Predicated region
        $region13: #{rnd_predictor_head_forward.11} parent=11 // pred_check
          %p142 = pneg %p47
        $region14: #{rnd_predictor_head_forward.11} parent=11 // pred_check_branch
          %144 = sbr.rel (%p142) target = $region16
        $region15: #{rnd_predictor_head_forward.11} parent=11 // pred_region
          %p145 = scmp.lt.s32.totalorder %s18, 0
          %s146 = scalar_select %p145, %s18, 0
          %s147 = smul.addr %s146, 4
          %s148 = smul.addr %s147, 4
          %s149 = scalar_lea.vmem %s0, %s148
        $region16: #{rnd_predictor_head_forward.11} parent=11 // pred_fallthru
          _
      $region12: #{rnd_predictor_head_forward.11} parent=5 // pred_fallthru
        _
      %p150 = scmp.lt.s32.totalorder %s9, 4
      // Predicated region
      $region17: #{rnd_predictor_head_forward.11} parent=5 // pred_check
        %p151 = pneg %p150
      $region18: #{rnd_predictor_head_forward.11} parent=5 // pred_check_branch
        %153 = sbr.rel (%p151) target = $region20
      $region19: #{rnd_predictor_head_forward.11} parent=5 // pred_region
        // Predicated region
        $region21: #{rnd_predictor_head_forward.11} parent=19 // pred_check
          %p154 = pneg %p67
        $region22: #{rnd_predictor_head_forward.11} parent=19 // pred_check_branch
          %156 = sbr.rel (%p154) target = $region24
        $region23: #{rnd_predictor_head_forward.11} parent=19 // pred_region
          %s157 = sand.u32 %s57, 1
          %s158 = sand.u32 %s57, 1
          %s159 = smul.addr %s158, 256
          %s160 = scalar_lea.vmem [#allocation2], %s159
          %s161 = smul.addr %s17, 4
          %s162 = scalar_lea.vmem %s1, %s161
          // Predicated region
          $region25: #{rnd_predictor_head_forward.11} parent=23 // pred_check
            _
          $region26: #{rnd_predictor_head_forward.11} parent=23 // pred_check_branch
            %164 = sbr.rel (0) target = $region28
          $region27: #{rnd_predictor_head_forward.11} parent=23 // pred_region
            // Predicated region
            $region29: #{rnd_predictor_head_forward.11} parent=27 // pred_check
              _
            $region30: #{rnd_predictor_head_forward.11} parent=27 // pred_check_branch
              %166 = sbr.rel target = $region32
            $region31: #{rnd_predictor_head_forward.11} parent=27 // pred_region
              // Predicated region
              $region44: #{rnd_predictor_head_forward.11} parent=31 // pred_check
                _
              $region45: #{rnd_predictor_head_forward.11} parent=31 // pred_check_branch
                %307 = sbr.rel (0) target = $region47
              $region46: #{rnd_predictor_head_forward.11} parent=31 // pred_region
                loop: start=0, step=1, limit=1
                $region48: #{rnd_predictor_head_forward.11} parent=46 // loop_pre_header
                  _
                $region49: #{rnd_predictor_head_forward.11} parent=46 // loop_header
                  %s309 = sphi 0, %s313
                  %p310 = scmp.ge.s32.totalorder %s309, 1
                  %s314 = sphi %s162, %s162
                  %s315 = sphi %s160, %s160
                $region50: #{rnd_predictor_head_forward.11} parent=46 // loop_header_branch
                  %312 = sbr.rel (%p310) target = $region54
                $region51: #{rnd_predictor_head_forward.11} parent=46 // loop_body
                  _
                $region52: #{rnd_predictor_head_forward.11} parent=46 // loop_footer
                  %s313 = sadd.s32 1, %s309
                $region53: #{rnd_predictor_head_forward.11} parent=46 // loop_footer_branch
                  %308 = sbr.rel target = $region49
                $region54: #{rnd_predictor_head_forward.11} parent=46 // loop_exit
                  _
                loop: start=0, step=1, limit=1
                $region55: #{rnd_predictor_head_forward.11} parent=46 // loop_pre_header
                  _
                $region56: #{rnd_predictor_head_forward.11} parent=46 // loop_header
                  %s318 = sphi 0, %s322
                  %p319 = scmp.ge.s32.totalorder %s318, 1
                  %s323 = sphi %s162, %s162
                  %s324 = sphi %s160, %s160
                $region57: #{rnd_predictor_head_forward.11} parent=46 // loop_header_branch
                  %321 = sbr.rel (%p319) target = $region61
                $region58: #{rnd_predictor_head_forward.11} parent=46 // loop_body
                  %v325 = vld [vmem:[%s323] sm:$0xf]
                  %326 = vst [vmem:[%s324] sm:$0xf] %v325
                  %v327 = vld [vmem:[%s323 + $0x10] sm:$0xf]
                  %328 = vst [vmem:[%s324 + $0x4] sm:$0xf] %v327
                  %v329 = vld [vmem:[%s323 + $0x20] sm:$0xf]
                  %330 = vst [vmem:[%s324 + $0x8] sm:$0xf] %v329
                  %v331 = vld [vmem:[%s323 + $0x30] sm:$0xf]
                  %332 = vst [vmem:[%s324 + $0xc] sm:$0xf] %v331
                  %v333 = vld [vmem:[%s323 + $0x40] sm:$0xf]
                  %334 = vst [vmem:[%s324 + $0x10] sm:$0xf] %v333
                  %v335 = vld [vmem:[%s323 + $0x50] sm:$0xf]
                  %336 = vst [vmem:[%s324 + $0x14] sm:$0xf] %v335
                  %v337 = vld [vmem:[%s323 + $0x60] sm:$0xf]
                  %338 = vst [vmem:[%s324 + $0x18] sm:$0xf] %v337
                  %v339 = vld [vmem:[%s323 + $0x70] sm:$0xf]
                  %340 = vst [vmem:[%s324 + $0x1c] sm:$0xf] %v339
                  %v341 = vld [vmem:[%s323 + $0x80] sm:$0xf]
                  %342 = vst [vmem:[%s324 + $0x20] sm:$0xf] %v341
                  %v343 = vld [vmem:[%s323 + $0x90] sm:$0xf]
                  %344 = vst [vmem:[%s324 + $0x24] sm:$0xf] %v343
                  %v345 = vld [vmem:[%s323 + $0xa0] sm:$0xf]
                  %346 = vst [vmem:[%s324 + $0x28] sm:$0xf] %v345
                  %v347 = vld [vmem:[%s323 + $0xb0] sm:$0xf]
                  %348 = vst [vmem:[%s324 + $0x2c] sm:$0xf] %v347
                  %v349 = vld [vmem:[%s323 + $0xc0] sm:$0xf]
                  %350 = vst [vmem:[%s324 + $0x30] sm:$0xf] %v349
                  %v351 = vld [vmem:[%s323 + $0xd0] sm:$0xf]
                  %352 = vst [vmem:[%s324 + $0x34] sm:$0xf] %v351
                  %v353 = vld [vmem:[%s323 + $0xe0] sm:$0xf]
                  %354 = vst [vmem:[%s324 + $0x38] sm:$0xf] %v353
                  %v355 = vld [vmem:[%s323 + $0xf0] sm:$0xf]
                  %356 = vst [vmem:[%s324 + $0x3c] sm:$0xf] %v355
                  %v357 = vld [vmem:[%s323 + $0x100] sm:$0xf]
                  %358 = vst [vmem:[%s324 + $0x40] sm:$0xf] %v357
                  %v359 = vld [vmem:[%s323 + $0x110] sm:$0xf]
                  %360 = vst [vmem:[%s324 + $0x44] sm:$0xf] %v359
                  %v361 = vld [vmem:[%s323 + $0x120] sm:$0xf]
                  %362 = vst [vmem:[%s324 + $0x48] sm:$0xf] %v361
                  %v363 = vld [vmem:[%s323 + $0x130] sm:$0xf]
                  %364 = vst [vmem:[%s324 + $0x4c] sm:$0xf] %v363
                  %v365 = vld [vmem:[%s323 + $0x140] sm:$0xf]
                  %366 = vst [vmem:[%s324 + $0x50] sm:$0xf] %v365
                  %v367 = vld [vmem:[%s323 + $0x150] sm:$0xf]
                  %368 = vst [vmem:[%s324 + $0x54] sm:$0xf] %v367
                  %v369 = vld [vmem:[%s323 + $0x160] sm:$0xf]
                  %370 = vst [vmem:[%s324 + $0x58] sm:$0xf] %v369
                  %v371 = vld [vmem:[%s323 + $0x170] sm:$0xf]
                  %372 = vst [vmem:[%s324 + $0x5c] sm:$0xf] %v371
                  %v373 = vld [vmem:[%s323 + $0x180] sm:$0xf]
                  %374 = vst [vmem:[%s324 + $0x60] sm:$0xf] %v373
                  %v375 = vld [vmem:[%s323 + $0x190] sm:$0xf]
                  %376 = vst [vmem:[%s324 + $0x64] sm:$0xf] %v375
                  %v377 = vld [vmem:[%s323 + $0x1a0] sm:$0xf]
                  %378 = vst [vmem:[%s324 + $0x68] sm:$0xf] %v377
                  %v379 = vld [vmem:[%s323 + $0x1b0] sm:$0xf]
                  %380 = vst [vmem:[%s324 + $0x6c] sm:$0xf] %v379
                  %v381 = vld [vmem:[%s323 + $0x1c0] sm:$0xf]
                  %382 = vst [vmem:[%s324 + $0x70] sm:$0xf] %v381
                  %v383 = vld [vmem:[%s323 + $0x1d0] sm:$0xf]
                  %384 = vst [vmem:[%s324 + $0x74] sm:$0xf] %v383
                  %v385 = vld [vmem:[%s323 + $0x1e0] sm:$0xf]
                  %386 = vst [vmem:[%s324 + $0x78] sm:$0xf] %v385
                  %v387 = vld [vmem:[%s323 + $0x1f0] sm:$0xf]
                  %388 = vst [vmem:[%s324 + $0x7c] sm:$0xf] %v387
                  %v389 = vld [vmem:[%s323 + $0x200] sm:$0xf]
                  %390 = vst [vmem:[%s324 + $0x80] sm:$0xf] %v389
                  %v391 = vld [vmem:[%s323 + $0x210] sm:$0xf]
                  %392 = vst [vmem:[%s324 + $0x84] sm:$0xf] %v391
                  %v393 = vld [vmem:[%s323 + $0x220] sm:$0xf]
                  %394 = vst [vmem:[%s324 + $0x88] sm:$0xf] %v393
                  %v395 = vld [vmem:[%s323 + $0x230] sm:$0xf]
                  %396 = vst [vmem:[%s324 + $0x8c] sm:$0xf] %v395
                  %v397 = vld [vmem:[%s323 + $0x240] sm:$0xf]
                  %398 = vst [vmem:[%s324 + $0x90] sm:$0xf] %v397
                  %v399 = vld [vmem:[%s323 + $0x250] sm:$0xf]
                  %400 = vst [vmem:[%s324 + $0x94] sm:$0xf] %v399
                  %v401 = vld [vmem:[%s323 + $0x260] sm:$0xf]
                  %402 = vst [vmem:[%s324 + $0x98] sm:$0xf] %v401
                  %v403 = vld [vmem:[%s323 + $0x270] sm:$0xf]
                  %404 = vst [vmem:[%s324 + $0x9c] sm:$0xf] %v403
                  %v405 = vld [vmem:[%s323 + $0x280] sm:$0xf]
                  %406 = vst [vmem:[%s324 + $0xa0] sm:$0xf] %v405
                  %v407 = vld [vmem:[%s323 + $0x290] sm:$0xf]
                  %408 = vst [vmem:[%s324 + $0xa4] sm:$0xf] %v407
                  %v409 = vld [vmem:[%s323 + $0x2a0] sm:$0xf]
                  %410 = vst [vmem:[%s324 + $0xa8] sm:$0xf] %v409
                  %v411 = vld [vmem:[%s323 + $0x2b0] sm:$0xf]
                  %412 = vst [vmem:[%s324 + $0xac] sm:$0xf] %v411
                  %v413 = vld [vmem:[%s323 + $0x2c0] sm:$0xf]
                  %414 = vst [vmem:[%s324 + $0xb0] sm:$0xf] %v413
                  %v415 = vld [vmem:[%s323 + $0x2d0] sm:$0xf]
                  %416 = vst [vmem:[%s324 + $0xb4] sm:$0xf] %v415
                  %v417 = vld [vmem:[%s323 + $0x2e0] sm:$0xf]
                  %418 = vst [vmem:[%s324 + $0xb8] sm:$0xf] %v417
                  %v419 = vld [vmem:[%s323 + $0x2f0] sm:$0xf]
                  %420 = vst [vmem:[%s324 + $0xbc] sm:$0xf] %v419
                  %v421 = vld [vmem:[%s323 + $0x300] sm:$0xf]
                  %422 = vst [vmem:[%s324 + $0xc0] sm:$0xf] %v421
                  %v423 = vld [vmem:[%s323 + $0x310] sm:$0xf]
                  %424 = vst [vmem:[%s324 + $0xc4] sm:$0xf] %v423
                  %v425 = vld [vmem:[%s323 + $0x320] sm:$0xf]
                  %426 = vst [vmem:[%s324 + $0xc8] sm:$0xf] %v425
                  %v427 = vld [vmem:[%s323 + $0x330] sm:$0xf]
                  %428 = vst [vmem:[%s324 + $0xcc] sm:$0xf] %v427
                  %v429 = vld [vmem:[%s323 + $0x340] sm:$0xf]
                  %430 = vst [vmem:[%s324 + $0xd0] sm:$0xf] %v429
                  %v431 = vld [vmem:[%s323 + $0x350] sm:$0xf]
                  %432 = vst [vmem:[%s324 + $0xd4] sm:$0xf] %v431
                  %v433 = vld [vmem:[%s323 + $0x360] sm:$0xf]
                  %434 = vst [vmem:[%s324 + $0xd8] sm:$0xf] %v433
                  %v435 = vld [vmem:[%s323 + $0x370] sm:$0xf]
                  %436 = vst [vmem:[%s324 + $0xdc] sm:$0xf] %v435
                  %v437 = vld [vmem:[%s323 + $0x380] sm:$0xf]
                  %438 = vst [vmem:[%s324 + $0xe0] sm:$0xf] %v437
                  %v439 = vld [vmem:[%s323 + $0x390] sm:$0xf]
                  %440 = vst [vmem:[%s324 + $0xe4] sm:$0xf] %v439
                  %v441 = vld [vmem:[%s323 + $0x3a0] sm:$0xf]
                  %442 = vst [vmem:[%s324 + $0xe8] sm:$0xf] %v441
                  %v443 = vld [vmem:[%s323 + $0x3b0] sm:$0xf]
                  %444 = vst [vmem:[%s324 + $0xec] sm:$0xf] %v443
                  %v445 = vld [vmem:[%s323 + $0x3c0] sm:$0xf]
                  %446 = vst [vmem:[%s324 + $0xf0] sm:$0xf] %v445
                  %v447 = vld [vmem:[%s323 + $0x3d0] sm:$0xf]
                  %448 = vst [vmem:[%s324 + $0xf4] sm:$0xf] %v447
                  %v449 = vld [vmem:[%s323 + $0x3e0] sm:$0xf]
                  %450 = vst [vmem:[%s324 + $0xf8] sm:$0xf] %v449
                  %v451 = vld [vmem:[%s323 + $0x3f0] sm:$0xf]
                  %452 = vst [vmem:[%s324 + $0xfc] sm:$0xf] %v451
                $region59: #{rnd_predictor_head_forward.11} parent=46 // loop_footer
                  %s322 = sadd.s32 1, %s318
                $region60: #{rnd_predictor_head_forward.11} parent=46 // loop_footer_branch
                  %317 = sbr.rel target = $region56
                $region61: #{rnd_predictor_head_forward.11} parent=46 // loop_exit
                  _
              $region47: #{rnd_predictor_head_forward.11} parent=31 // pred_fallthru
                _
            $region32: #{rnd_predictor_head_forward.11} parent=27 // pred_fallthru
              _
            // Predicated region
            $region33: #{rnd_predictor_head_forward.11} parent=27 // pred_check
              _
            $region34: #{rnd_predictor_head_forward.11} parent=27 // pred_check_branch
              %168 = sbr.rel (0) target = $region36
            $region35: #{rnd_predictor_head_forward.11} parent=27 // pred_region
              loop: start=0, step=1, limit=1
              $region37: #{rnd_predictor_head_forward.11} parent=35 // loop_pre_header
                _
              $region38: #{rnd_predictor_head_forward.11} parent=35 // loop_header
                %s171 = sphi 0, %s175
                %p172 = scmp.ge.s32.totalorder %s171, 1
                %s176 = sphi %s162, %s162
                %s177 = sphi %s160, %s160
              $region39: #{rnd_predictor_head_forward.11} parent=35 // loop_header_branch
                %174 = sbr.rel (%p172) target = $region43
              $region40: #{rnd_predictor_head_forward.11} parent=35 // loop_body
                %v178 = vld [vmem:[%s176] sm:$0xf]
                %179 = vst [vmem:[%s177] sm:$0xf] %v178
                %v180 = vld [vmem:[%s176 + $0x10] sm:$0xf]
                %181 = vst [vmem:[%s177 + $0x4] sm:$0xf] %v180
                %v182 = vld [vmem:[%s176 + $0x20] sm:$0xf]
                %183 = vst [vmem:[%s177 + $0x8] sm:$0xf] %v182
                %v184 = vld [vmem:[%s176 + $0x30] sm:$0xf]
                %185 = vst [vmem:[%s177 + $0xc] sm:$0xf] %v184
                %v186 = vld [vmem:[%s176 + $0x40] sm:$0xf]
                %187 = vst [vmem:[%s177 + $0x10] sm:$0xf] %v186
                %v188 = vld [vmem:[%s176 + $0x50] sm:$0xf]
                %189 = vst [vmem:[%s177 + $0x14] sm:$0xf] %v188
                %v190 = vld [vmem:[%s176 + $0x60] sm:$0xf]
                %191 = vst [vmem:[%s177 + $0x18] sm:$0xf] %v190
                %v192 = vld [vmem:[%s176 + $0x70] sm:$0xf]
                %193 = vst [vmem:[%s177 + $0x1c] sm:$0xf] %v192
                %v194 = vld [vmem:[%s176 + $0x80] sm:$0xf]
                %195 = vst [vmem:[%s177 + $0x20] sm:$0xf] %v194
                %v196 = vld [vmem:[%s176 + $0x90] sm:$0xf]
                %197 = vst [vmem:[%s177 + $0x24] sm:$0xf] %v196
                %v198 = vld [vmem:[%s176 + $0xa0] sm:$0xf]
                %199 = vst [vmem:[%s177 + $0x28] sm:$0xf] %v198
                %v200 = vld [vmem:[%s176 + $0xb0] sm:$0xf]
                %201 = vst [vmem:[%s177 + $0x2c] sm:$0xf] %v200
                %v202 = vld [vmem:[%s176 + $0xc0] sm:$0xf]
                %203 = vst [vmem:[%s177 + $0x30] sm:$0xf] %v202
                %v204 = vld [vmem:[%s176 + $0xd0] sm:$0xf]
                %205 = vst [vmem:[%s177 + $0x34] sm:$0xf] %v204
                %v206 = vld [vmem:[%s176 + $0xe0] sm:$0xf]
                %207 = vst [vmem:[%s177 + $0x38] sm:$0xf] %v206
                %v208 = vld [vmem:[%s176 + $0xf0] sm:$0xf]
                %209 = vst [vmem:[%s177 + $0x3c] sm:$0xf] %v208
                %v210 = vld [vmem:[%s176 + $0x100] sm:$0xf]
                %211 = vst [vmem:[%s177 + $0x40] sm:$0xf] %v210
                %v212 = vld [vmem:[%s176 + $0x110] sm:$0xf]
                %213 = vst [vmem:[%s177 + $0x44] sm:$0xf] %v212
                %v214 = vld [vmem:[%s176 + $0x120] sm:$0xf]
                %215 = vst [vmem:[%s177 + $0x48] sm:$0xf] %v214
                %v216 = vld [vmem:[%s176 + $0x130] sm:$0xf]
                %217 = vst [vmem:[%s177 + $0x4c] sm:$0xf] %v216
                %v218 = vld [vmem:[%s176 + $0x140] sm:$0xf]
                %219 = vst [vmem:[%s177 + $0x50] sm:$0xf] %v218
                %v220 = vld [vmem:[%s176 + $0x150] sm:$0xf]
                %221 = vst [vmem:[%s177 + $0x54] sm:$0xf] %v220
                %v222 = vld [vmem:[%s176 + $0x160] sm:$0xf]
                %223 = vst [vmem:[%s177 + $0x58] sm:$0xf] %v222
                %v224 = vld [vmem:[%s176 + $0x170] sm:$0xf]
                %225 = vst [vmem:[%s177 + $0x5c] sm:$0xf] %v224
                %v226 = vld [vmem:[%s176 + $0x180] sm:$0xf]
                %227 = vst [vmem:[%s177 + $0x60] sm:$0xf] %v226
                %v228 = vld [vmem:[%s176 + $0x190] sm:$0xf]
                %229 = vst [vmem:[%s177 + $0x64] sm:$0xf] %v228
                %v230 = vld [vmem:[%s176 + $0x1a0] sm:$0xf]
                %231 = vst [vmem:[%s177 + $0x68] sm:$0xf] %v230
                %v232 = vld [vmem:[%s176 + $0x1b0] sm:$0xf]
                %233 = vst [vmem:[%s177 + $0x6c] sm:$0xf] %v232
                %v234 = vld [vmem:[%s176 + $0x1c0] sm:$0xf]
                %235 = vst [vmem:[%s177 + $0x70] sm:$0xf] %v234
                %v236 = vld [vmem:[%s176 + $0x1d0] sm:$0xf]
                %237 = vst [vmem:[%s177 + $0x74] sm:$0xf] %v236
                %v238 = vld [vmem:[%s176 + $0x1e0] sm:$0xf]
                %239 = vst [vmem:[%s177 + $0x78] sm:$0xf] %v238
                %v240 = vld [vmem:[%s176 + $0x1f0] sm:$0xf]
                %241 = vst [vmem:[%s177 + $0x7c] sm:$0xf] %v240
                %v242 = vld [vmem:[%s176 + $0x200] sm:$0xf]
                %243 = vst [vmem:[%s177 + $0x80] sm:$0xf] %v242
                %v244 = vld [vmem:[%s176 + $0x210] sm:$0xf]
                %245 = vst [vmem:[%s177 + $0x84] sm:$0xf] %v244
                %v246 = vld [vmem:[%s176 + $0x220] sm:$0xf]
                %247 = vst [vmem:[%s177 + $0x88] sm:$0xf] %v246
                %v248 = vld [vmem:[%s176 + $0x230] sm:$0xf]
                %249 = vst [vmem:[%s177 + $0x8c] sm:$0xf] %v248
                %v250 = vld [vmem:[%s176 + $0x240] sm:$0xf]
                %251 = vst [vmem:[%s177 + $0x90] sm:$0xf] %v250
                %v252 = vld [vmem:[%s176 + $0x250] sm:$0xf]
                %253 = vst [vmem:[%s177 + $0x94] sm:$0xf] %v252
                %v254 = vld [vmem:[%s176 + $0x260] sm:$0xf]
                %255 = vst [vmem:[%s177 + $0x98] sm:$0xf] %v254
                %v256 = vld [vmem:[%s176 + $0x270] sm:$0xf]
                %257 = vst [vmem:[%s177 + $0x9c] sm:$0xf] %v256
                %v258 = vld [vmem:[%s176 + $0x280] sm:$0xf]
                %259 = vst [vmem:[%s177 + $0xa0] sm:$0xf] %v258
                %v260 = vld [vmem:[%s176 + $0x290] sm:$0xf]
                %261 = vst [vmem:[%s177 + $0xa4] sm:$0xf] %v260
                %v262 = vld [vmem:[%s176 + $0x2a0] sm:$0xf]
                %263 = vst [vmem:[%s177 + $0xa8] sm:$0xf] %v262
                %v264 = vld [vmem:[%s176 + $0x2b0] sm:$0xf]
                %265 = vst [vmem:[%s177 + $0xac] sm:$0xf] %v264
                %v266 = vld [vmem:[%s176 + $0x2c0] sm:$0xf]
                %267 = vst [vmem:[%s177 + $0xb0] sm:$0xf] %v266
                %v268 = vld [vmem:[%s176 + $0x2d0] sm:$0xf]
                %269 = vst [vmem:[%s177 + $0xb4] sm:$0xf] %v268
                %v270 = vld [vmem:[%s176 + $0x2e0] sm:$0xf]
                %271 = vst [vmem:[%s177 + $0xb8] sm:$0xf] %v270
                %v272 = vld [vmem:[%s176 + $0x2f0] sm:$0xf]
                %273 = vst [vmem:[%s177 + $0xbc] sm:$0xf] %v272
                %v274 = vld [vmem:[%s176 + $0x300] sm:$0xf]
                %275 = vst [vmem:[%s177 + $0xc0] sm:$0xf] %v274
                %v276 = vld [vmem:[%s176 + $0x310] sm:$0xf]
                %277 = vst [vmem:[%s177 + $0xc4] sm:$0xf] %v276
                %v278 = vld [vmem:[%s176 + $0x320] sm:$0xf]
                %279 = vst [vmem:[%s177 + $0xc8] sm:$0xf] %v278
                %v280 = vld [vmem:[%s176 + $0x330] sm:$0xf]
                %281 = vst [vmem:[%s177 + $0xcc] sm:$0xf] %v280
                %v282 = vld [vmem:[%s176 + $0x340] sm:$0xf]
                %283 = vst [vmem:[%s177 + $0xd0] sm:$0xf] %v282
                %v284 = vld [vmem:[%s176 + $0x350] sm:$0xf]
                %285 = vst [vmem:[%s177 + $0xd4] sm:$0xf] %v284
                %v286 = vld [vmem:[%s176 + $0x360] sm:$0xf]
                %287 = vst [vmem:[%s177 + $0xd8] sm:$0xf] %v286
                %v288 = vld [vmem:[%s176 + $0x370] sm:$0xf]
                %289 = vst [vmem:[%s177 + $0xdc] sm:$0xf] %v288
                %v290 = vld [vmem:[%s176 + $0x380] sm:$0xf]
                %291 = vst [vmem:[%s177 + $0xe0] sm:$0xf] %v290
                %v292 = vld [vmem:[%s176 + $0x390] sm:$0xf]
                %293 = vst [vmem:[%s177 + $0xe4] sm:$0xf] %v292
                %v294 = vld [vmem:[%s176 + $0x3a0] sm:$0xf]
                %295 = vst [vmem:[%s177 + $0xe8] sm:$0xf] %v294
                %v296 = vld [vmem:[%s176 + $0x3b0] sm:$0xf]
                %297 = vst [vmem:[%s177 + $0xec] sm:$0xf] %v296
                %v298 = vld [vmem:[%s176 + $0x3c0] sm:$0xf]
                %299 = vst [vmem:[%s177 + $0xf0] sm:$0xf] %v298
                %v300 = vld [vmem:[%s176 + $0x3d0] sm:$0xf]
                %301 = vst [vmem:[%s177 + $0xf4] sm:$0xf] %v300
                %v302 = vld [vmem:[%s176 + $0x3e0] sm:$0xf]
                %303 = vst [vmem:[%s177 + $0xf8] sm:$0xf] %v302
                %v304 = vld [vmem:[%s176 + $0x3f0] sm:$0xf]
                %305 = vst [vmem:[%s177 + $0xfc] sm:$0xf] %v304
              $region41: #{rnd_predictor_head_forward.11} parent=35 // loop_footer
                %s175 = sadd.s32 1, %s171
              $region42: #{rnd_predictor_head_forward.11} parent=35 // loop_footer_branch
                %170 = sbr.rel target = $region38
              $region43: #{rnd_predictor_head_forward.11} parent=35 // loop_exit
                _
            $region36: #{rnd_predictor_head_forward.11} parent=27 // pred_fallthru
              _
          $region28: #{rnd_predictor_head_forward.11} parent=23 // pred_fallthru
            _
          %453 = vnop
        $region24: #{rnd_predictor_head_forward.11} parent=19 // pred_fallthru
          _
        // Predicated region
        $region62: #{rnd_predictor_head_forward.11} parent=19 // pred_check
          %p454 = pneg %p93
        $region63: #{rnd_predictor_head_forward.11} parent=19 // pred_check_branch
          %456 = sbr.rel (%p454) target = $region65
        $region64: #{rnd_predictor_head_forward.11} parent=19 // pred_region
          %p457 = scmp.lt.s32.totalorder %s17, 3
          %s458 = scalar_select %p457, %s17, 3
          %s459 = scalar_lea.vmem %s2, %s458
        $region65: #{rnd_predictor_head_forward.11} parent=19 // pred_fallthru
          _
      $region20: #{rnd_predictor_head_forward.11} parent=5 // pred_fallthru
        _
      %p460 = scmp.le.s32.totalorder 1, %s9
      %p461 = scmp.lt.s32.totalorder %s9, 5
      %p462 = pnand %p460, %p461
      %p463 = pneg %p462
      // Predicated region
      $region66: #{rnd_predictor_head_forward.11} parent=5 // pred_check
        _
      $region67: #{rnd_predictor_head_forward.11} parent=5 // pred_check_branch
        %465 = sbr.rel (%p462) target = $region69
      $region68: #{rnd_predictor_head_forward.11} parent=5 // pred_region
        %s466 = ssub.s32 %s9, 1
        %s467 = sand.u32 %s60, 1
        %s468 = sand.u32 %s60, 1
        %s469 = smul.addr %s468, 256
        %s470 = scalar_lea.vmem [#allocation2], %s469
        // Predicated region
        $region70: #{rnd_predictor_head_forward.11} parent=68 // pred_check
          %p471 = pneg %p73
        $region71: #{rnd_predictor_head_forward.11} parent=68 // pred_check_branch
          %473 = sbr.rel (%p471) target = $region73
        $region72: #{rnd_predictor_head_forward.11} parent=68 // pred_region
          _
        $region73: #{rnd_predictor_head_forward.11} parent=68 // pred_fallthru
          _
        %p474 = scmp.lt.s32.totalorder %s18, 0
        %s475 = scalar_select %p474, %s18, 0
        %s476 = smul.addr %s475, 4
        %s477 = smul.addr %s476, 4
        %s478 = scalar_lea.vmem %s0, %s477
        %p479 = pneg %p47
        %p480 = pneg %p44
        %s481 = sand.u32 %s60, 1
        %s482 = sand.u32 %s60, 1
        %s483 = smul.addr %s482, 256
        %s484 = scalar_lea.vmem [#allocation2], %s483
        %p485 = pneg %p73
        %p486 = pneg %p70
        %p487 = scmp.lt.s32.totalorder %s19, 3
        %s488 = scalar_select %p487, %s19, 3
        %s489 = scalar_lea.vmem %s2, %s488
        %p490 = pneg %p99
        %p491 = pneg %p96
        %p492 = pneg %p127
        %p493 = pneg %p124
        %p494 = scmp.lt.s32.totalorder %s18, 0
        %s495 = scalar_select %p494, %s18, 0
        %p496 = scmp.lt.s32.totalorder %s19, 3
        %s497 = scalar_select %p496, %s19, 3
        %s498 = smul.addr %s495, 4
        %s499 = sadd.s32 %s497, %s498
        %s500 = smul.addr %s499, 8
        %s501 = scalar_lea.vmem %s3, %s500
        %p502 = scmp.lt.s32.totalorder %s18, 0
        %s503 = scalar_select %p502, %s18, 0
        %s504 = smul.addr %s503, 4
        %s505 = smul.addr %s504, 4
        %s506 = scalar_lea.vmem %s0, %s505
        %p507 = scmp.lt.s32.totalorder %s19, 3
        %s508 = scalar_select %p507, %s19, 3
        %s509 = scalar_lea.vmem %s2, %s508
        %p510 = scmp.lt.s32.totalorder %s18, 0
        %s511 = scalar_select %p510, %s18, 0
        %p512 = scmp.lt.s32.totalorder %s19, 3
        %s513 = scalar_select %p512, %s19, 3
        %s514 = smul.addr %s511, 4
        %s515 = sadd.s32 %s513, %s514
        %s516 = smul.addr %s515, 8
        %s517 = scalar_lea.vmem %s3, %s516
        %v519 = vld [vmem:[%s506] sm:$0xff]
        %v520 = vld [vmem:[%s506 + $0x8] sm:$0xff]
        %v521 = vld [vmem:[%s470] sm:$0xf]
        %v522 = vld [vmem:[%s470 + $0x4] sm:$0xf]
        %v523 = vld [vmem:[%s470 + $0x8] sm:$0xf]
        %v524 = vld [vmem:[%s470 + $0xc] sm:$0xf]
        %v525 = vld [vmem:[%s470 + $0x10] sm:$0xf]
        %v526 = vld [vmem:[%s470 + $0x14] sm:$0xf]
        %v527 = vld [vmem:[%s470 + $0x18] sm:$0xf]
        %v528 = vld [vmem:[%s470 + $0x1c] sm:$0xf]
        %v529 = vld [vmem:[%s470 + $0x20] sm:$0xf]
        %v530 = vld [vmem:[%s470 + $0x24] sm:$0xf]
        %v531 = vld [vmem:[%s470 + $0x28] sm:$0xf]
        %v532 = vld [vmem:[%s470 + $0x2c] sm:$0xf]
        %v533 = vld [vmem:[%s470 + $0x30] sm:$0xf]
        %v534 = vld [vmem:[%s470 + $0x34] sm:$0xf]
        %v535 = vld [vmem:[%s470 + $0x38] sm:$0xf]
        %v536 = vld [vmem:[%s470 + $0x3c] sm:$0xf]
        %v537 = vld [vmem:[%s470 + $0x40] sm:$0xf]
        %v538 = vld [vmem:[%s470 + $0x44] sm:$0xf]
        %v539 = vld [vmem:[%s470 + $0x48] sm:$0xf]
        %v540 = vld [vmem:[%s470 + $0x4c] sm:$0xf]
        %v541 = vld [vmem:[%s470 + $0x50] sm:$0xf]
        %v542 = vld [vmem:[%s470 + $0x54] sm:$0xf]
        %v543 = vld [vmem:[%s470 + $0x58] sm:$0xf]
        %v544 = vld [vmem:[%s470 + $0x5c] sm:$0xf]
        %v545 = vld [vmem:[%s470 + $0x60] sm:$0xf]
        %v546 = vld [vmem:[%s470 + $0x64] sm:$0xf]
        %v547 = vld [vmem:[%s470 + $0x68] sm:$0xf]
        %v548 = vld [vmem:[%s470 + $0x6c] sm:$0xf]
        %v549 = vld [vmem:[%s470 + $0x70] sm:$0xf]
        %v550 = vld [vmem:[%s470 + $0x74] sm:$0xf]
        %v551 = vld [vmem:[%s470 + $0x78] sm:$0xf]
        %v552 = vld [vmem:[%s470 + $0x7c] sm:$0xf]
        %v553 = vld [vmem:[%s470 + $0x80] sm:$0xf]
        %v554 = vld [vmem:[%s470 + $0x84] sm:$0xf]
        %v555 = vld [vmem:[%s470 + $0x88] sm:$0xf]
        %v556 = vld [vmem:[%s470 + $0x8c] sm:$0xf]
        %v557 = vld [vmem:[%s470 + $0x90] sm:$0xf]
        %v558 = vld [vmem:[%s470 + $0x94] sm:$0xf]
        %v559 = vld [vmem:[%s470 + $0x98] sm:$0xf]
        %v560 = vld [vmem:[%s470 + $0x9c] sm:$0xf]
        %v561 = vld [vmem:[%s470 + $0xa0] sm:$0xf]
        %v562 = vld [vmem:[%s470 + $0xa4] sm:$0xf]
        %v563 = vld [vmem:[%s470 + $0xa8] sm:$0xf]
        %v564 = vld [vmem:[%s470 + $0xac] sm:$0xf]
        %v565 = vld [vmem:[%s470 + $0xb0] sm:$0xf]
        %v566 = vld [vmem:[%s470 + $0xb4] sm:$0xf]
        %v567 = vld [vmem:[%s470 + $0xb8] sm:$0xf]
        %v568 = vld [vmem:[%s470 + $0xbc] sm:$0xf]
        %v569 = vld [vmem:[%s470 + $0xc0] sm:$0xf]
        %v570 = vld [vmem:[%s470 + $0xc4] sm:$0xf]
        %v571 = vld [vmem:[%s470 + $0xc8] sm:$0xf]
        %v572 = vld [vmem:[%s470 + $0xcc] sm:$0xf]
        %v573 = vld [vmem:[%s470 + $0xd0] sm:$0xf]
        %v574 = vld [vmem:[%s470 + $0xd4] sm:$0xf]
        %v575 = vld [vmem:[%s470 + $0xd8] sm:$0xf]
        %v576 = vld [vmem:[%s470 + $0xdc] sm:$0xf]
        %v577 = vld [vmem:[%s470 + $0xe0] sm:$0xf]
        %v578 = vld [vmem:[%s470 + $0xe4] sm:$0xf]
        %v579 = vld [vmem:[%s470 + $0xe8] sm:$0xf]
        %v580 = vld [vmem:[%s470 + $0xec] sm:$0xf]
        %v581 = vld [vmem:[%s470 + $0xf0] sm:$0xf]
        %v582 = vld [vmem:[%s470 + $0xf4] sm:$0xf]
        %v583 = vld [vmem:[%s470 + $0xf8] sm:$0xf]
        %v584 = vld [vmem:[%s470 + $0xfc] sm:$0xf]
        %v585 = vld [vmem:[%s509] sm:$0x1]
        %v587 = vlaneseq
        %v588 = vshrl.u32 %v587, 7
        %v589 = vsub.s32 0, %v588
        %v590 = vrot.slane %v585, %v589
        %v594 = vunpack.c.l.b16 %v519
        %v595 = vunpack.c.h.b16 %v519
        %v596 = vunpack.c.l.b16 %v520
        %v597 = vunpack.c.h.b16 %v520
        %v598 = vpack.c.b16 %v594, %v594
        %v599 = vpack.c.b16 %v595, %v595
        %v600 = vpack.c.b16 %v596, %v596
        %v601 = vpack.c.b16 %v597, %v597
        %v670 = vunpack.c.l.b16 %v521
        %v671 = vunpack.c.l.b16 %v522
        %v672 = vunpack.c.l.b16 %v523
        %v673 = vunpack.c.l.b16 %v524
        %v674 = vunpack.c.l.b16 %v525
        %v675 = vunpack.c.l.b16 %v526
        %v676 = vunpack.c.l.b16 %v527
        %v677 = vunpack.c.l.b16 %v528
        %v678 = vunpack.c.l.b16 %v529
        %v679 = vunpack.c.l.b16 %v530
        %v680 = vunpack.c.l.b16 %v531
        %v681 = vunpack.c.l.b16 %v532
        %v682 = vunpack.c.l.b16 %v533
        %v683 = vunpack.c.l.b16 %v534
        %v684 = vunpack.c.l.b16 %v535
        %v685 = vunpack.c.l.b16 %v536
        %v686 = vunpack.c.l.b16 %v537
        %v687 = vunpack.c.l.b16 %v538
        %v688 = vunpack.c.l.b16 %v539
        %v689 = vunpack.c.l.b16 %v540
        %v690 = vunpack.c.l.b16 %v541
        %v691 = vunpack.c.l.b16 %v542
        %v692 = vunpack.c.l.b16 %v543
        %v693 = vunpack.c.l.b16 %v544
        %v694 = vunpack.c.l.b16 %v545
        %v695 = vunpack.c.l.b16 %v546
        %v696 = vunpack.c.l.b16 %v547
        %v697 = vunpack.c.l.b16 %v548
        %v698 = vunpack.c.l.b16 %v549
        %v699 = vunpack.c.l.b16 %v550
        %v700 = vunpack.c.l.b16 %v551
        %v701 = vunpack.c.l.b16 %v552
        %v702 = vunpack.c.l.b16 %v553
        %v703 = vunpack.c.l.b16 %v554
        %v704 = vunpack.c.l.b16 %v555
        %v705 = vunpack.c.l.b16 %v556
        %v706 = vunpack.c.l.b16 %v557
        %v707 = vunpack.c.l.b16 %v558
        %v708 = vunpack.c.l.b16 %v559
        %v709 = vunpack.c.l.b16 %v560
        %v710 = vunpack.c.l.b16 %v561
        %v711 = vunpack.c.l.b16 %v562
        %v712 = vunpack.c.l.b16 %v563
        %v713 = vunpack.c.l.b16 %v564
        %v714 = vunpack.c.l.b16 %v565
        %v715 = vunpack.c.l.b16 %v566
        %v716 = vunpack.c.l.b16 %v567
        %v717 = vunpack.c.l.b16 %v568
        %v718 = vunpack.c.l.b16 %v569
        %v719 = vunpack.c.l.b16 %v570
        %v720 = vunpack.c.l.b16 %v571
        %v721 = vunpack.c.l.b16 %v572
        %v722 = vunpack.c.l.b16 %v573
        %v723 = vunpack.c.l.b16 %v574
        %v724 = vunpack.c.l.b16 %v575
        %v725 = vunpack.c.l.b16 %v576
        %v726 = vunpack.c.l.b16 %v577
        %v727 = vunpack.c.l.b16 %v578
        %v728 = vunpack.c.l.b16 %v579
        %v729 = vunpack.c.l.b16 %v580
        %v730 = vunpack.c.l.b16 %v581
        %v731 = vunpack.c.l.b16 %v582
        %v732 = vunpack.c.l.b16 %v583
        %v733 = vunpack.c.l.b16 %v584
        %v734 = vpack.c.b16 %v671, %v670
        %v735 = vpack.c.b16 %v673, %v672
        %v736 = vpack.c.b16 %v675, %v674
        %v737 = vpack.c.b16 %v677, %v676
        %v738 = vpack.c.b16 %v679, %v678
        %v739 = vpack.c.b16 %v681, %v680
        %v740 = vpack.c.b16 %v683, %v682
        %v741 = vpack.c.b16 %v685, %v684
        %v742 = vpack.c.b16 %v687, %v686
        %v743 = vpack.c.b16 %v689, %v688
        %v744 = vpack.c.b16 %v691, %v690
        %v745 = vpack.c.b16 %v693, %v692
        %v746 = vpack.c.b16 %v695, %v694
        %v747 = vpack.c.b16 %v697, %v696
        %v748 = vpack.c.b16 %v699, %v698
        %v749 = vpack.c.b16 %v701, %v700
        %v750 = vpack.c.b16 %v703, %v702
        %v751 = vpack.c.b16 %v705, %v704
        %v752 = vpack.c.b16 %v707, %v706
        %v753 = vpack.c.b16 %v709, %v708
        %v754 = vpack.c.b16 %v711, %v710
        %v755 = vpack.c.b16 %v713, %v712
        %v756 = vpack.c.b16 %v715, %v714
        %v757 = vpack.c.b16 %v717, %v716
        %v758 = vpack.c.b16 %v719, %v718
        %v759 = vpack.c.b16 %v721, %v720
        %v760 = vpack.c.b16 %v723, %v722
        %v761 = vpack.c.b16 %v725, %v724
        %v762 = vpack.c.b16 %v727, %v726
        %v763 = vpack.c.b16 %v729, %v728
        %v764 = vpack.c.b16 %v731, %v730
        %v765 = vpack.c.b16 %v733, %v732
        %798 = vmatprep.subr.bf16.mxu0 0
        %799 = vmatpush1.bf16.msra.mxu0 %v734
        %800 = vmatprep.subr.bf16.mxu0 0
        %801 = vmatpush1.bf16.msra.mxu0 %v735
        %802 = vmatprep.subr.bf16.mxu0 0
        %803 = vmatpush1.bf16.msra.mxu0 %v736
        %804 = vmatprep.subr.bf16.mxu0 0
        %805 = vmatpush1.bf16.msra.mxu0 %v737
        %806 = vmatprep.subr.bf16.mxu0 0
        %807 = vmatpush1.bf16.msra.mxu0 %v738
        %808 = vmatprep.subr.bf16.mxu0 0
        %809 = vmatpush1.bf16.msra.mxu0 %v739
        %810 = vmatprep.subr.bf16.mxu0 0
        %811 = vmatpush1.bf16.msra.mxu0 %v740
        %812 = vmatprep.subr.bf16.mxu0 0
        %813 = vmatpush1.bf16.msra.mxu0 %v741
        %814 = vmatprep.subr.bf16.mxu0 0
        %815 = vmatpush1.bf16.msra.mxu0 %v742
        %816 = vmatprep.subr.bf16.mxu0 0
        %817 = vmatpush1.bf16.msra.mxu0 %v743
        %818 = vmatprep.subr.bf16.mxu0 0
        %819 = vmatpush1.bf16.msra.mxu0 %v744
        %820 = vmatprep.subr.bf16.mxu0 0
        %821 = vmatpush1.bf16.msra.mxu0 %v745
        %822 = vmatprep.subr.bf16.mxu0 0
        %823 = vmatpush1.bf16.msra.mxu0 %v746
        %824 = vmatprep.subr.bf16.mxu0 0
        %825 = vmatpush1.bf16.msra.mxu0 %v747
        %826 = vmatprep.subr.bf16.mxu0 0
        %827 = vmatpush1.bf16.msra.mxu0 %v748
        %828 = vmatprep.subr.bf16.mxu0 0
        %829 = vmatpush1.bf16.msra.mxu0 %v749
        %830 = vmatprep.mubr.bf16.mxu0 %v599
        %831 = vmatmul.mubr.bf16.gmra.mrb[0].mxu0 %v598
        %v832 = vpop.f32.mrb[0].mxu0
        %v833 = vadd.f32 %v590, %v832
        %v834 = vpop.f32.mrb[0].mxu0
        %v835 = vpop.f32.mrb[0].mxu0
        %v836 = vpop.f32.mrb[0].mxu0
        %837 = vdwg.mxu0
        %838 = vmatprep.subr.bf16.mxu0 0
        %839 = vmatpush1.bf16.msra.mxu0 %v750
        %840 = vmatprep.subr.bf16.mxu0 0
        %841 = vmatpush1.bf16.msra.mxu0 %v751
        %842 = vmatprep.subr.bf16.mxu0 0
        %843 = vmatpush1.bf16.msra.mxu0 %v752
        %844 = vmatprep.subr.bf16.mxu0 0
        %845 = vmatpush1.bf16.msra.mxu0 %v753
        %846 = vmatprep.subr.bf16.mxu0 0
        %847 = vmatpush1.bf16.msra.mxu0 %v754
        %848 = vmatprep.subr.bf16.mxu0 0
        %849 = vmatpush1.bf16.msra.mxu0 %v755
        %850 = vmatprep.subr.bf16.mxu0 0
        %851 = vmatpush1.bf16.msra.mxu0 %v756
        %852 = vmatprep.subr.bf16.mxu0 0
        %853 = vmatpush1.bf16.msra.mxu0 %v757
        %854 = vmatprep.subr.bf16.mxu0 0
        %855 = vmatpush1.bf16.msra.mxu0 %v758
        %856 = vmatprep.subr.bf16.mxu0 0
        %857 = vmatpush1.bf16.msra.mxu0 %v759
        %858 = vmatprep.subr.bf16.mxu0 0
        %859 = vmatpush1.bf16.msra.mxu0 %v760
        %860 = vmatprep.subr.bf16.mxu0 0
        %861 = vmatpush1.bf16.msra.mxu0 %v761
        %862 = vmatprep.subr.bf16.mxu0 0
        %863 = vmatpush1.bf16.msra.mxu0 %v762
        %864 = vmatprep.subr.bf16.mxu0 0
        %865 = vmatpush1.bf16.msra.mxu0 %v763
        %866 = vmatprep.subr.bf16.mxu0 0
        %867 = vmatpush1.bf16.msra.mxu0 %v764
        %868 = vmatprep.subr.bf16.mxu0 0
        %869 = vmatpush1.bf16.msra.mxu0 %v765
        %870 = vmatprep.mubr.bf16.mxu0 %v601
        %871 = vmatmul.mubr.bf16.gmra.mrb[0].mxu0 %v600
        %v872 = vpop.f32.mrb[0].mxu0
        %v873 = vadd.f32 %v833, %v872
        %v874 = vpop.f32.mrb[0].mxu0
        %v875 = vpop.f32.mrb[0].mxu0
        %v876 = vpop.f32.mrb[0].mxu0
        %877 = vdwg.mxu0
        %878 = vst [vmem:[%s517] sm:$0xff] %v873
        %p879 = scmp.lt.s32.totalorder %s18, 0
        %s880 = scalar_select %p879, %s18, 0
        %p881 = scmp.lt.s32.totalorder %s19, 3
        %s882 = scalar_select %p881, %s19, 3
        %s883 = smul.addr %s880, 4
        %s884 = sadd.s32 %s882, %s883
        %s885 = smul.addr %s884, 8
        %s886 = scalar_lea.vmem %s3, %s885
        // Predicated region
        $region74: #{rnd_predictor_head_forward.11} parent=68 // pred_check
          %p887 = pneg %p124
        $region75: #{rnd_predictor_head_forward.11} parent=68 // pred_check_branch
          %889 = sbr.rel (%p887) target = $region77
        $region76: #{rnd_predictor_head_forward.11} parent=68 // pred_region
          _
        $region77: #{rnd_predictor_head_forward.11} parent=68 // pred_fallthru
          _
      $region69: #{rnd_predictor_head_forward.11} parent=5 // pred_fallthru
        _
      %p890 = scmp.le.s32.totalorder 2, %s9
      // Predicated region
      $region78: #{rnd_predictor_head_forward.11} parent=5 // pred_check
        %p891 = pneg %p890
      $region79: #{rnd_predictor_head_forward.11} parent=5 // pred_check_branch
        %893 = sbr.rel (%p891) target = $region81
      $region80: #{rnd_predictor_head_forward.11} parent=5 // pred_region
        %s894 = ssub.s32 %s9, 2
        // Predicated region
        $region82: #{rnd_predictor_head_forward.11} parent=80 // pred_check
          %p895 = pneg %p130
        $region83: #{rnd_predictor_head_forward.11} parent=80 // pred_check_branch
          %897 = sbr.rel (%p895) target = $region85
        $region84: #{rnd_predictor_head_forward.11} parent=80 // pred_region
          %p898 = scmp.lt.s32.totalorder %s20, 0
          %s899 = scalar_select %p898, %s20, 0
          %p900 = scmp.lt.s32.totalorder %s21, 3
          %s901 = scalar_select %p900, %s21, 3
          %s902 = smul.addr %s899, 4
          %s903 = sadd.s32 %s901, %s902
          %s904 = smul.addr %s903, 8
          %s905 = scalar_lea.vmem %s3, %s904
        $region85: #{rnd_predictor_head_forward.11} parent=80 // pred_fallthru
          _
      $region81: #{rnd_predictor_head_forward.11} parent=5 // pred_fallthru
        _
    $region6: #{rnd_predictor_head_forward.11} parent=1 // loop_footer
      %s13 = sadd.s32 1, %s9
    $region7: #{rnd_predictor_head_forward.11} parent=1 // loop_footer_branch
      %8 = sbr.rel target = $region3
    $region8: #{rnd_predictor_head_forward.11} parent=1 // loop_exit
      _

</llo_original>
